<compile_context>
chip_gen: v6e
topology: v6e:2x2x1
jax: 0.10.0
libtpu: 0.0.40
codegen_flags: <defaults>
</compile_context>

<pallas_src>
import functools

import jax
import jax.numpy as jnp
from jax.experimental import pallas as pl
from jax.experimental.pallas import tpu as pltpu

# ---- small BERT-like config (stand-in for bert-base-multilingual-cased) ----
VOCAB = 100
HIDDEN = 32
LAYERS = 2
HEADS = 4
HEAD_DIM = HIDDEN // HEADS
INTERMEDIATE = 64
MAX_POS = 16
TYPE_VOCAB = 2
NUM_CLASSES = 3
CLS_PAD = 128                     # lane-dense padded classifier output width
LN_EPS = 1e-12
ATTN_SCALE = 1.0 / float(HEAD_DIM) ** 0.5


# ----------------------------- in-kernel helpers -----------------------------
def _mxu(a, b):
    # bf16 MXU inputs, f32 accumulation.  Weights are already stored in bf16;
    # activations are cast at the point of use.  Elementwise math stays f32.
    return jnp.dot(a.astype(jnp.bfloat16), b.astype(jnp.bfloat16),
                   preferred_element_type=jnp.float32)


def _ln(x, g, b):
    mean = jnp.mean(x, axis=-1, keepdims=True)
    var = jnp.mean((x - mean) ** 2, axis=-1, keepdims=True)
    return (x - mean) * jax.lax.rsqrt(var + LN_EPS) * g + b


def _gelu(x):
    # TODO(synk): HF BERT default is exact erf-GELU; tanh-approx differs ~1e-3.
    return 0.5 * x * (1.0 + jnp.tanh(0.7978845608028654 *
                                     (x + 0.044715 * x * x * x)))


# ----------------------------- Pallas kernels --------------------------------
def _embed_ln_kernel(w_ref, p_ref, t_ref, g_ref, b_ref, o_ref):
    # word/pos/type embedding add fused with the embedding LayerNorm.
    x = w_ref[...] + p_ref[...] + t_ref[...]            # (B,S,H)+(1,S,H)+(B,S,H)
    o_ref[...] = _ln(x, g_ref[...], b_ref[...]).astype(o_ref.dtype)


def _encoder_layer_kernel(h_ref, mask_ref,
                          wqkv_ref, bqkv_ref, wo_ref, bo_ref,
                          ln1_g_ref, ln1_b_ref,
                          wi_ref, bi_ref, wf_ref, bf_ref,
                          ln2_g_ref, ln2_b_ref,
                          o_ref, attn_scratch, *, batch, seq):
    h = h_ref[...]                                        # (M, H) f32
    mask = mask_ref[...]                                  # (B, S) f32 additive

    # fused QKV projection: one [M,H] @ [H,3H] matmul
    qkv = _mxu(h, wqkv_ref[...]) + bqkv_ref[...]          # (M, 3H) f32
    q = qkv[:, 0:HIDDEN]
    k = qkv[:, HIDDEN:2 * HIDDEN]
    v = qkv[:, 2 * HIDDEN:3 * HIDDEN]

    # attention for all batches/heads inside one grid step; the output
    # projection is folded into the head loop (ctx_h @ Wo[h]), so there is no
    # head-split / transpose between kernels.
    for b in range(batch):
        rows = slice(b * seq, (b + 1) * seq)
        m_b = mask[b:b + 1, :]                            # (1, S)
        acc = jnp.zeros((seq, HIDDEN), jnp.float32)
        for hd in range(HEADS):
            cols = slice(hd * HEAD_DIM, (hd + 1) * HEAD_DIM)
            q_bh = q[rows, cols].astype(jnp.bfloat16)     # (S, Dh)
            k_bh = k[rows, cols].astype(jnp.bfloat16)
            v_bh = v[rows, cols].astype(jnp.bfloat16)
            s = jax.lax.dot_general(q_bh, k_bh, (((1,), (1,)), ((), ())),
                                    preferred_element_type=jnp.float32)
            s = s * ATTN_SCALE + m_b                      # f32 mask add
            p = jnp.exp(s - jnp.max(s, axis=-1, keepdims=True))
            p = p * pl.reciprocal(jnp.sum(p, axis=-1, keepdims=True),
                                  approx=True)
            ctx = jnp.dot(p.astype(jnp.bfloat16), v_bh,
                          preferred_element_type=jnp.float32)   # (S, Dh)
            acc = acc + jnp.dot(ctx.astype(jnp.bfloat16), wo_ref[hd],
                                preferred_element_type=jnp.float32)  # (S, H)
        attn_scratch[rows, :] = acc

    # output-proj bias + residual + LayerNorm1 (fused)
    h1 = _ln(attn_scratch[...] + bo_ref[...] + h, ln1_g_ref[...], ln1_b_ref[...])

    # FFN up-proj + GELU + down-proj + residual + LayerNorm2 (fused)
    ff = _gelu(_mxu(h1, wi_ref[...]) + bi_ref[...])
    y2 = _mxu(ff, wf_ref[...]) + bf_ref[...] + h1
    o_ref[...] = _ln(y2, ln2_g_ref[...], ln2_b_ref[...]).astype(o_ref.dtype)


def _pool_cls_kernel(cls_ref, pw_ref, pb_ref, cw_ref, cb_ref, o_ref):
    pooled = jnp.tanh(_mxu(cls_ref[...], pw_ref[...]) + pb_ref[...])
    # Dropout(p=0.3) is the identity in eval mode.
    # TODO(synk): training-mode stochastic dropout is intentionally not applied.
    o_ref[...] = (_mxu(pooled, cw_ref[...]) + cb_ref[...]).astype(o_ref.dtype)


# ----------------------------- kernel wrappers --------------------------------
def embed_layernorm(word_g, pos, type_g, gamma, beta):
    B, S, H = word_g.shape
    return pl.pallas_call(
        _embed_ln_kernel,
        out_shape=jax.ShapeDtypeStruct((B, S, H), jnp.float32),
        grid=(1,),
        in_specs=[pl.BlockSpec((B, S, H), lambda i: (0, 0, 0)),
                  pl.BlockSpec((1, S, H), lambda i: (0, 0, 0)),
                  pl.BlockSpec((B, S, H), lambda i: (0, 0, 0)),
                  pl.BlockSpec((1, H), lambda i: (0, 0)),
                  pl.BlockSpec((1, H), lambda i: (0, 0))],
        out_specs=pl.BlockSpec((B, S, H), lambda i: (0, 0, 0)),
    )(word_g, pos.reshape(1, S, H), type_g,
      gamma.reshape(1, H), beta.reshape(1, H))


def encoder_layer(h2d, mask_add, lp, batch, seq):
    M, H = h2d.shape

    def full(shape):
        return pl.BlockSpec(shape, lambda i, _s=shape: (0,) * len(_s))

    kern = functools.partial(_encoder_layer_kernel, batch=batch, seq=seq)
    return pl.pallas_call(
        kern,
        out_shape=jax.ShapeDtypeStruct((M, H), jnp.float32),
        grid=(1,),
        in_specs=[full((M, H)),                        # h
                  full((batch, seq)),                  # additive mask
                  full((H, 3 * H)), full((1, 3 * H)),  # wqkv, bqkv
                  full((HEADS, HEAD_DIM, H)),          # wo (per-head)
                  full((1, H)),                        # bo
                  full((1, H)), full((1, H)),          # ln1 g,b
                  full((H, INTERMEDIATE)), full((1, INTERMEDIATE)),  # wi, bi
                  full((INTERMEDIATE, H)), full((1, H)),             # wf, bf
                  full((1, H)), full((1, H))],         # ln2 g,b
        out_specs=full((M, H)),
        scratch_shapes=[pltpu.VMEM((M, H), jnp.float32)],
    )(h2d, mask_add,
      lp["wqkv"], lp["bqkv"], lp["wo"], lp["bo"],
      lp["ln1_g"], lp["ln1_b"],
      lp["wi"], lp["bi"], lp["wf"], lp["bf"],
      lp["ln2_g"], lp["ln2_b"])


def pool_and_classify(cls2d, pool_w, pool_b, cls_w_pad, cls_b_pad):
    B, H = cls2d.shape
    Npad = cls_w_pad.shape[1]
    return pl.pallas_call(
        _pool_cls_kernel,
        out_shape=jax.ShapeDtypeStruct((B, Npad), jnp.float32),
        grid=(1,),
        in_specs=[pl.BlockSpec((B, H), lambda i: (0, 0)),
                  pl.BlockSpec((H, H), lambda i: (0, 0)),
                  pl.BlockSpec((1, H), lambda i: (0, 0)),
                  pl.BlockSpec((H, Npad), lambda i: (0, 0)),
                  pl.BlockSpec((1, Npad), lambda i: (0, 0))],
        out_specs=pl.BlockSpec((B, Npad), lambda i: (0, 0)),
    )(cls2d, pool_w, pool_b.reshape(1, H), cls_w_pad, cls_b_pad.reshape(1, Npad))


# ----------------------------- parameter init --------------------------------
def init_params(key):
    def nrm(k, shape, std=0.02):
        return (std * jax.random.normal(k, shape)).astype(jnp.float32)

    keys = jax.random.split(key, 8 + LAYERS)
    params = {
        "word_emb": nrm(keys[0], (VOCAB, HIDDEN)),
        "pos_emb": nrm(keys[1], (MAX_POS, HIDDEN)),
        "type_emb": nrm(keys[2], (TYPE_VOCAB, HIDDEN)),
        "emb_ln_g": jnp.ones((HIDDEN,), jnp.float32),
        "emb_ln_b": jnp.zeros((HIDDEN,), jnp.float32),
        "pool_w": nrm(keys[3], (HIDDEN, HIDDEN)),
        "pool_b": jnp.zeros((HIDDEN,), jnp.float32),
        "cls_w": nrm(keys[4], (HIDDEN, NUM_CLASSES)),
        "cls_b": jnp.zeros((NUM_CLASSES,), jnp.float32),
        "layers": [],
    }
    for l in range(LAYERS):
        lk = jax.random.split(keys[8 + l], 6)
        params["layers"].append({
            "wq": nrm(lk[0], (HIDDEN, HIDDEN)), "bq": jnp.zeros((HIDDEN,), jnp.float32),
            "wk": nrm(lk[1], (HIDDEN, HIDDEN)), "bk": jnp.zeros((HIDDEN,), jnp.float32),
            "wv": nrm(lk[2], (HIDDEN, HIDDEN)), "bv": jnp.zeros((HIDDEN,), jnp.float32),
            "wo": nrm(lk[3], (HIDDEN, HIDDEN)), "bo": jnp.zeros((HIDDEN,), jnp.float32),
            "ln1_g": jnp.ones((HIDDEN,), jnp.float32), "ln1_b": jnp.zeros((HIDDEN,), jnp.float32),
            "wi": nrm(lk[4], (HIDDEN, INTERMEDIATE)), "bi": jnp.zeros((INTERMEDIATE,), jnp.float32),
            "wf": nrm(lk[5], (INTERMEDIATE, HIDDEN)), "bf": jnp.zeros((HIDDEN,), jnp.float32),
            "ln2_g": jnp.ones((HIDDEN,), jnp.float32), "ln2_b": jnp.zeros((HIDDEN,), jnp.float32),
        })
    return params


def fuse_params(params):
    """Pre-fuse / pre-cast parameters for the Pallas kernels:
       - concat Wq|Wk|Wv -> [H,3H] (one fused QKV matmul, one DMA of x)
       - reshape Wo -> [HEADS, Dh, H] for the per-head output projection
       - cast MXU weights to bf16 (halves weight DMA bytes); biases / LN in f32
       - pad the 3-class head to a lane-dense [H,128] output."""
    fused = {
        "word_emb": params["word_emb"],
        "pos_emb": params["pos_emb"],
        "type_emb": params["type_emb"],
        "emb_ln_g": params["emb_ln_g"], "emb_ln_b": params["emb_ln_b"],
        "pool_w": params["pool_w"].astype(jnp.bfloat16),
        "pool_b": params["pool_b"],
        "cls_w_pad": jnp.zeros((HIDDEN, CLS_PAD), jnp.float32)
                        .at[:, :NUM_CLASSES].set(params["cls_w"])
                        .astype(jnp.bfloat16),
        "cls_b_pad": jnp.zeros((CLS_PAD,), jnp.float32)
                        .at[:NUM_CLASSES].set(params["cls_b"]),
        "layers": [],
    }
    for lp in params["layers"]:
        fused["layers"].append({
            "wqkv": jnp.concatenate([lp["wq"], lp["wk"], lp["wv"]], axis=1)
                       .astype(jnp.bfloat16),
            "bqkv": jnp.concatenate([lp["bq"], lp["bk"], lp["bv"]])
                       .reshape(1, 3 * HIDDEN),
            "wo": lp["wo"].reshape(HEADS, HEAD_DIM, HIDDEN).astype(jnp.bfloat16),
            "bo": lp["bo"].reshape(1, HIDDEN),
            "ln1_g": lp["ln1_g"].reshape(1, HIDDEN),
            "ln1_b": lp["ln1_b"].reshape(1, HIDDEN),
            "wi": lp["wi"].astype(jnp.bfloat16),
            "bi": lp["bi"].reshape(1, INTERMEDIATE),
            "wf": lp["wf"].astype(jnp.bfloat16),
            "bf": lp["bf"].reshape(1, HIDDEN),
            "ln2_g": lp["ln2_g"].reshape(1, HIDDEN),
            "ln2_b": lp["ln2_b"].reshape(1, HIDDEN),
        })
    return fused


# ------------------------------- forward pass ---------------------------------
def sentiment_classifier_forward(params, input_ids, attention_mask, token_type_ids):
    B, S = input_ids.shape

    # embedding gathers are glue; the 3-way add + LayerNorm run in one kernel
    word_g = params["word_emb"][input_ids]                 # (B, S, H)
    type_g = params["type_emb"][token_type_ids]            # (B, S, H)
    pos = params["pos_emb"][:S]                            # (S, H)
    h = embed_layernorm(word_g, pos, type_g,
                        params["emb_ln_g"], params["emb_ln_b"])
    h = h.reshape(B * S, HIDDEN)

    # additive attention mask (kept f32; applied after the f32 score accum)
    mask_add = (1.0 - attention_mask.astype(jnp.float32)) * -1e9   # (B, S)

    # one fused Pallas kernel per encoder layer
    for lp in params["layers"]:
        h = encoder_layer(h, mask_add, lp, B, S)

    cls = h.reshape(B, S, HIDDEN)[:, 0, :]                 # [CLS] token, (B, H)
    logits_pad = pool_and_classify(cls, params["pool_w"], params["pool_b"],
                                   params["cls_w_pad"], params["cls_b_pad"])
    return logits_pad[:, :NUM_CLASSES]                     # (B, NUM_CLASSES)


if __name__ == "__main__":
    key = jax.random.PRNGKey(0)
    pkey, ikey = jax.random.split(key)
    params = fuse_params(init_params(pkey))

    B, S = 2, 8
    input_ids = jax.random.randint(ikey, (B, S), 0, VOCAB, dtype=jnp.int32)
    attention_mask = jnp.array([[1, 1, 1, 1, 1, 1, 1, 1],
                                [1, 1, 1, 1, 1, 0, 0, 0]], dtype=jnp.int32)
    token_type_ids = jnp.zeros((B, S), dtype=jnp.int32)

    fwd = jax.jit(sentiment_classifier_forward)
    logits = fwd(params, input_ids, attention_mask, token_type_ids)
    jax.block_until_ready(logits)
    assert logits.shape == (B, NUM_CLASSES) and logits.dtype == jnp.float32
    print("KERNEL_OK")
</pallas_src>

<mosaic_0001>
module attributes {stable_mosaic.version = 11 : i64} {
  func.func @_pool_cls_kernel(%arg0: i32, %arg1: memref<2x32xf32, #tpu.memory_space<vmem>>, %arg2: memref<32x32xbf16, #tpu.memory_space<vmem>>, %arg3: memref<1x32xf32, #tpu.memory_space<vmem>>, %arg4: memref<32x128xbf16, #tpu.memory_space<vmem>>, %arg5: memref<1x128xf32, #tpu.memory_space<vmem>>, %arg6: memref<2x128xf32, #tpu.memory_space<vmem>>) attributes {dimension_semantics = [#tpu.dimension_semantics<arbitrary>], iteration_bounds = array<i64: 1>, scalar_prefetch = 0 : i64, scratch_operands = 0 : i64, tpu.core_type = #tpu.core_type<tc>, window_params = [{pipeline_mode = #tpu.pipeline_mode<synchronous>, transform_indices = @transform_0, window_bounds = array<i64: 2, 32>}, {pipeline_mode = #tpu.pipeline_mode<synchronous>, transform_indices = @transform_1, window_bounds = array<i64: 32, 32>}, {pipeline_mode = #tpu.pipeline_mode<synchronous>, transform_indices = @transform_2, window_bounds = array<i64: 1, 32>}, {pipeline_mode = #tpu.pipeline_mode<synchronous>, transform_indices = @transform_3, window_bounds = array<i64: 32, 128>}, {pipeline_mode = #tpu.pipeline_mode<synchronous>, transform_indices = @transform_4, window_bounds = array<i64: 1, 128>}, {pipeline_mode = #tpu.pipeline_mode<synchronous>, transform_indices = @transform_5, window_bounds = array<i64: 2, 128>}]} {
    %c0 = arith.constant 0 : index
    %c0_0 = arith.constant 0 : index
    %0 = vector.load %arg1[%c0, %c0_0] : memref<2x32xf32, #tpu.memory_space<vmem>>, vector<2x32xf32>
    %c0_1 = arith.constant 0 : index
    %c0_2 = arith.constant 0 : index
    %1 = vector.load %arg2[%c0_1, %c0_2] : memref<32x32xbf16, #tpu.memory_space<vmem>>, vector<32x32xbf16>
    %2 = arith.truncf %0 : vector<2x32xf32> to vector<2x32xbf16>
    %cst = arith.constant dense<0.000000e+00> : vector<2x32xf32>
    %3 = tpu.matmul %2, %1, %cst {dimension_numbers = #tpu.dot_dimension_numbers<[1], [0], [0], [1], [0, 0, 1, 1], [], []>} : vector<2x32xbf16>, vector<32x32xbf16>, vector<2x32xf32> -> vector<2x32xf32>
    %c0_3 = arith.constant 0 : index
    %c0_4 = arith.constant 0 : index
    %4 = vector.load %arg3[%c0_3, %c0_4] : memref<1x32xf32, #tpu.memory_space<vmem>>, vector<1x32xf32>
    %5 = vector.broadcast %4 : vector<1x32xf32> to vector<2x32xf32>
    %6 = arith.addf %3, %5 : vector<2x32xf32>
    %7 = math.tanh %6 : vector<2x32xf32>
    %c0_5 = arith.constant 0 : index
    %c0_6 = arith.constant 0 : index
    %8 = vector.load %arg4[%c0_5, %c0_6] : memref<32x128xbf16, #tpu.memory_space<vmem>>, vector<32x128xbf16>
    %9 = arith.truncf %7 : vector<2x32xf32> to vector<2x32xbf16>
    %cst_7 = arith.constant dense<0.000000e+00> : vector<2x128xf32>
    %10 = tpu.matmul %9, %8, %cst_7 {dimension_numbers = #tpu.dot_dimension_numbers<[1], [0], [0], [1], [0, 0, 1, 1], [], []>} : vector<2x32xbf16>, vector<32x128xbf16>, vector<2x128xf32> -> vector<2x128xf32>
    %c0_8 = arith.constant 0 : index
    %c0_9 = arith.constant 0 : index
    %11 = vector.load %arg5[%c0_8, %c0_9] : memref<1x128xf32, #tpu.memory_space<vmem>>, vector<1x128xf32>
    %12 = vector.broadcast %11 : vector<1x128xf32> to vector<2x128xf32>
    %13 = arith.addf %10, %12 : vector<2x128xf32>
    %c0_10 = arith.constant 0 : index
    %c0_11 = arith.constant 0 : index
    %14 = vector.load %arg6[%c0_10, %c0_11] : memref<2x128xf32, #tpu.memory_space<vmem>>, vector<2x128xf32>
    tpu.vector_store %arg6[%c0_10, %c0_11], %13 {strides = array<i32>} : memref<2x128xf32, #tpu.memory_space<vmem>>, vector<2x128xf32>,
    return
  }
  func.func @transform_0(%arg0: i32) -> (i32, i32) {
    %c0_i32 = arith.constant 0 : i32
    %c0_i32_0 = arith.constant 0 : i32
    %c0_i32_1 = arith.constant 0 : i32
    return %c0_i32, %c0_i32_0 : i32, i32
  }
  func.func @transform_1(%arg0: i32) -> (i32, i32) {
    %c0_i32 = arith.constant 0 : i32
    %c0_i32_0 = arith.constant 0 : i32
    %c0_i32_1 = arith.constant 0 : i32
    return %c0_i32, %c0_i32_0 : i32, i32
  }
  func.func @transform_2(%arg0: i32) -> (i32, i32) {
    %c0_i32 = arith.constant 0 : i32
    %c0_i32_0 = arith.constant 0 : i32
    %c0_i32_1 = arith.constant 0 : i32
    return %c0_i32, %c0_i32_0 : i32, i32
  }
  func.func @transform_3(%arg0: i32) -> (i32, i32) {
    %c0_i32 = arith.constant 0 : i32
    %c0_i32_0 = arith.constant 0 : i32
    %c0_i32_1 = arith.constant 0 : i32
    return %c0_i32, %c0_i32_0 : i32, i32
  }
  func.func @transform_4(%arg0: i32) -> (i32, i32) {
    %c0_i32 = arith.constant 0 : i32
    %c0_i32_0 = arith.constant 0 : i32
    %c0_i32_1 = arith.constant 0 : i32
    return %c0_i32, %c0_i32_0 : i32, i32
  }
  func.func @transform_5(%arg0: i32) -> (i32, i32) {
    %c0_i32 = arith.constant 0 : i32
    %c0_i32_0 = arith.constant 0 : i32
    %c0_i32_1 = arith.constant 0 : i32
    return %c0_i32, %c0_i32_0 : i32, i32
  }
}

module attributes {stable_mosaic.version = 11 : i64} {
  func.func @_embed_ln_kernel(%arg0: i32, %arg1: memref<2x8x32xf32, #tpu.memory_space<vmem>>, %arg2: memref<1x8x32xf32, #tpu.memory_space<vmem>>, %arg3: memref<2x8x32xf32, #tpu.memory_space<vmem>>, %arg4: memref<1x32xf32, #tpu.memory_space<vmem>>, %arg5: memref<1x32xf32, #tpu.memory_space<vmem>>, %arg6: memref<2x8x32xf32, #tpu.memory_space<vmem>>) attributes {dimension_semantics = [#tpu.dimension_semantics<arbitrary>], iteration_bounds = array<i64: 1>, scalar_prefetch = 0 : i64, scratch_operands = 0 : i64, tpu.core_type = #tpu.core_type<tc>, window_params = [{pipeline_mode = #tpu.pipeline_mode<synchronous>, transform_indices = @transform_0, window_bounds = array<i64: 2, 8, 32>}, {pipeline_mode = #tpu.pipeline_mode<synchronous>, transform_indices = @transform_1, window_bounds = array<i64: 1, 8, 32>}, {pipeline_mode = #tpu.pipeline_mode<synchronous>, transform_indices = @transform_2, window_bounds = array<i64: 2, 8, 32>}, {pipeline_mode = #tpu.pipeline_mode<synchronous>, transform_indices = @transform_3, window_bounds = array<i64: 1, 32>}, {pipeline_mode = #tpu.pipeline_mode<synchronous>, transform_indices = @transform_4, window_bounds = array<i64: 1, 32>}, {pipeline_mode = #tpu.pipeline_mode<synchronous>, transform_indices = @transform_5, window_bounds = array<i64: 2, 8, 32>}]} {
    %c0 = arith.constant 0 : index
    %c0_0 = arith.constant 0 : index
    %c0_1 = arith.constant 0 : index
    %0 = vector.load %arg1[%c0, %c0_0, %c0_1] : memref<2x8x32xf32, #tpu.memory_space<vmem>>, vector<2x8x32xf32>
    %c0_2 = arith.constant 0 : index
    %c0_3 = arith.constant 0 : index
    %c0_4 = arith.constant 0 : index
    %1 = vector.load %arg2[%c0_2, %c0_3, %c0_4] : memref<1x8x32xf32, #tpu.memory_space<vmem>>, vector<1x8x32xf32>
    %2 = vector.broadcast %1 : vector<1x8x32xf32> to vector<2x8x32xf32>
    %3 = arith.addf %0, %2 : vector<2x8x32xf32>
    %c0_5 = arith.constant 0 : index
    %c0_6 = arith.constant 0 : index
    %c0_7 = arith.constant 0 : index
    %4 = vector.load %arg3[%c0_5, %c0_6, %c0_7] : memref<2x8x32xf32, #tpu.memory_space<vmem>>, vector<2x8x32xf32>
    %5 = arith.addf %3, %4 : vector<2x8x32xf32>
    %c0_8 = arith.constant 0 : index
    %c0_9 = arith.constant 0 : index
    %6 = vector.load %arg4[%c0_8, %c0_9] : memref<1x32xf32, #tpu.memory_space<vmem>>, vector<1x32xf32>
    %c0_10 = arith.constant 0 : index
    %c0_11 = arith.constant 0 : index
    %7 = vector.load %arg5[%c0_10, %c0_11] : memref<1x32xf32, #tpu.memory_space<vmem>>, vector<1x32xf32>
    %cst = arith.constant dense<0.000000e+00> : vector<2x8xf32>
    %8 = vector.multi_reduction <add>, %5, %cst [2] : vector<2x8x32xf32> to vector<2x8xf32>
    %9 = vector.shape_cast %8 : vector<2x8xf32> to vector<2x8x1xf32>
    %cst_12 = arith.constant 3.200000e+01 : f32
    %10 = vector.broadcast %cst_12 : f32 to vector<2x8x1xf32>
    %11 = arith.divf %9, %10 : vector<2x8x1xf32>
    %12 = vector.broadcast %11 : vector<2x8x1xf32> to vector<2x8x32xf32>
    %13 = arith.subf %5, %12 : vector<2x8x32xf32>
    %14 = arith.mulf %13, %13 : vector<2x8x32xf32>
    %cst_13 = arith.constant dense<0.000000e+00> : vector<2x8xf32>
    %15 = vector.multi_reduction <add>, %14, %cst_13 [2] : vector<2x8x32xf32> to vector<2x8xf32>
    %16 = vector.shape_cast %15 : vector<2x8xf32> to vector<2x8x1xf32>
    %cst_14 = arith.constant 3.200000e+01 : f32
    %17 = vector.broadcast %cst_14 : f32 to vector<2x8x1xf32>
    %18 = arith.divf %16, %17 : vector<2x8x1xf32>
    %19 = vector.broadcast %11 : vector<2x8x1xf32> to vector<2x8x32xf32>
    %20 = arith.subf %5, %19 : vector<2x8x32xf32>
    %cst_15 = arith.constant 9.99999996E-13 : f32
    %21 = vector.broadcast %cst_15 : f32 to vector<2x8x1xf32>
    %22 = arith.addf %18, %21 : vector<2x8x1xf32>
    %23 = math.rsqrt %22 : vector<2x8x1xf32>
    %24 = vector.broadcast %23 : vector<2x8x1xf32> to vector<2x8x32xf32>
    %25 = arith.mulf %20, %24 : vector<2x8x32xf32>
    %26 = vector.shape_cast %6 : vector<1x32xf32> to vector<1x1x32xf32>
    %27 = vector.broadcast %26 : vector<1x1x32xf32> to vector<2x8x32xf32>
    %28 = arith.mulf %25, %27 : vector<2x8x32xf32>
    %29 = vector.shape_cast %7 : vector<1x32xf32> to vector<1x1x32xf32>
    %30 = vector.broadcast %29 : vector<1x1x32xf32> to vector<2x8x32xf32>
    %31 = arith.addf %28, %30 : vector<2x8x32xf32>
    %c0_16 = arith.constant 0 : index
    %c0_17 = arith.constant 0 : index
    %c0_18 = arith.constant 0 : index
    %32 = vector.load %arg6[%c0_16, %c0_17, %c0_18] : memref<2x8x32xf32, #tpu.memory_space<vmem>>, vector<2x8x32xf32>
    tpu.vector_store %arg6[%c0_16, %c0_17, %c0_18], %31 {strides = array<i32>} : memref<2x8x32xf32, #tpu.memory_space<vmem>>, vector<2x8x32xf32>,
    return
  }
  func.func @transform_0(%arg0: i32) -> (i32, i32, i32) {
    %c0_i32 = arith.constant 0 : i32
    %c0_i32_0 = arith.constant 0 : i32
    %c0_i32_1 = arith.constant 0 : i32
    %c0_i32_2 = arith.constant 0 : i32
    return %c0_i32, %c0_i32_0, %c0_i32_1 : i32, i32, i32
  }
  func.func @transform_1(%arg0: i32) -> (i32, i32, i32) {
    %c0_i32 = arith.constant 0 : i32
    %c0_i32_0 = arith.constant 0 : i32
    %c0_i32_1 = arith.constant 0 : i32
    %c0_i32_2 = arith.constant 0 : i32
    return %c0_i32, %c0_i32_0, %c0_i32_1 : i32, i32, i32
  }
  func.func @transform_2(%arg0: i32) -> (i32, i32, i32) {
    %c0_i32 = arith.constant 0 : i32
    %c0_i32_0 = arith.constant 0 : i32
    %c0_i32_1 = arith.constant 0 : i32
    %c0_i32_2 = arith.constant 0 : i32
    return %c0_i32, %c0_i32_0, %c0_i32_1 : i32, i32, i32
  }
  func.func @transform_3(%arg0: i32) -> (i32, i32) {
    %c0_i32 = arith.constant 0 : i32
    %c0_i32_0 = arith.constant 0 : i32
    %c0_i32_1 = arith.constant 0 : i32
    return %c0_i32, %c0_i32_0 : i32, i32
  }
  func.func @transform_4(%arg0: i32) -> (i32, i32) {
    %c0_i32 = arith.constant 0 : i32
    %c0_i32_0 = arith.constant 0 : i32
    %c0_i32_1 = arith.constant 0 : i32
    return %c0_i32, %c0_i32_0 : i32, i32
  }
  func.func @transform_5(%arg0: i32) -> (i32, i32, i32) {
    %c0_i32 = arith.constant 0 : i32
    %c0_i32_0 = arith.constant 0 : i32
    %c0_i32_1 = arith.constant 0 : i32
    %c0_i32_2 = arith.constant 0 : i32
    return %c0_i32, %c0_i32_0, %c0_i32_1 : i32, i32, i32
  }
}

module attributes {stable_mosaic.version = 11 : i64} {
  func.func @_encoder_layer_kernel(%arg0: i32, %arg1: memref<16x32xf32, #tpu.memory_space<vmem>>, %arg2: memref<2x8xf32, #tpu.memory_space<vmem>>, %arg3: memref<32x96xbf16, #tpu.memory_space<vmem>>, %arg4: memref<1x96xf32, #tpu.memory_space<vmem>>, %arg5: memref<4x8x32xbf16, #tpu.memory_space<vmem>>, %arg6: memref<1x32xf32, #tpu.memory_space<vmem>>, %arg7: memref<1x32xf32, #tpu.memory_space<vmem>>, %arg8: memref<1x32xf32, #tpu.memory_space<vmem>>, %arg9: memref<32x64xbf16, #tpu.memory_space<vmem>>, %arg10: memref<1x64xf32, #tpu.memory_space<vmem>>, %arg11: memref<64x32xbf16, #tpu.memory_space<vmem>>, %arg12: memref<1x32xf32, #tpu.memory_space<vmem>>, %arg13: memref<1x32xf32, #tpu.memory_space<vmem>>, %arg14: memref<1x32xf32, #tpu.memory_space<vmem>>, %arg15: memref<16x32xf32, #tpu.memory_space<vmem>>, %arg16: memref<16x32xf32, #tpu.memory_space<vmem>>) attributes {dimension_semantics = [#tpu.dimension_semantics<arbitrary>], iteration_bounds = array<i64: 1>, scalar_prefetch = 0 : i64, scratch_operands = 1 : i64, tpu.core_type = #tpu.core_type<tc>, window_params = [{pipeline_mode = #tpu.pipeline_mode<synchronous>, transform_indices = @transform_0, window_bounds = array<i64: 16, 32>}, {pipeline_mode = #tpu.pipeline_mode<synchronous>, transform_indices = @transform_1, window_bounds = array<i64: 2, 8>}, {pipeline_mode = #tpu.pipeline_mode<synchronous>, transform_indices = @transform_2, window_bounds = array<i64: 32, 96>}, {pipeline_mode = #tpu.pipeline_mode<synchronous>, transform_indices = @transform_3, window_bounds = array<i64: 1, 96>}, {pipeline_mode = #tpu.pipeline_mode<synchronous>, transform_indices = @transform_4, window_bounds = array<i64: 4, 8, 32>}, {pipeline_mode = #tpu.pipeline_mode<synchronous>, transform_indices = @transform_5, window_bounds = array<i64: 1, 32>}, {pipeline_mode = #tpu.pipeline_mode<synchronous>, transform_indices = @transform_6, window_bounds = array<i64: 1, 32>}, {pipeline_mode = #tpu.pipeline_mode<synchronous>, transform_indices = @transform_7, window_bounds = array<i64: 1, 32>}, {pipeline_mode = #tpu.pipeline_mode<synchronous>, transform_indices = @transform_8, window_bounds = array<i64: 32, 64>}, {pipeline_mode = #tpu.pipeline_mode<synchronous>, transform_indices = @transform_9, window_bounds = array<i64: 1, 64>}, {pipeline_mode = #tpu.pipeline_mode<synchronous>, transform_indices = @transform_10, window_bounds = array<i64: 64, 32>}, {pipeline_mode = #tpu.pipeline_mode<synchronous>, transform_indices = @transform_11, window_bounds = array<i64: 1, 32>}, {pipeline_mode = #tpu.pipeline_mode<synchronous>, transform_indices = @transform_12, window_bounds = array<i64: 1, 32>}, {pipeline_mode = #tpu.pipeline_mode<synchronous>, transform_indices = @transform_13, window_bounds = array<i64: 1, 32>}, {pipeline_mode = #tpu.pipeline_mode<synchronous>, transform_indices = @transform_14, window_bounds = array<i64: 16, 32>}]} {
    %c0 = arith.constant 0 : index
    %c0_0 = arith.constant 0 : index
    %0 = vector.load %arg1[%c0, %c0_0] : memref<16x32xf32, #tpu.memory_space<vmem>>, vector<16x32xf32>
    %c0_1 = arith.constant 0 : index
    %c0_2 = arith.constant 0 : index
    %1 = vector.load %arg2[%c0_1, %c0_2] : memref<2x8xf32, #tpu.memory_space<vmem>>, vector<2x8xf32>
    %c0_3 = arith.constant 0 : index
    %c0_4 = arith.constant 0 : index
    %2 = vector.load %arg3[%c0_3, %c0_4] : memref<32x96xbf16, #tpu.memory_space<vmem>>, vector<32x96xbf16>
    %3 = arith.truncf %0 : vector<16x32xf32> to vector<16x32xbf16>
    %cst = arith.constant dense<0.000000e+00> : vector<16x96xf32>
    %4 = tpu.matmul %3, %2, %cst {dimension_numbers = #tpu.dot_dimension_numbers<[1], [0], [0], [1], [0, 0, 1, 1], [], []>} : vector<16x32xbf16>, vector<32x96xbf16>, vector<16x96xf32> -> vector<16x96xf32>
    %c0_5 = arith.constant 0 : index
    %c0_6 = arith.constant 0 : index
    %5 = vector.load %arg4[%c0_5, %c0_6] : memref<1x96xf32, #tpu.memory_space<vmem>>, vector<1x96xf32>
    %6 = vector.broadcast %5 : vector<1x96xf32> to vector<16x96xf32>
    %7 = arith.addf %4, %6 : vector<16x96xf32>
    %8 = vector.extract_strided_slice %7 {offsets = [0, 0], sizes = [16, 32], strides = [1, 1]} : vector<16x96xf32> to vector<16x32xf32>
    %9 = vector.extract_strided_slice %7 {offsets = [0, 32], sizes = [16, 32], strides = [1, 1]} : vector<16x96xf32> to vector<16x32xf32>
    %10 = vector.extract_strided_slice %7 {offsets = [0, 64], sizes = [16, 32], strides = [1, 1]} : vector<16x96xf32> to vector<16x32xf32>
    %11 = vector.extract_strided_slice %1 {offsets = [0, 0], sizes = [1, 8], strides = [1, 1]} : vector<2x8xf32> to vector<1x8xf32>
    %cst_7 = arith.constant 0.000000e+00 : f32
    %12 = vector.broadcast %cst_7 : f32 to vector<8x32xf32>
    %13 = vector.extract_strided_slice %8 {offsets = [0, 0], sizes = [8, 8], strides = [1, 1]} : vector<16x32xf32> to vector<8x8xf32>
    %14 = arith.truncf %13 : vector<8x8xf32> to vector<8x8xbf16>
    %15 = vector.extract_strided_slice %9 {offsets = [0, 0], sizes = [8, 8], strides = [1, 1]} : vector<16x32xf32> to vector<8x8xf32>
    %16 = arith.truncf %15 : vector<8x8xf32> to vector<8x8xbf16>
    %17 = vector.extract_strided_slice %10 {offsets = [0, 0], sizes = [8, 8], strides = [1, 1]} : vector<16x32xf32> to vector<8x8xf32>
    %18 = arith.truncf %17 : vector<8x8xf32> to vector<8x8xbf16>
    %cst_8 = arith.constant dense<0.000000e+00> : vector<8x8xf32>
    %19 = tpu.matmul %14, %16, %cst_8 {dimension_numbers = #tpu.dot_dimension_numbers<[1], [1], [0], [0], [0, 0, 1, 0], [], []>} : vector<8x8xbf16>, vector<8x8xbf16>, vector<8x8xf32> -> vector<8x8xf32>
    %cst_9 = arith.constant 0.353553385 : f32
    %20 = vector.broadcast %cst_9 : f32 to vector<8x8xf32>
    %21 = arith.mulf %19, %20 : vector<8x8xf32>
    %22 = vector.broadcast %11 : vector<1x8xf32> to vector<8x8xf32>
    %23 = arith.addf %21, %22 : vector<8x8xf32>
    %cst_10 = arith.constant dense<0xFF800000> : vector<8xf32>
    %24 = vector.multi_reduction <maximumf>, %23, %cst_10 [1] : vector<8x8xf32> to vector<8xf32>
    %25 = vector.shape_cast %24 : vector<8xf32> to vector<8x1xf32>
    %26 = vector.broadcast %25 : vector<8x1xf32> to vector<8x8xf32>
    %27 = arith.subf %23, %26 : vector<8x8xf32>
    %28 = math.exp %27 : vector<8x8xf32>
    %cst_11 = arith.constant dense<0.000000e+00> : vector<8xf32>
    %29 = vector.multi_reduction <add>, %28, %cst_11 [1] : vector<8x8xf32> to vector<8xf32>
    %30 = vector.shape_cast %29 : vector<8xf32> to vector<8x1xf32>
    %31 = tpu.reciprocal %30 {approx = true} : vector<8x1xf32> -> vector<8x1xf32>
    %32 = vector.broadcast %31 : vector<8x1xf32> to vector<8x8xf32>
    %33 = arith.mulf %28, %32 : vector<8x8xf32>
    %34 = arith.truncf %33 : vector<8x8xf32> to vector<8x8xbf16>
    %cst_12 = arith.constant dense<0.000000e+00> : vector<8x8xf32>
    %35 = tpu.matmul %34, %18, %cst_12 {dimension_numbers = #tpu.dot_dimension_numbers<[1], [0], [0], [1], [0, 0, 1, 1], [], []>} : vector<8x8xbf16>, vector<8x8xbf16>, vector<8x8xf32> -> vector<8x8xf32>
    %36 = arith.truncf %35 : vector<8x8xf32> to vector<8x8xbf16>
    %c0_13 = arith.constant 0 : index
    %c0_14 = arith.constant 0 : index
    %c0_15 = arith.constant 0 : index
    %37 = vector.load %arg5[%c0_13, %c0_14, %c0_15] : memref<4x8x32xbf16, #tpu.memory_space<vmem>>, vector<1x8x32xbf16>
    %38 = vector.shape_cast %37 : vector<1x8x32xbf16> to vector<8x32xbf16>
    %cst_16 = arith.constant dense<0.000000e+00> : vector<8x32xf32>
    %39 = tpu.matmul %36, %38, %cst_16 {dimension_numbers = #tpu.dot_dimension_numbers<[1], [0], [0], [1], [0, 0, 1, 1], [], []>} : vector<8x8xbf16>, vector<8x32xbf16>, vector<8x32xf32> -> vector<8x32xf32>
    %40 = arith.addf %12, %39 : vector<8x32xf32>
    %41 = vector.extract_strided_slice %8 {offsets = [0, 8], sizes = [8, 8], strides = [1, 1]} : vector<16x32xf32> to vector<8x8xf32>
    %42 = arith.truncf %41 : vector<8x8xf32> to vector<8x8xbf16>
    %43 = vector.extract_strided_slice %9 {offsets = [0, 8], sizes = [8, 8], strides = [1, 1]} : vector<16x32xf32> to vector<8x8xf32>
    %44 = arith.truncf %43 : vector<8x8xf32> to vector<8x8xbf16>
    %45 = vector.extract_strided_slice %10 {offsets = [0, 8], sizes = [8, 8], strides = [1, 1]} : vector<16x32xf32> to vector<8x8xf32>
    %46 = arith.truncf %45 : vector<8x8xf32> to vector<8x8xbf16>
    %cst_17 = arith.constant dense<0.000000e+00> : vector<8x8xf32>
    %47 = tpu.matmul %42, %44, %cst_17 {dimension_numbers = #tpu.dot_dimension_numbers<[1], [1], [0], [0], [0, 0, 1, 0], [], []>} : vector<8x8xbf16>, vector<8x8xbf16>, vector<8x8xf32> -> vector<8x8xf32>
    %cst_18 = arith.constant 0.353553385 : f32
    %48 = vector.broadcast %cst_18 : f32 to vector<8x8xf32>
    %49 = arith.mulf %47, %48 : vector<8x8xf32>
    %50 = vector.broadcast %11 : vector<1x8xf32> to vector<8x8xf32>
    %51 = arith.addf %49, %50 : vector<8x8xf32>
    %cst_19 = arith.constant dense<0xFF800000> : vector<8xf32>
    %52 = vector.multi_reduction <maximumf>, %51, %cst_19 [1] : vector<8x8xf32> to vector<8xf32>
    %53 = vector.shape_cast %52 : vector<8xf32> to vector<8x1xf32>
    %54 = vector.broadcast %53 : vector<8x1xf32> to vector<8x8xf32>
    %55 = arith.subf %51, %54 : vector<8x8xf32>
    %56 = math.exp %55 : vector<8x8xf32>
    %cst_20 = arith.constant dense<0.000000e+00> : vector<8xf32>
    %57 = vector.multi_reduction <add>, %56, %cst_20 [1] : vector<8x8xf32> to vector<8xf32>
    %58 = vector.shape_cast %57 : vector<8xf32> to vector<8x1xf32>
    %59 = tpu.reciprocal %58 {approx = true} : vector<8x1xf32> -> vector<8x1xf32>
    %60 = vector.broadcast %59 : vector<8x1xf32> to vector<8x8xf32>
    %61 = arith.mulf %56, %60 : vector<8x8xf32>
    %62 = arith.truncf %61 : vector<8x8xf32> to vector<8x8xbf16>
    %cst_21 = arith.constant dense<0.000000e+00> : vector<8x8xf32>
    %63 = tpu.matmul %62, %46, %cst_21 {dimension_numbers = #tpu.dot_dimension_numbers<[1], [0], [0], [1], [0, 0, 1, 1], [], []>} : vector<8x8xbf16>, vector<8x8xbf16>, vector<8x8xf32> -> vector<8x8xf32>
    %64 = arith.truncf %63 : vector<8x8xf32> to vector<8x8xbf16>
    %c1 = arith.constant 1 : index
    %c0_22 = arith.constant 0 : index
    %c0_23 = arith.constant 0 : index
    %65 = vector.load %arg5[%c1, %c0_22, %c0_23] : memref<4x8x32xbf16, #tpu.memory_space<vmem>>, vector<1x8x32xbf16>
    %66 = vector.shape_cast %65 : vector<1x8x32xbf16> to vector<8x32xbf16>
    %cst_24 = arith.constant dense<0.000000e+00> : vector<8x32xf32>
    %67 = tpu.matmul %64, %66, %cst_24 {dimension_numbers = #tpu.dot_dimension_numbers<[1], [0], [0], [1], [0, 0, 1, 1], [], []>} : vector<8x8xbf16>, vector<8x32xbf16>, vector<8x32xf32> -> vector<8x32xf32>
    %68 = arith.addf %40, %67 : vector<8x32xf32>
    %69 = vector.extract_strided_slice %8 {offsets = [0, 16], sizes = [8, 8], strides = [1, 1]} : vector<16x32xf32> to vector<8x8xf32>
    %70 = arith.truncf %69 : vector<8x8xf32> to vector<8x8xbf16>
    %71 = vector.extract_strided_slice %9 {offsets = [0, 16], sizes = [8, 8], strides = [1, 1]} : vector<16x32xf32> to vector<8x8xf32>
    %72 = arith.truncf %71 : vector<8x8xf32> to vector<8x8xbf16>
    %73 = vector.extract_strided_slice %10 {offsets = [0, 16], sizes = [8, 8], strides = [1, 1]} : vector<16x32xf32> to vector<8x8xf32>
    %74 = arith.truncf %73 : vector<8x8xf32> to vector<8x8xbf16>
    %cst_25 = arith.constant dense<0.000000e+00> : vector<8x8xf32>
    %75 = tpu.matmul %70, %72, %cst_25 {dimension_numbers = #tpu.dot_dimension_numbers<[1], [1], [0], [0], [0, 0, 1, 0], [], []>} : vector<8x8xbf16>, vector<8x8xbf16>, vector<8x8xf32> -> vector<8x8xf32>
    %cst_26 = arith.constant 0.353553385 : f32
    %76 = vector.broadcast %cst_26 : f32 to vector<8x8xf32>
    %77 = arith.mulf %75, %76 : vector<8x8xf32>
    %78 = vector.broadcast %11 : vector<1x8xf32> to vector<8x8xf32>
    %79 = arith.addf %77, %78 : vector<8x8xf32>
    %cst_27 = arith.constant dense<0xFF800000> : vector<8xf32>
    %80 = vector.multi_reduction <maximumf>, %79, %cst_27 [1] : vector<8x8xf32> to vector<8xf32>
    %81 = vector.shape_cast %80 : vector<8xf32> to vector<8x1xf32>
    %82 = vector.broadcast %81 : vector<8x1xf32> to vector<8x8xf32>
    %83 = arith.subf %79, %82 : vector<8x8xf32>
    %84 = math.exp %83 : vector<8x8xf32>
    %cst_28 = arith.constant dense<0.000000e+00> : vector<8xf32>
    %85 = vector.multi_reduction <add>, %84, %cst_28 [1] : vector<8x8xf32> to vector<8xf32>
    %86 = vector.shape_cast %85 : vector<8xf32> to vector<8x1xf32>
    %87 = tpu.reciprocal %86 {approx = true} : vector<8x1xf32> -> vector<8x1xf32>
    %88 = vector.broadcast %87 : vector<8x1xf32> to vector<8x8xf32>
    %89 = arith.mulf %84, %88 : vector<8x8xf32>
    %90 = arith.truncf %89 : vector<8x8xf32> to vector<8x8xbf16>
    %cst_29 = arith.constant dense<0.000000e+00> : vector<8x8xf32>
    %91 = tpu.matmul %90, %74, %cst_29 {dimension_numbers = #tpu.dot_dimension_numbers<[1], [0], [0], [1], [0, 0, 1, 1], [], []>} : vector<8x8xbf16>, vector<8x8xbf16>, vector<8x8xf32> -> vector<8x8xf32>
    %92 = arith.truncf %91 : vector<8x8xf32> to vector<8x8xbf16>
    %c2 = arith.constant 2 : index
    %c0_30 = arith.constant 0 : index
    %c0_31 = arith.constant 0 : index
    %93 = vector.load %arg5[%c2, %c0_30, %c0_31] : memref<4x8x32xbf16, #tpu.memory_space<vmem>>, vector<1x8x32xbf16>
    %94 = vector.shape_cast %93 : vector<1x8x32xbf16> to vector<8x32xbf16>
    %cst_32 = arith.constant dense<0.000000e+00> : vector<8x32xf32>
    %95 = tpu.matmul %92, %94, %cst_32 {dimension_numbers = #tpu.dot_dimension_numbers<[1], [0], [0], [1], [0, 0, 1, 1], [], []>} : vector<8x8xbf16>, vector<8x32xbf16>, vector<8x32xf32> -> vector<8x32xf32>
    %96 = arith.addf %68, %95 : vector<8x32xf32>
    %97 = vector.extract_strided_slice %8 {offsets = [0, 24], sizes = [8, 8], strides = [1, 1]} : vector<16x32xf32> to vector<8x8xf32>
    %98 = arith.truncf %97 : vector<8x8xf32> to vector<8x8xbf16>
    %99 = vector.extract_strided_slice %9 {offsets = [0, 24], sizes = [8, 8], strides = [1, 1]} : vector<16x32xf32> to vector<8x8xf32>
    %100 = arith.truncf %99 : vector<8x8xf32> to vector<8x8xbf16>
    %101 = vector.extract_strided_slice %10 {offsets = [0, 24], sizes = [8, 8], strides = [1, 1]} : vector<16x32xf32> to vector<8x8xf32>
    %102 = arith.truncf %101 : vector<8x8xf32> to vector<8x8xbf16>
    %cst_33 = arith.constant dense<0.000000e+00> : vector<8x8xf32>
    %103 = tpu.matmul %98, %100, %cst_33 {dimension_numbers = #tpu.dot_dimension_numbers<[1], [1], [0], [0], [0, 0, 1, 0], [], []>} : vector<8x8xbf16>, vector<8x8xbf16>, vector<8x8xf32> -> vector<8x8xf32>
    %cst_34 = arith.constant 0.353553385 : f32
    %104 = vector.broadcast %cst_34 : f32 to vector<8x8xf32>
    %105 = arith.mulf %103, %104 : vector<8x8xf32>
    %106 = vector.broadcast %11 : vector<1x8xf32> to vector<8x8xf32>
    %107 = arith.addf %105, %106 : vector<8x8xf32>
    %cst_35 = arith.constant dense<0xFF800000> : vector<8xf32>
    %108 = vector.multi_reduction <maximumf>, %107, %cst_35 [1] : vector<8x8xf32> to vector<8xf32>
    %109 = vector.shape_cast %108 : vector<8xf32> to vector<8x1xf32>
    %110 = vector.broadcast %109 : vector<8x1xf32> to vector<8x8xf32>
    %111 = arith.subf %107, %110 : vector<8x8xf32>
    %112 = math.exp %111 : vector<8x8xf32>
    %cst_36 = arith.constant dense<0.000000e+00> : vector<8xf32>
    %113 = vector.multi_reduction <add>, %112, %cst_36 [1] : vector<8x8xf32> to vector<8xf32>
    %114 = vector.shape_cast %113 : vector<8xf32> to vector<8x1xf32>
    %115 = tpu.reciprocal %114 {approx = true} : vector<8x1xf32> -> vector<8x1xf32>
    %116 = vector.broadcast %115 : vector<8x1xf32> to vector<8x8xf32>
    %117 = arith.mulf %112, %116 : vector<8x8xf32>
    %118 = arith.truncf %117 : vector<8x8xf32> to vector<8x8xbf16>
    %cst_37 = arith.constant dense<0.000000e+00> : vector<8x8xf32>
    %119 = tpu.matmul %118, %102, %cst_37 {dimension_numbers = #tpu.dot_dimension_numbers<[1], [0], [0], [1], [0, 0, 1, 1], [], []>} : vector<8x8xbf16>, vector<8x8xbf16>, vector<8x8xf32> -> vector<8x8xf32>
    %120 = arith.truncf %119 : vector<8x8xf32> to vector<8x8xbf16>
    %c3 = arith.constant 3 : index
    %c0_38 = arith.constant 0 : index
    %c0_39 = arith.constant 0 : index
    %121 = vector.load %arg5[%c3, %c0_38, %c0_39] : memref<4x8x32xbf16, #tpu.memory_space<vmem>>, vector<1x8x32xbf16>
    %122 = vector.shape_cast %121 : vector<1x8x32xbf16> to vector<8x32xbf16>
    %cst_40 = arith.constant dense<0.000000e+00> : vector<8x32xf32>
    %123 = tpu.matmul %120, %122, %cst_40 {dimension_numbers = #tpu.dot_dimension_numbers<[1], [0], [0], [1], [0, 0, 1, 1], [], []>} : vector<8x8xbf16>, vector<8x32xbf16>, vector<8x32xf32> -> vector<8x32xf32>
    %124 = arith.addf %96, %123 : vector<8x32xf32>
    %c0_41 = arith.constant 0 : index
    %c0_42 = arith.constant 0 : index
    %125 = vector.load %arg16[%c0_41, %c0_42] : memref<16x32xf32, #tpu.memory_space<vmem>>, vector<8x32xf32>
    tpu.vector_store %arg16[%c0_41, %c0_42], %124 {strides = array<i32>} : memref<16x32xf32, #tpu.memory_space<vmem>>, vector<8x32xf32>,
    %126 = vector.extract_strided_slice %1 {offsets = [1, 0], sizes = [1, 8], strides = [1, 1]} : vector<2x8xf32> to vector<1x8xf32>
    %cst_43 = arith.constant 0.000000e+00 : f32
    %127 = vector.broadcast %cst_43 : f32 to vector<8x32xf32>
    %128 = vector.extract_strided_slice %8 {offsets = [8, 0], sizes = [8, 8], strides = [1, 1]} : vector<16x32xf32> to vector<8x8xf32>
    %129 = arith.truncf %128 : vector<8x8xf32> to vector<8x8xbf16>
    %130 = vector.extract_strided_slice %9 {offsets = [8, 0], sizes = [8, 8], strides = [1, 1]} : vector<16x32xf32> to vector<8x8xf32>
    %131 = arith.truncf %130 : vector<8x8xf32> to vector<8x8xbf16>
    %132 = vector.extract_strided_slice %10 {offsets = [8, 0], sizes = [8, 8], strides = [1, 1]} : vector<16x32xf32> to vector<8x8xf32>
    %133 = arith.truncf %132 : vector<8x8xf32> to vector<8x8xbf16>
    %cst_44 = arith.constant dense<0.000000e+00> : vector<8x8xf32>
    %134 = tpu.matmul %129, %131, %cst_44 {dimension_numbers = #tpu.dot_dimension_numbers<[1], [1], [0], [0], [0, 0, 1, 0], [], []>} : vector<8x8xbf16>, vector<8x8xbf16>, vector<8x8xf32> -> vector<8x8xf32>
    %cst_45 = arith.constant 0.353553385 : f32
    %135 = vector.broadcast %cst_45 : f32 to vector<8x8xf32>
    %136 = arith.mulf %134, %135 : vector<8x8xf32>
    %137 = vector.broadcast %126 : vector<1x8xf32> to vector<8x8xf32>
    %138 = arith.addf %136, %137 : vector<8x8xf32>
    %cst_46 = arith.constant dense<0xFF800000> : vector<8xf32>
    %139 = vector.multi_reduction <maximumf>, %138, %cst_46 [1] : vector<8x8xf32> to vector<8xf32>
    %140 = vector.shape_cast %139 : vector<8xf32> to vector<8x1xf32>
    %141 = vector.broadcast %140 : vector<8x1xf32> to vector<8x8xf32>
    %142 = arith.subf %138, %141 : vector<8x8xf32>
    %143 = math.exp %142 : vector<8x8xf32>
    %cst_47 = arith.constant dense<0.000000e+00> : vector<8xf32>
    %144 = vector.multi_reduction <add>, %143, %cst_47 [1] : vector<8x8xf32> to vector<8xf32>
    %145 = vector.shape_cast %144 : vector<8xf32> to vector<8x1xf32>
    %146 = tpu.reciprocal %145 {approx = true} : vector<8x1xf32> -> vector<8x1xf32>
    %147 = vector.broadcast %146 : vector<8x1xf32> to vector<8x8xf32>
    %148 = arith.mulf %143, %147 : vector<8x8xf32>
    %149 = arith.truncf %148 : vector<8x8xf32> to vector<8x8xbf16>
    %cst_48 = arith.constant dense<0.000000e+00> : vector<8x8xf32>
    %150 = tpu.matmul %149, %133, %cst_48 {dimension_numbers = #tpu.dot_dimension_numbers<[1], [0], [0], [1], [0, 0, 1, 1], [], []>} : vector<8x8xbf16>, vector<8x8xbf16>, vector<8x8xf32> -> vector<8x8xf32>
    %151 = arith.truncf %150 : vector<8x8xf32> to vector<8x8xbf16>
    %c0_49 = arith.constant 0 : index
    %c0_50 = arith.constant 0 : index
    %c0_51 = arith.constant 0 : index
    %152 = vector.load %arg5[%c0_49, %c0_50, %c0_51] : memref<4x8x32xbf16, #tpu.memory_space<vmem>>, vector<1x8x32xbf16>
    %153 = vector.shape_cast %152 : vector<1x8x32xbf16> to vector<8x32xbf16>
    %cst_52 = arith.constant dense<0.000000e+00> : vector<8x32xf32>
    %154 = tpu.matmul %151, %153, %cst_52 {dimension_numbers = #tpu.dot_dimension_numbers<[1], [0], [0], [1], [0, 0, 1, 1], [], []>} : vector<8x8xbf16>, vector<8x32xbf16>, vector<8x32xf32> -> vector<8x32xf32>
    %155 = arith.addf %127, %154 : vector<8x32xf32>
    %156 = vector.extract_strided_slice %8 {offsets = [8, 8], sizes = [8, 8], strides = [1, 1]} : vector<16x32xf32> to vector<8x8xf32>
    %157 = arith.truncf %156 : vector<8x8xf32> to vector<8x8xbf16>
    %158 = vector.extract_strided_slice %9 {offsets = [8, 8], sizes = [8, 8], strides = [1, 1]} : vector<16x32xf32> to vector<8x8xf32>
    %159 = arith.truncf %158 : vector<8x8xf32> to vector<8x8xbf16>
    %160 = vector.extract_strided_slice %10 {offsets = [8, 8], sizes = [8, 8], strides = [1, 1]} : vector<16x32xf32> to vector<8x8xf32>
    %161 = arith.truncf %160 : vector<8x8xf32> to vector<8x8xbf16>
    %cst_53 = arith.constant dense<0.000000e+00> : vector<8x8xf32>
    %162 = tpu.matmul %157, %159, %cst_53 {dimension_numbers = #tpu.dot_dimension_numbers<[1], [1], [0], [0], [0, 0, 1, 0], [], []>} : vector<8x8xbf16>, vector<8x8xbf16>, vector<8x8xf32> -> vector<8x8xf32>
    %cst_54 = arith.constant 0.353553385 : f32
    %163 = vector.broadcast %cst_54 : f32 to vector<8x8xf32>
    %164 = arith.mulf %162, %163 : vector<8x8xf32>
    %165 = vector.broadcast %126 : vector<1x8xf32> to vector<8x8xf32>
    %166 = arith.addf %164, %165 : vector<8x8xf32>
    %cst_55 = arith.constant dense<0xFF800000> : vector<8xf32>
    %167 = vector.multi_reduction <maximumf>, %166, %cst_55 [1] : vector<8x8xf32> to vector<8xf32>
    %168 = vector.shape_cast %167 : vector<8xf32> to vector<8x1xf32>
    %169 = vector.broadcast %168 : vector<8x1xf32> to vector<8x8xf32>
    %170 = arith.subf %166, %169 : vector<8x8xf32>
    %171 = math.exp %170 : vector<8x8xf32>
    %cst_56 = arith.constant dense<0.000000e+00> : vector<8xf32>
    %172 = vector.multi_reduction <add>, %171, %cst_56 [1] : vector<8x8xf32> to vector<8xf32>
    %173 = vector.shape_cast %172 : vector<8xf32> to vector<8x1xf32>
    %174 = tpu.reciprocal %173 {approx = true} : vector<8x1xf32> -> vector<8x1xf32>
    %175 = vector.broadcast %174 : vector<8x1xf32> to vector<8x8xf32>
    %176 = arith.mulf %171, %175 : vector<8x8xf32>
    %177 = arith.truncf %176 : vector<8x8xf32> to vector<8x8xbf16>
    %cst_57 = arith.constant dense<0.000000e+00> : vector<8x8xf32>
    %178 = tpu.matmul %177, %161, %cst_57 {dimension_numbers = #tpu.dot_dimension_numbers<[1], [0], [0], [1], [0, 0, 1, 1], [], []>} : vector<8x8xbf16>, vector<8x8xbf16>, vector<8x8xf32> -> vector<8x8xf32>
    %179 = arith.truncf %178 : vector<8x8xf32> to vector<8x8xbf16>
    %c1_58 = arith.constant 1 : index
    %c0_59 = arith.constant 0 : index
    %c0_60 = arith.constant 0 : index
    %180 = vector.load %arg5[%c1_58, %c0_59, %c0_60] : memref<4x8x32xbf16, #tpu.memory_space<vmem>>, vector<1x8x32xbf16>
    %181 = vector.shape_cast %180 : vector<1x8x32xbf16> to vector<8x32xbf16>
    %cst_61 = arith.constant dense<0.000000e+00> : vector<8x32xf32>
    %182 = tpu.matmul %179, %181, %cst_61 {dimension_numbers = #tpu.dot_dimension_numbers<[1], [0], [0], [1], [0, 0, 1, 1], [], []>} : vector<8x8xbf16>, vector<8x32xbf16>, vector<8x32xf32> -> vector<8x32xf32>
    %183 = arith.addf %155, %182 : vector<8x32xf32>
    %184 = vector.extract_strided_slice %8 {offsets = [8, 16], sizes = [8, 8], strides = [1, 1]} : vector<16x32xf32> to vector<8x8xf32>
    %185 = arith.truncf %184 : vector<8x8xf32> to vector<8x8xbf16>
    %186 = vector.extract_strided_slice %9 {offsets = [8, 16], sizes = [8, 8], strides = [1, 1]} : vector<16x32xf32> to vector<8x8xf32>
    %187 = arith.truncf %186 : vector<8x8xf32> to vector<8x8xbf16>
    %188 = vector.extract_strided_slice %10 {offsets = [8, 16], sizes = [8, 8], strides = [1, 1]} : vector<16x32xf32> to vector<8x8xf32>
    %189 = arith.truncf %188 : vector<8x8xf32> to vector<8x8xbf16>
    %cst_62 = arith.constant dense<0.000000e+00> : vector<8x8xf32>
    %190 = tpu.matmul %185, %187, %cst_62 {dimension_numbers = #tpu.dot_dimension_numbers<[1], [1], [0], [0], [0, 0, 1, 0], [], []>} : vector<8x8xbf16>, vector<8x8xbf16>, vector<8x8xf32> -> vector<8x8xf32>
    %cst_63 = arith.constant 0.353553385 : f32
    %191 = vector.broadcast %cst_63 : f32 to vector<8x8xf32>
    %192 = arith.mulf %190, %191 : vector<8x8xf32>
    %193 = vector.broadcast %126 : vector<1x8xf32> to vector<8x8xf32>
    %194 = arith.addf %192, %193 : vector<8x8xf32>
    %cst_64 = arith.constant dense<0xFF800000> : vector<8xf32>
    %195 = vector.multi_reduction <maximumf>, %194, %cst_64 [1] : vector<8x8xf32> to vector<8xf32>
    %196 = vector.shape_cast %195 : vector<8xf32> to vector<8x1xf32>
    %197 = vector.broadcast %196 : vector<8x1xf32> to vector<8x8xf32>
    %198 = arith.subf %194, %197 : vector<8x8xf32>
    %199 = math.exp %198 : vector<8x8xf32>
    %cst_65 = arith.constant dense<0.000000e+00> : vector<8xf32>
    %200 = vector.multi_reduction <add>, %199, %cst_65 [1] : vector<8x8xf32> to vector<8xf32>
    %201 = vector.shape_cast %200 : vector<8xf32> to vector<8x1xf32>
    %202 = tpu.reciprocal %201 {approx = true} : vector<8x1xf32> -> vector<8x1xf32>
    %203 = vector.broadcast %202 : vector<8x1xf32> to vector<8x8xf32>
    %204 = arith.mulf %199, %203 : vector<8x8xf32>
    %205 = arith.truncf %204 : vector<8x8xf32> to vector<8x8xbf16>
    %cst_66 = arith.constant dense<0.000000e+00> : vector<8x8xf32>
    %206 = tpu.matmul %205, %189, %cst_66 {dimension_numbers = #tpu.dot_dimension_numbers<[1], [0], [0], [1], [0, 0, 1, 1], [], []>} : vector<8x8xbf16>, vector<8x8xbf16>, vector<8x8xf32> -> vector<8x8xf32>
    %207 = arith.truncf %206 : vector<8x8xf32> to vector<8x8xbf16>
    %c2_67 = arith.constant 2 : index
    %c0_68 = arith.constant 0 : index
    %c0_69 = arith.constant 0 : index
    %208 = vector.load %arg5[%c2_67, %c0_68, %c0_69] : memref<4x8x32xbf16, #tpu.memory_space<vmem>>, vector<1x8x32xbf16>
    %209 = vector.shape_cast %208 : vector<1x8x32xbf16> to vector<8x32xbf16>
    %cst_70 = arith.constant dense<0.000000e+00> : vector<8x32xf32>
    %210 = tpu.matmul %207, %209, %cst_70 {dimension_numbers = #tpu.dot_dimension_numbers<[1], [0], [0], [1], [0, 0, 1, 1], [], []>} : vector<8x8xbf16>, vector<8x32xbf16>, vector<8x32xf32> -> vector<8x32xf32>
    %211 = arith.addf %183, %210 : vector<8x32xf32>
    %212 = vector.extract_strided_slice %8 {offsets = [8, 24], sizes = [8, 8], strides = [1, 1]} : vector<16x32xf32> to vector<8x8xf32>
    %213 = arith.truncf %212 : vector<8x8xf32> to vector<8x8xbf16>
    %214 = vector.extract_strided_slice %9 {offsets = [8, 24], sizes = [8, 8], strides = [1, 1]} : vector<16x32xf32> to vector<8x8xf32>
    %215 = arith.truncf %214 : vector<8x8xf32> to vector<8x8xbf16>
    %216 = vector.extract_strided_slice %10 {offsets = [8, 24], sizes = [8, 8], strides = [1, 1]} : vector<16x32xf32> to vector<8x8xf32>
    %217 = arith.truncf %216 : vector<8x8xf32> to vector<8x8xbf16>
    %cst_71 = arith.constant dense<0.000000e+00> : vector<8x8xf32>
    %218 = tpu.matmul %213, %215, %cst_71 {dimension_numbers = #tpu.dot_dimension_numbers<[1], [1], [0], [0], [0, 0, 1, 0], [], []>} : vector<8x8xbf16>, vector<8x8xbf16>, vector<8x8xf32> -> vector<8x8xf32>
    %cst_72 = arith.constant 0.353553385 : f32
    %219 = vector.broadcast %cst_72 : f32 to vector<8x8xf32>
    %220 = arith.mulf %218, %219 : vector<8x8xf32>
    %221 = vector.broadcast %126 : vector<1x8xf32> to vector<8x8xf32>
    %222 = arith.addf %220, %221 : vector<8x8xf32>
    %cst_73 = arith.constant dense<0xFF800000> : vector<8xf32>
    %223 = vector.multi_reduction <maximumf>, %222, %cst_73 [1] : vector<8x8xf32> to vector<8xf32>
    %224 = vector.shape_cast %223 : vector<8xf32> to vector<8x1xf32>
    %225 = vector.broadcast %224 : vector<8x1xf32> to vector<8x8xf32>
    %226 = arith.subf %222, %225 : vector<8x8xf32>
    %227 = math.exp %226 : vector<8x8xf32>
    %cst_74 = arith.constant dense<0.000000e+00> : vector<8xf32>
    %228 = vector.multi_reduction <add>, %227, %cst_74 [1] : vector<8x8xf32> to vector<8xf32>
    %229 = vector.shape_cast %228 : vector<8xf32> to vector<8x1xf32>
    %230 = tpu.reciprocal %229 {approx = true} : vector<8x1xf32> -> vector<8x1xf32>
    %231 = vector.broadcast %230 : vector<8x1xf32> to vector<8x8xf32>
    %232 = arith.mulf %227, %231 : vector<8x8xf32>
    %233 = arith.truncf %232 : vector<8x8xf32> to vector<8x8xbf16>
    %cst_75 = arith.constant dense<0.000000e+00> : vector<8x8xf32>
    %234 = tpu.matmul %233, %217, %cst_75 {dimension_numbers = #tpu.dot_dimension_numbers<[1], [0], [0], [1], [0, 0, 1, 1], [], []>} : vector<8x8xbf16>, vector<8x8xbf16>, vector<8x8xf32> -> vector<8x8xf32>
    %235 = arith.truncf %234 : vector<8x8xf32> to vector<8x8xbf16>
    %c3_76 = arith.constant 3 : index
    %c0_77 = arith.constant 0 : index
    %c0_78 = arith.constant 0 : index
    %236 = vector.load %arg5[%c3_76, %c0_77, %c0_78] : memref<4x8x32xbf16, #tpu.memory_space<vmem>>, vector<1x8x32xbf16>
    %237 = vector.shape_cast %236 : vector<1x8x32xbf16> to vector<8x32xbf16>
    %cst_79 = arith.constant dense<0.000000e+00> : vector<8x32xf32>
    %238 = tpu.matmul %235, %237, %cst_79 {dimension_numbers = #tpu.dot_dimension_numbers<[1], [0], [0], [1], [0, 0, 1, 1], [], []>} : vector<8x8xbf16>, vector<8x32xbf16>, vector<8x32xf32> -> vector<8x32xf32>
    %239 = arith.addf %211, %238 : vector<8x32xf32>
    %c8 = arith.constant 8 : index
    %c0_80 = arith.constant 0 : index
    %240 = vector.load %arg16[%c8, %c0_80] : memref<16x32xf32, #tpu.memory_space<vmem>>, vector<8x32xf32>
    tpu.vector_store %arg16[%c8, %c0_80], %239 {strides = array<i32>} : memref<16x32xf32, #tpu.memory_space<vmem>>, vector<8x32xf32>,
    %c0_81 = arith.constant 0 : index
    %c0_82 = arith.constant 0 : index
    %241 = vector.load %arg16[%c0_81, %c0_82] : memref<16x32xf32, #tpu.memory_space<vmem>>, vector<16x32xf32>
    %c0_83 = arith.constant 0 : index
    %c0_84 = arith.constant 0 : index
    %242 = vector.load %arg6[%c0_83, %c0_84] : memref<1x32xf32, #tpu.memory_space<vmem>>, vector<1x32xf32>
    %243 = vector.broadcast %242 : vector<1x32xf32> to vector<16x32xf32>
    %244 = arith.addf %241, %243 : vector<16x32xf32>
    %245 = arith.addf %244, %0 : vector<16x32xf32>
    %c0_85 = arith.constant 0 : index
    %c0_86 = arith.constant 0 : index
    %246 = vector.load %arg7[%c0_85, %c0_86] : memref<1x32xf32, #tpu.memory_space<vmem>>, vector<1x32xf32>
    %c0_87 = arith.constant 0 : index
    %c0_88 = arith.constant 0 : index
    %247 = vector.load %arg8[%c0_87, %c0_88] : memref<1x32xf32, #tpu.memory_space<vmem>>, vector<1x32xf32>
    %cst_89 = arith.constant dense<0.000000e+00> : vector<16xf32>
    %248 = vector.multi_reduction <add>, %245, %cst_89 [1] : vector<16x32xf32> to vector<16xf32>
    %249 = vector.shape_cast %248 : vector<16xf32> to vector<16x1xf32>
    %cst_90 = arith.constant 3.200000e+01 : f32
    %250 = vector.broadcast %cst_90 : f32 to vector<16x1xf32>
    %251 = arith.divf %249, %250 : vector<16x1xf32>
    %252 = vector.broadcast %251 : vector<16x1xf32> to vector<16x32xf32>
    %253 = arith.subf %245, %252 : vector<16x32xf32>
    %254 = arith.mulf %253, %253 : vector<16x32xf32>
    %cst_91 = arith.constant dense<0.000000e+00> : vector<16xf32>
    %255 = vector.multi_reduction <add>, %254, %cst_91 [1] : vector<16x32xf32> to vector<16xf32>
    %256 = vector.shape_cast %255 : vector<16xf32> to vector<16x1xf32>
    %cst_92 = arith.constant 3.200000e+01 : f32
    %257 = vector.broadcast %cst_92 : f32 to vector<16x1xf32>
    %258 = arith.divf %256, %257 : vector<16x1xf32>
    %259 = vector.broadcast %251 : vector<16x1xf32> to vector<16x32xf32>
    %260 = arith.subf %245, %259 : vector<16x32xf32>
    %cst_93 = arith.constant 9.99999996E-13 : f32
    %261 = vector.broadcast %cst_93 : f32 to vector<16x1xf32>
    %262 = arith.addf %258, %261 : vector<16x1xf32>
    %263 = math.rsqrt %262 : vector<16x1xf32>
    %264 = vector.broadcast %263 : vector<16x1xf32> to vector<16x32xf32>
    %265 = arith.mulf %260, %264 : vector<16x32xf32>
    %266 = vector.broadcast %246 : vector<1x32xf32> to vector<16x32xf32>
    %267 = arith.mulf %265, %266 : vector<16x32xf32>
    %268 = vector.broadcast %247 : vector<1x32xf32> to vector<16x32xf32>
    %269 = arith.addf %267, %268 : vector<16x32xf32>
    %c0_94 = arith.constant 0 : index
    %c0_95 = arith.constant 0 : index
    %270 = vector.load %arg9[%c0_94, %c0_95] : memref<32x64xbf16, #tpu.memory_space<vmem>>, vector<32x64xbf16>
    %271 = arith.truncf %269 : vector<16x32xf32> to vector<16x32xbf16>
    %cst_96 = arith.constant dense<0.000000e+00> : vector<16x64xf32>
    %272 = tpu.matmul %271, %270, %cst_96 {dimension_numbers = #tpu.dot_dimension_numbers<[1], [0], [0], [1], [0, 0, 1, 1], [], []>} : vector<16x32xbf16>, vector<32x64xbf16>, vector<16x64xf32> -> vector<16x64xf32>
    %c0_97 = arith.constant 0 : index
    %c0_98 = arith.constant 0 : index
    %273 = vector.load %arg10[%c0_97, %c0_98] : memref<1x64xf32, #tpu.memory_space<vmem>>, vector<1x64xf32>
    %274 = vector.broadcast %273 : vector<1x64xf32> to vector<16x64xf32>
    %275 = arith.addf %272, %274 : vector<16x64xf32>
    %cst_99 = arith.constant 5.000000e-01 : f32
    %276 = vector.broadcast %cst_99 : f32 to vector<16x64xf32>
    %277 = arith.mulf %276, %275 : vector<16x64xf32>
    %cst_100 = arith.constant 4.471500e-02 : f32
    %278 = vector.broadcast %cst_100 : f32 to vector<16x64xf32>
    %279 = arith.mulf %278, %275 : vector<16x64xf32>
    %280 = arith.mulf %279, %275 : vector<16x64xf32>
    %281 = arith.mulf %280, %275 : vector<16x64xf32>
    %282 = arith.addf %275, %281 : vector<16x64xf32>
    %cst_101 = arith.constant 0.797884583 : f32
    %283 = vector.broadcast %cst_101 : f32 to vector<16x64xf32>
    %284 = arith.mulf %283, %282 : vector<16x64xf32>
    %285 = math.tanh %284 : vector<16x64xf32>
    %cst_102 = arith.constant 1.000000e+00 : f32
    %286 = vector.broadcast %cst_102 : f32 to vector<16x64xf32>
    %287 = arith.addf %286, %285 : vector<16x64xf32>
    %288 = arith.mulf %277, %287 : vector<16x64xf32>
    %c0_103 = arith.constant 0 : index
    %c0_104 = arith.constant 0 : index
    %289 = vector.load %arg11[%c0_103, %c0_104] : memref<64x32xbf16, #tpu.memory_space<vmem>>, vector<64x32xbf16>
    %290 = arith.truncf %288 : vector<16x64xf32> to vector<16x64xbf16>
    %cst_105 = arith.constant dense<0.000000e+00> : vector<16x32xf32>
    %291 = tpu.matmul %290, %289, %cst_105 {dimension_numbers = #tpu.dot_dimension_numbers<[1], [0], [0], [1], [0, 0, 1, 1], [], []>} : vector<16x64xbf16>, vector<64x32xbf16>, vector<16x32xf32> -> vector<16x32xf32>
    %c0_106 = arith.constant 0 : index
    %c0_107 = arith.constant 0 : index
    %292 = vector.load %arg12[%c0_106, %c0_107] : memref<1x32xf32, #tpu.memory_space<vmem>>, vector<1x32xf32>
    %293 = vector.broadcast %292 : vector<1x32xf32> to vector<16x32xf32>
    %294 = arith.addf %291, %293 : vector<16x32xf32>
    %295 = arith.addf %294, %269 : vector<16x32xf32>
    %c0_108 = arith.constant 0 : index
    %c0_109 = arith.constant 0 : index
    %296 = vector.load %arg13[%c0_108, %c0_109] : memref<1x32xf32, #tpu.memory_space<vmem>>, vector<1x32xf32>
    %c0_110 = arith.constant 0 : index
    %c0_111 = arith.constant 0 : index
    %297 = vector.load %arg14[%c0_110, %c0_111] : memref<1x32xf32, #tpu.memory_space<vmem>>, vector<1x32xf32>
    %cst_112 = arith.constant dense<0.000000e+00> : vector<16xf32>
    %298 = vector.multi_reduction <add>, %295, %cst_112 [1] : vector<16x32xf32> to vector<16xf32>
    %299 = vector.shape_cast %298 : vector<16xf32> to vector<16x1xf32>
    %cst_113 = arith.constant 3.200000e+01 : f32
    %300 = vector.broadcast %cst_113 : f32 to vector<16x1xf32>
    %301 = arith.divf %299, %300 : vector<16x1xf32>
    %302 = vector.broadcast %301 : vector<16x1xf32> to vector<16x32xf32>
    %303 = arith.subf %295, %302 : vector<16x32xf32>
    %304 = arith.mulf %303, %303 : vector<16x32xf32>
    %cst_114 = arith.constant dense<0.000000e+00> : vector<16xf32>
    %305 = vector.multi_reduction <add>, %304, %cst_114 [1] : vector<16x32xf32> to vector<16xf32>
    %306 = vector.shape_cast %305 : vector<16xf32> to vector<16x1xf32>
    %cst_115 = arith.constant 3.200000e+01 : f32
    %307 = vector.broadcast %cst_115 : f32 to vector<16x1xf32>
    %308 = arith.divf %306, %307 : vector<16x1xf32>
    %309 = vector.broadcast %301 : vector<16x1xf32> to vector<16x32xf32>
    %310 = arith.subf %295, %309 : vector<16x32xf32>
    %cst_116 = arith.constant 9.99999996E-13 : f32
    %311 = vector.broadcast %cst_116 : f32 to vector<16x1xf32>
    %312 = arith.addf %308, %311 : vector<16x1xf32>
    %313 = math.rsqrt %312 : vector<16x1xf32>
    %314 = vector.broadcast %313 : vector<16x1xf32> to vector<16x32xf32>
    %315 = arith.mulf %310, %314 : vector<16x32xf32>
    %316 = vector.broadcast %296 : vector<1x32xf32> to vector<16x32xf32>
    %317 = arith.mulf %315, %316 : vector<16x32xf32>
    %318 = vector.broadcast %297 : vector<1x32xf32> to vector<16x32xf32>
    %319 = arith.addf %317, %318 : vector<16x32xf32>
    %c0_117 = arith.constant 0 : index
    %c0_118 = arith.constant 0 : index
    %320 = vector.load %arg15[%c0_117, %c0_118] : memref<16x32xf32, #tpu.memory_space<vmem>>, vector<16x32xf32>
    tpu.vector_store %arg15[%c0_117, %c0_118], %319 {strides = array<i32>} : memref<16x32xf32, #tpu.memory_space<vmem>>, vector<16x32xf32>,
    return
  }
  func.func @transform_0(%arg0: i32) -> (i32, i32) {
    %c0_i32 = arith.constant 0 : i32
    %c0_i32_0 = arith.constant 0 : i32
    %c0_i32_1 = arith.constant 0 : i32
    return %c0_i32, %c0_i32_0 : i32, i32
  }
  func.func @transform_1(%arg0: i32) -> (i32, i32) {
    %c0_i32 = arith.constant 0 : i32
    %c0_i32_0 = arith.constant 0 : i32
    %c0_i32_1 = arith.constant 0 : i32
    return %c0_i32, %c0_i32_0 : i32, i32
  }
  func.func @transform_2(%arg0: i32) -> (i32, i32) {
    %c0_i32 = arith.constant 0 : i32
    %c0_i32_0 = arith.constant 0 : i32
    %c0_i32_1 = arith.constant 0 : i32
    return %c0_i32, %c0_i32_0 : i32, i32
  }
  func.func @transform_3(%arg0: i32) -> (i32, i32) {
    %c0_i32 = arith.constant 0 : i32
    %c0_i32_0 = arith.constant 0 : i32
    %c0_i32_1 = arith.constant 0 : i32
    return %c0_i32, %c0_i32_0 : i32, i32
  }
  func.func @transform_4(%arg0: i32) -> (i32, i32, i32) {
    %c0_i32 = arith.constant 0 : i32
    %c0_i32_0 = arith.constant 0 : i32
    %c0_i32_1 = arith.constant 0 : i32
    %c0_i32_2 = arith.constant 0 : i32
    return %c0_i32, %c0_i32_0, %c0_i32_1 : i32, i32, i32
  }
  func.func @transform_5(%arg0: i32) -> (i32, i32) {
    %c0_i32 = arith.constant 0 : i32
    %c0_i32_0 = arith.constant 0 : i32
    %c0_i32_1 = arith.constant 0 : i32
    return %c0_i32, %c0_i32_0 : i32, i32
  }
  func.func @transform_6(%arg0: i32) -> (i32, i32) {
    %c0_i32 = arith.constant 0 : i32
    %c0_i32_0 = arith.constant 0 : i32
    %c0_i32_1 = arith.constant 0 : i32
    return %c0_i32, %c0_i32_0 : i32, i32
  }
  func.func @transform_7(%arg0: i32) -> (i32, i32) {
    %c0_i32 = arith.constant 0 : i32
    %c0_i32_0 = arith.constant 0 : i32
    %c0_i32_1 = arith.constant 0 : i32
    return %c0_i32, %c0_i32_0 : i32, i32
  }
  func.func @transform_8(%arg0: i32) -> (i32, i32) {
    %c0_i32 = arith.constant 0 : i32
    %c0_i32_0 = arith.constant 0 : i32
    %c0_i32_1 = arith.constant 0 : i32
    return %c0_i32, %c0_i32_0 : i32, i32
  }
  func.func @transform_9(%arg0: i32) -> (i32, i32) {
    %c0_i32 = arith.constant 0 : i32
    %c0_i32_0 = arith.constant 0 : i32
    %c0_i32_1 = arith.constant 0 : i32
    return %c0_i32, %c0_i32_0 : i32, i32
  }
  func.func @transform_10(%arg0: i32) -> (i32, i32) {
    %c0_i32 = arith.constant 0 : i32
    %c0_i32_0 = arith.constant 0 : i32
    %c0_i32_1 = arith.constant 0 : i32
    return %c0_i32, %c0_i32_0 : i32, i32
  }
  func.func @transform_11(%arg0: i32) -> (i32, i32) {
    %c0_i32 = arith.constant 0 : i32
    %c0_i32_0 = arith.constant 0 : i32
    %c0_i32_1 = arith.constant 0 : i32
    return %c0_i32, %c0_i32_0 : i32, i32
  }
  func.func @transform_12(%arg0: i32) -> (i32, i32) {
    %c0_i32 = arith.constant 0 : i32
    %c0_i32_0 = arith.constant 0 : i32
    %c0_i32_1 = arith.constant 0 : i32
    return %c0_i32, %c0_i32_0 : i32, i32
  }
  func.func @transform_13(%arg0: i32) -> (i32, i32) {
    %c0_i32 = arith.constant 0 : i32
    %c0_i32_0 = arith.constant 0 : i32
    %c0_i32_1 = arith.constant 0 : i32
    return %c0_i32, %c0_i32_0 : i32, i32
  }
  func.func @transform_14(%arg0: i32) -> (i32, i32) {
    %c0_i32 = arith.constant 0 : i32
    %c0_i32_0 = arith.constant 0 : i32
    %c0_i32_1 = arith.constant 0 : i32
    return %c0_i32, %c0_i32_0 : i32, i32
  }
}

</mosaic_0001>

<llo_original>
// kernel: sentiment_classifier_forward.4
$region0: #{sentiment_classifier_forward.4}
  #allocation0 [shape = 'u32[]', space=smem, size = 0x4, offset = 0x4, fixed_abs, tag = 'smem constant byte address 0x4 - core index']
  #allocation1 [shape = 'u32[144,128]{1,0:T(1,128)}', space=vmem, size = 0x12000, scoped, tag = 'internal scratch']
  %s0 = inlined_call_operand.vmem [shape: f32[2,8,32], index: 0, kind: input, shape index: {}]
  %s1 = inlined_call_operand.vmem [shape: f32[1,8,32], index: 1, kind: input, shape index: {}]
  %s2 = inlined_call_operand.vmem [shape: f32[2,8,32], index: 2, kind: input, shape index: {}]
  %s3 = inlined_call_operand.vmem [shape: f32[1,32], index: 3, kind: input, shape index: {}]
  %s4 = inlined_call_operand.vmem [shape: f32[1,32], index: 4, kind: input, shape index: {}]
  %s5 = inlined_call_operand.vmem [shape: f32[2,8,32], index: 5, kind: output, shape index: {}]
  %s6 = sld [smem:[#allocation0]]
  $region30: #{sentiment_classifier_forward.4} parent=0
    _
  %s8 = ssub.s32 1, %s6
  %s9 = scalar_select 0, %s8, %s6
  // Predicated region
  $region2: #{sentiment_classifier_forward.4} parent=0 // pred_check
    _
  $region3: #{sentiment_classifier_forward.4} parent=0 // pred_check_branch
    %11 = sbr.rel (0) target = $region5
  $region4: #{sentiment_classifier_forward.4} parent=0 // pred_region
    _
  $region5: #{sentiment_classifier_forward.4} parent=0 // pred_fallthru
    _
  // Predicated region
  $region6: #{sentiment_classifier_forward.4} parent=0 // pred_check
    _
  $region7: #{sentiment_classifier_forward.4} parent=0 // pred_check_branch
    %13 = sbr.rel (0) target = $region9
  $region8: #{sentiment_classifier_forward.4} parent=0 // pred_region
    _
  $region9: #{sentiment_classifier_forward.4} parent=0 // pred_fallthru
    _
  // Predicated region
  $region10: #{sentiment_classifier_forward.4} parent=0 // pred_check
    _
  $region11: #{sentiment_classifier_forward.4} parent=0 // pred_check_branch
    %15 = sbr.rel (0) target = $region13
  $region12: #{sentiment_classifier_forward.4} parent=0 // pred_region
    _
  $region13: #{sentiment_classifier_forward.4} parent=0 // pred_fallthru
    _
  // Predicated region
  $region14: #{sentiment_classifier_forward.4} parent=0 // pred_check
    _
  $region15: #{sentiment_classifier_forward.4} parent=0 // pred_check_branch
    %17 = sbr.rel (0) target = $region17
  $region16: #{sentiment_classifier_forward.4} parent=0 // pred_region
    _
  $region17: #{sentiment_classifier_forward.4} parent=0 // pred_fallthru
    _
  // Predicated region
  $region18: #{sentiment_classifier_forward.4} parent=0 // pred_check
    _
  $region19: #{sentiment_classifier_forward.4} parent=0 // pred_check_branch
    %19 = sbr.rel (0) target = $region21
  $region20: #{sentiment_classifier_forward.4} parent=0 // pred_region
    _
  $region21: #{sentiment_classifier_forward.4} parent=0 // pred_fallthru
    _
  %v20 = vld [vmem:[%s0] sm:$0xff]
  %v21 = vld [vmem:[%s0 + $0x8] sm:$0xff]
  %v22 = vld [vmem:[%s1] sm:$0xff]
  %v23 = vadd.f32 %v20, %v22
  %v24 = vadd.f32 %v21, %v22
  %v25 = vld [vmem:[%s2] sm:$0xff]
  %v26 = vld [vmem:[%s2 + $0x8] sm:$0xff]
  %v27 = vadd.f32 %v23, %v25
  %v28 = vadd.f32 %v24, %v26
  %v29 = vld [vmem:[%s3] sm:$0x1]
  %v30 = vld [vmem:[%s4] sm:$0x1]
  %vm31 = vcmask 261120
  %v32 = vsel %vm31, %v27, 0.0
  %33 = vadd.xlane.f32.xlu0 %v32
  %v34 = vpop.xlane.xlu0 %33
  %v35 = vsel %vm31, %v28, 0.0
  %36 = vadd.xlane.f32.xlu0 %v35
  %v37 = vpop.xlane.xlu0 %36
  %v38 = vrcp.pop 32.0
  %v39 = vmul.f32 %v34, %v38
  %v40 = vmul.f32 %v37, %v38
  %v41 = vsub.f32 %v27, %v39
  %v42 = vsub.f32 %v28, %v40
  %v43 = vmul.f32 %v41, %v41
  %v44 = vmul.f32 %v42, %v42
  %v45 = vsel %vm31, %v43, 0.0
  %46 = vadd.xlane.f32.xlu0 %v45
  %v47 = vpop.xlane.xlu0 %46
  %v48 = vsel %vm31, %v44, 0.0
  %49 = vadd.xlane.f32.xlu0 %v48
  %v50 = vpop.xlane.xlu0 %49
  %v51 = vmul.f32 %v47, %v38
  %v52 = vmul.f32 %v50, %v38
  %v53 = vadd.f32 %v51, 1e-12
  %v54 = vadd.f32 %v52, 1e-12
  %v55 = vrsqrt.pop %v53
  %v56 = vrsqrt.pop %v54
  %v57 = vmul.f32 %v41, %v55
  %v58 = vmul.f32 %v42, %v56
  %v60 = vlaneseq
  %v61 = vshrl.u32 %v60, 7
  %v62 = vsub.s32 0, %v61
  %v63 = vrot.slane %v29, %v62
  %v65 = vmul.f32 %v57, %v63
  %v66 = vmul.f32 %v58, %v63
  %v68 = vlaneseq
  %v69 = vshrl.u32 %v68, 7
  %v70 = vsub.s32 0, %v69
  %v71 = vrot.slane %v30, %v70
  %v73 = vadd.f32 %v65, %v71
  %v74 = vadd.f32 %v66, %v71
  %75 = vst.msk [vmem:[%s5] sm:$0xff] %vm31, %v73
  %76 = vst.msk [vmem:[%s5 + $0x8] sm:$0xff] %vm31, %v74
  // Predicated region
  $region22: #{sentiment_classifier_forward.4} parent=0 // pred_check
    _
  $region23: #{sentiment_classifier_forward.4} parent=0 // pred_check_branch
    %78 = sbr.rel (0) target = $region25
  $region24: #{sentiment_classifier_forward.4} parent=0 // pred_region
    _
  $region25: #{sentiment_classifier_forward.4} parent=0 // pred_fallthru
    _
  // Predicated region
  $region26: #{sentiment_classifier_forward.4} parent=0 // pred_check
    _
  $region27: #{sentiment_classifier_forward.4} parent=0 // pred_check_branch
    %80 = sbr.rel (0) target = $region29
  $region28: #{sentiment_classifier_forward.4} parent=0 // pred_region
    _
  $region29: #{sentiment_classifier_forward.4} parent=0 // pred_fallthru
    _

// kernel: sentiment_classifier_forward.7
$region0: #{sentiment_classifier_forward.7}
  #allocation0 [shape = 'u32[]', space=smem, size = 0x4, offset = 0x4, fixed_abs, tag = 'smem constant byte address 0x4 - core index']
  #allocation1 [shape = 'u32[144,128]{1,0:T(1,128)}', space=vmem, size = 0x12000, scoped, tag = 'internal scratch']
  %s0 = inlined_call_operand.vmem [shape: f32[2,32], index: 0, kind: input, shape index: {}]
  %s1 = inlined_call_operand.vmem [shape: bf16[32,32], index: 1, kind: input, shape index: {}]
  %s2 = inlined_call_operand.vmem [shape: f32[1,32], index: 2, kind: input, shape index: {}]
  %s3 = inlined_call_operand.vmem [shape: bf16[32,128], index: 3, kind: input, shape index: {}]
  %s4 = inlined_call_operand.vmem [shape: f32[1,128], index: 4, kind: input, shape index: {}]
  %s5 = inlined_call_operand.hbm [shape: f32[2,128], index: 5, kind: output, shape index: {}]
  %s6 = sld [smem:[#allocation0]]
  $region30: #{sentiment_classifier_forward.7} parent=0
    _
  %s8 = ssub.s32 1, %s6
  %s9 = scalar_select 0, %s8, %s6
  $region1: #{sentiment_classifier_forward.7} parent=0
    #allocation2 [shape = 'u8[1024]{0}', space=vmem, size = 0x400, scoped, tag = 'output window, operand 0, single buffered']
    #allocation3 [shape = 's32[1]{0}', space=sflag, size = 0x4, scoped, tag = 'scoped memory for sentiment_classifier_forward.7']
    %10 = vsyncpa [#allocation3], 0
    // Predicated region
    $region2: #{sentiment_classifier_forward.7} parent=1 // pred_check
      _
    $region3: #{sentiment_classifier_forward.7} parent=1 // pred_check_branch
      %12 = sbr.rel (0) target = $region5
    $region4: #{sentiment_classifier_forward.7} parent=1 // pred_region
      _
    $region5: #{sentiment_classifier_forward.7} parent=1 // pred_fallthru
      _
    // Predicated region
    $region6: #{sentiment_classifier_forward.7} parent=1 // pred_check
      _
    $region7: #{sentiment_classifier_forward.7} parent=1 // pred_check_branch
      %14 = sbr.rel (0) target = $region9
    $region8: #{sentiment_classifier_forward.7} parent=1 // pred_region
      _
    $region9: #{sentiment_classifier_forward.7} parent=1 // pred_fallthru
      _
    // Predicated region
    $region10: #{sentiment_classifier_forward.7} parent=1 // pred_check
      _
    $region11: #{sentiment_classifier_forward.7} parent=1 // pred_check_branch
      %16 = sbr.rel (0) target = $region13
    $region12: #{sentiment_classifier_forward.7} parent=1 // pred_region
      _
    $region13: #{sentiment_classifier_forward.7} parent=1 // pred_fallthru
      _
    // Predicated region
    $region14: #{sentiment_classifier_forward.7} parent=1 // pred_check
      _
    $region15: #{sentiment_classifier_forward.7} parent=1 // pred_check_branch
      %18 = sbr.rel (0) target = $region17
    $region16: #{sentiment_classifier_forward.7} parent=1 // pred_region
      _
    $region17: #{sentiment_classifier_forward.7} parent=1 // pred_fallthru
      _
    // Predicated region
    $region18: #{sentiment_classifier_forward.7} parent=1 // pred_check
      _
    $region19: #{sentiment_classifier_forward.7} parent=1 // pred_check_branch
      %20 = sbr.rel (0) target = $region21
    $region20: #{sentiment_classifier_forward.7} parent=1 // pred_region
      _
    $region21: #{sentiment_classifier_forward.7} parent=1 // pred_fallthru
      _
    %v22 = vld [vmem:[%s0] sm:$0x3]
    %v23 = vld [vmem:[%s1] sm:$0xf]
    %v24 = vld [vmem:[%s1 + $0x4] sm:$0xf]
    %v25 = vld [vmem:[%s1 + $0x8] sm:$0xf]
    %v26 = vld [vmem:[%s1 + $0xc] sm:$0xf]
    %v27 = vpack.c.bf16 %v22, %v22
    %v28 = vld [vmem:[%s2] sm:$0x1]
    %v30 = vlaneseq
    %v31 = vshrl.u32 %v30, 7
    %v32 = vsub.s32 0, %v31
    %v33 = vrot.slane %v28, %v32
    %v39 = vunpack.c.l.b16 %v23
    %v40 = vunpack.c.l.b16 %v24
    %v41 = vunpack.c.l.b16 %v25
    %v42 = vunpack.c.l.b16 %v26
    %v43 = vpack.c.b16 %v40, %v39
    %v44 = vpack.c.b16 %v42, %v41
    %vm47 = vcmask 261120
    %v49 = vsel %vm47, %v27, 0
    %51 = vmatprep.subr.bf16.mxu0 0
    %52 = vmatpush1.bf16.msra.mxu0 0
    %53 = vmatprep.subr.bf16.mxu0 0
    %54 = vmatpush1.bf16.msra.mxu0 0
    %55 = vmatprep.subr.bf16.mxu0 0
    %56 = vmatpush1.bf16.msra.mxu0 0
    %57 = vmatprep.subr.bf16.mxu0 0
    %58 = vmatpush1.bf16.msra.mxu0 0
    %59 = vmatprep.subr.bf16.mxu0 0
    %60 = vmatpush1.bf16.msra.mxu0 0
    %61 = vmatprep.subr.bf16.mxu0 0
    %62 = vmatpush1.bf16.msra.mxu0 0
    %63 = vmatprep.subr.bf16.mxu0 0
    %64 = vmatpush1.bf16.msra.mxu0 %v44
    %65 = vmatprep.subr.bf16.mxu0 0
    %66 = vmatpush1.bf16.msra.mxu0 %v43
    %67 = vmatprep.subr.bf16.mxu0 0
    %68 = vmatpush2.bf16.msra.mxu0 0
    %69 = vmatprep.subr.bf16.mxu0 0
    %70 = vmatpush2.bf16.msra.mxu0 0
    %71 = vmatprep.subr.bf16.mxu0 0
    %72 = vmatpush2.bf16.msra.mxu0 0
    %73 = vmatprep.subr.bf16.mxu0 0
    %74 = vmatpush2.bf16.msra.mxu0 0
    %75 = vmatprep.subr.bf16.mxu0 0
    %76 = vmatpush2.bf16.msra.mxu0 0
    %77 = vmatprep.subr.bf16.mxu0 0
    %78 = vmatpush2.bf16.msra.mxu0 0
    %79 = vmatprep.subr.bf16.mxu0 0
    %80 = vmatpush2.bf16.msra.mxu0 0
    %81 = vmatprep.subr.bf16.mxu0 0
    %82 = vmatpush2.bf16.msra.mxu0 0
    %83 = vmatprep.mubr.bf16.mxu0 0
    %84 = vmatmul.mubr.bf16.gmra.mxu0 %v49
    %v85 = vpop.f32.mrf.mxu0
    %v86 = vadd.f32 %v33, %v85
    %v87 = vpop.f32.mrf.mxu0
    %v88 = vpop.f32.mrf.mxu0
    %v89 = vpop.f32.mrf.mxu0
    %90 = vdwg.mxu0
    %v91 = vtanh.pop %v86
    %v92 = vld [vmem:[%s3] sm:$0xf]
    %v93 = vld [vmem:[%s3 + $0x4] sm:$0xf]
    %v94 = vld [vmem:[%s3 + $0x8] sm:$0xf]
    %v95 = vld [vmem:[%s3 + $0xc] sm:$0xf]
    %v96 = vpack.c.bf16 %v91, %v91
    %v97 = vld [vmem:[%s4] sm:$0x1]
    %v99 = vlaneseq
    %v100 = vshrl.u32 %v99, 7
    %v101 = vsub.s32 0, %v100
    %v102 = vrot.slane %v97, %v101
    %v108 = vunpack.c.l.b16 %v92
    %v109 = vunpack.c.l.b16 %v93
    %v110 = vunpack.c.l.b16 %v94
    %v111 = vunpack.c.l.b16 %v95
    %v112 = vpack.c.b16 %v109, %v108
    %v113 = vpack.c.b16 %v111, %v110
    %v117 = vsel %vm47, %v96, 0
    %119 = vmatprep.subr.bf16.mxu0 0
    %120 = vmatpush1.bf16.msra.mxu0 0
    %121 = vmatprep.subr.bf16.mxu0 0
    %122 = vmatpush1.bf16.msra.mxu0 0
    %123 = vmatprep.subr.bf16.mxu0 0
    %124 = vmatpush1.bf16.msra.mxu0 0
    %125 = vmatprep.subr.bf16.mxu0 0
    %126 = vmatpush1.bf16.msra.mxu0 0
    %127 = vmatprep.subr.bf16.mxu0 0
    %128 = vmatpush1.bf16.msra.mxu0 0
    %129 = vmatprep.subr.bf16.mxu0 0
    %130 = vmatpush1.bf16.msra.mxu0 0
    %131 = vmatprep.subr.bf16.mxu0 0
    %132 = vmatpush1.bf16.msra.mxu0 %v113
    %133 = vmatprep.subr.bf16.mxu0 0
    %134 = vmatpush1.bf16.msra.mxu0 %v112
    %135 = vmatprep.subr.bf16.mxu0 0
    %136 = vmatpush2.bf16.msra.mxu0 0
    %137 = vmatprep.subr.bf16.mxu0 0
    %138 = vmatpush2.bf16.msra.mxu0 0
    %139 = vmatprep.subr.bf16.mxu0 0
    %140 = vmatpush2.bf16.msra.mxu0 0
    %141 = vmatprep.subr.bf16.mxu0 0
    %142 = vmatpush2.bf16.msra.mxu0 0
    %143 = vmatprep.subr.bf16.mxu0 0
    %144 = vmatpush2.bf16.msra.mxu0 0
    %145 = vmatprep.subr.bf16.mxu0 0
    %146 = vmatpush2.bf16.msra.mxu0 0
    %147 = vmatprep.subr.bf16.mxu0 0
    %148 = vmatpush2.bf16.msra.mxu0 0
    %149 = vmatprep.subr.bf16.mxu0 0
    %150 = vmatpush2.bf16.msra.mxu0 0
    %151 = vmatprep.mubr.bf16.mxu0 0
    %152 = vmatmul.mubr.bf16.gmra.mxu0 %v117
    %v153 = vpop.f32.mrf.mxu0
    %v154 = vadd.f32 %v102, %v153
    %v155 = vpop.f32.mrf.mxu0
    %v156 = vpop.f32.mrf.mxu0
    %v157 = vpop.f32.mrf.mxu0
    %158 = vdwg.mxu0
    %159 = vst [vmem:[#allocation2] sm:$0x3] %v154
    // Predicated region
    $region22: #{sentiment_classifier_forward.7} parent=1 // pred_check
      _
    $region23: #{sentiment_classifier_forward.7} parent=1 // pred_check_branch
      %161 = sbr.rel (0) target = $region25
    $region24: #{sentiment_classifier_forward.7} parent=1 // pred_region
      %s163 = ssub.s32 32, 32
      %164 = vsyncadd [#allocation3], %s163
      %s166 = sshll.u32 [#allocation2], 4
      %s167 = int_to_ptr.vmem [resolvable:$true] %s166
      %169 = dma.vmem_to_hbm [thread:$0]  %s167, 32, %s5, [#allocation3]
    $region25: #{sentiment_classifier_forward.7} parent=1 // pred_fallthru
      _
    // Predicated region
    $region26: #{sentiment_classifier_forward.7} parent=1 // pred_check
      _
    $region27: #{sentiment_classifier_forward.7} parent=1 // pred_check_branch
      %171 = sbr.rel (0) target = $region29
    $region28: #{sentiment_classifier_forward.7} parent=1 // pred_region
      %172 = dma.done [#allocation3], 32
    $region29: #{sentiment_classifier_forward.7} parent=1 // pred_fallthru
      _
    %173 = vsyncpa [#allocation3], 1

// kernel: sentiment_classifier_forward.5
$region0: #{sentiment_classifier_forward.5}
  #allocation0 [shape = 'u32[]', space=smem, size = 0x4, offset = 0x4, fixed_abs, tag = 'smem constant byte address 0x4 - core index']
  #allocation1 [shape = 'u32[144,128]{1,0:T(1,128)}', space=vmem, size = 0x12000, scoped, tag = 'internal scratch']
  #allocation2 [shape = 'f32[16,32]{1,0:T(8,128)}', space=vmem, size = 0x2000, scoped, tag = 'scratch operand']
  %s0 = inlined_call_operand.vmem [shape: f32[16,32], index: 0, kind: input, shape index: {}]
  %s1 = inlined_call_operand.vmem [shape: f32[2,8], index: 1, kind: input, shape index: {}]
  %s2 = inlined_call_operand.vmem [shape: bf16[32,96], index: 2, kind: input, shape index: {}]
  %s3 = inlined_call_operand.vmem [shape: f32[1,96], index: 3, kind: input, shape index: {}]
  %s4 = inlined_call_operand.vmem [shape: bf16[4,8,32], index: 4, kind: input, shape index: {}]
  %s5 = inlined_call_operand.vmem [shape: f32[1,32], index: 5, kind: input, shape index: {}]
  %s6 = inlined_call_operand.vmem [shape: f32[1,32], index: 6, kind: input, shape index: {}]
  %s7 = inlined_call_operand.vmem [shape: f32[1,32], index: 7, kind: input, shape index: {}]
  %s8 = inlined_call_operand.vmem [shape: bf16[32,64], index: 8, kind: input, shape index: {}]
  %s9 = inlined_call_operand.vmem [shape: f32[1,64], index: 9, kind: input, shape index: {}]
  %s10 = inlined_call_operand.vmem [shape: bf16[64,32], index: 10, kind: input, shape index: {}]
  %s11 = inlined_call_operand.vmem [shape: f32[1,32], index: 11, kind: input, shape index: {}]
  %s12 = inlined_call_operand.vmem [shape: f32[1,32], index: 12, kind: input, shape index: {}]
  %s13 = inlined_call_operand.vmem [shape: f32[1,32], index: 13, kind: input, shape index: {}]
  %s14 = inlined_call_operand.vmem [shape: f32[16,32], index: 14, kind: output, shape index: {}]
  %s15 = sld [smem:[#allocation0]]
  $region66: #{sentiment_classifier_forward.5} parent=0
    _
  %s17 = ssub.s32 1, %s15
  %s18 = scalar_select 0, %s17, %s15
  // Predicated region
  $region2: #{sentiment_classifier_forward.5} parent=0 // pred_check
    _
  $region3: #{sentiment_classifier_forward.5} parent=0 // pred_check_branch
    %20 = sbr.rel (0) target = $region5
  $region4: #{sentiment_classifier_forward.5} parent=0 // pred_region
    _
  $region5: #{sentiment_classifier_forward.5} parent=0 // pred_fallthru
    _
  // Predicated region
  $region6: #{sentiment_classifier_forward.5} parent=0 // pred_check
    _
  $region7: #{sentiment_classifier_forward.5} parent=0 // pred_check_branch
    %22 = sbr.rel (0) target = $region9
  $region8: #{sentiment_classifier_forward.5} parent=0 // pred_region
    _
  $region9: #{sentiment_classifier_forward.5} parent=0 // pred_fallthru
    _
  // Predicated region
  $region10: #{sentiment_classifier_forward.5} parent=0 // pred_check
    _
  $region11: #{sentiment_classifier_forward.5} parent=0 // pred_check_branch
    %24 = sbr.rel (0) target = $region13
  $region12: #{sentiment_classifier_forward.5} parent=0 // pred_region
    _
  $region13: #{sentiment_classifier_forward.5} parent=0 // pred_fallthru
    _
  // Predicated region
  $region14: #{sentiment_classifier_forward.5} parent=0 // pred_check
    _
  $region15: #{sentiment_classifier_forward.5} parent=0 // pred_check_branch
    %26 = sbr.rel (0) target = $region17
  $region16: #{sentiment_classifier_forward.5} parent=0 // pred_region
    _
  $region17: #{sentiment_classifier_forward.5} parent=0 // pred_fallthru
    _
  // Predicated region
  $region18: #{sentiment_classifier_forward.5} parent=0 // pred_check
    _
  $region19: #{sentiment_classifier_forward.5} parent=0 // pred_check_branch
    %28 = sbr.rel (0) target = $region21
  $region20: #{sentiment_classifier_forward.5} parent=0 // pred_region
    _
  $region21: #{sentiment_classifier_forward.5} parent=0 // pred_fallthru
    _
  // Predicated region
  $region22: #{sentiment_classifier_forward.5} parent=0 // pred_check
    _
  $region23: #{sentiment_classifier_forward.5} parent=0 // pred_check_branch
    %30 = sbr.rel (0) target = $region25
  $region24: #{sentiment_classifier_forward.5} parent=0 // pred_region
    _
  $region25: #{sentiment_classifier_forward.5} parent=0 // pred_fallthru
    _
  // Predicated region
  $region26: #{sentiment_classifier_forward.5} parent=0 // pred_check
    _
  $region27: #{sentiment_classifier_forward.5} parent=0 // pred_check_branch
    %32 = sbr.rel (0) target = $region29
  $region28: #{sentiment_classifier_forward.5} parent=0 // pred_region
    _
  $region29: #{sentiment_classifier_forward.5} parent=0 // pred_fallthru
    _
  // Predicated region
  $region30: #{sentiment_classifier_forward.5} parent=0 // pred_check
    _
  $region31: #{sentiment_classifier_forward.5} parent=0 // pred_check_branch
    %34 = sbr.rel (0) target = $region33
  $region32: #{sentiment_classifier_forward.5} parent=0 // pred_region
    _
  $region33: #{sentiment_classifier_forward.5} parent=0 // pred_fallthru
    _
  // Predicated region
  $region34: #{sentiment_classifier_forward.5} parent=0 // pred_check
    _
  $region35: #{sentiment_classifier_forward.5} parent=0 // pred_check_branch
    %36 = sbr.rel (0) target = $region37
  $region36: #{sentiment_classifier_forward.5} parent=0 // pred_region
    _
  $region37: #{sentiment_classifier_forward.5} parent=0 // pred_fallthru
    _
  // Predicated region
  $region38: #{sentiment_classifier_forward.5} parent=0 // pred_check
    _
  $region39: #{sentiment_classifier_forward.5} parent=0 // pred_check_branch
    %38 = sbr.rel (0) target = $region41
  $region40: #{sentiment_classifier_forward.5} parent=0 // pred_region
    _
  $region41: #{sentiment_classifier_forward.5} parent=0 // pred_fallthru
    _
  // Predicated region
  $region42: #{sentiment_classifier_forward.5} parent=0 // pred_check
    _
  $region43: #{sentiment_classifier_forward.5} parent=0 // pred_check_branch
    %40 = sbr.rel (0) target = $region45
  $region44: #{sentiment_classifier_forward.5} parent=0 // pred_region
    _
  $region45: #{sentiment_classifier_forward.5} parent=0 // pred_fallthru
    _
  // Predicated region
  $region46: #{sentiment_classifier_forward.5} parent=0 // pred_check
    _
  $region47: #{sentiment_classifier_forward.5} parent=0 // pred_check_branch
    %42 = sbr.rel (0) target = $region49
  $region48: #{sentiment_classifier_forward.5} parent=0 // pred_region
    _
  $region49: #{sentiment_classifier_forward.5} parent=0 // pred_fallthru
    _
  // Predicated region
  $region50: #{sentiment_classifier_forward.5} parent=0 // pred_check
    _
  $region51: #{sentiment_classifier_forward.5} parent=0 // pred_check_branch
    %44 = sbr.rel (0) target = $region53
  $region52: #{sentiment_classifier_forward.5} parent=0 // pred_region
    _
  $region53: #{sentiment_classifier_forward.5} parent=0 // pred_fallthru
    _
  // Predicated region
  $region54: #{sentiment_classifier_forward.5} parent=0 // pred_check
    _
  $region55: #{sentiment_classifier_forward.5} parent=0 // pred_check_branch
    %46 = sbr.rel (0) target = $region57
  $region56: #{sentiment_classifier_forward.5} parent=0 // pred_region
    _
  $region57: #{sentiment_classifier_forward.5} parent=0 // pred_fallthru
    _
  %v48 = vld [vmem:[%s0] sm:$0xff]
  %v49 = vld [vmem:[%s0 + $0x8] sm:$0xff]
  %v50 = vld [vmem:[%s1] sm:$0x3]
  %v51 = vld [vmem:[%s2] sm:$0xf]
  %v52 = vld [vmem:[%s2 + $0x4] sm:$0xf]
  %v53 = vld [vmem:[%s2 + $0x8] sm:$0xf]
  %v54 = vld [vmem:[%s2 + $0xc] sm:$0xf]
  %v55 = vpack.c.bf16 %v49, %v48
  %v56 = vld [vmem:[%s3] sm:$0x1]
  %v58 = vlaneseq
  %v59 = vshrl.u32 %v58, 7
  %v60 = vsub.s32 0, %v59
  %v61 = vrot.slane %v56, %v60
  %v67 = vunpack.c.l.b16 %v51
  %v68 = vunpack.c.l.b16 %v52
  %v69 = vunpack.c.l.b16 %v53
  %v70 = vunpack.c.l.b16 %v54
  %v71 = vpack.c.b16 %v68, %v67
  %v72 = vpack.c.b16 %v70, %v69
  %vm75 = vcmask 261120
  %v77 = vsel %vm75, %v55, 0
  %79 = vmatprep.subr.bf16.mxu0 0
  %80 = vmatpush1.bf16.msra.mxu0 0
  %81 = vmatprep.subr.bf16.mxu0 0
  %82 = vmatpush1.bf16.msra.mxu0 0
  %83 = vmatprep.subr.bf16.mxu0 0
  %84 = vmatpush1.bf16.msra.mxu0 0
  %85 = vmatprep.subr.bf16.mxu0 0
  %86 = vmatpush1.bf16.msra.mxu0 0
  %87 = vmatprep.subr.bf16.mxu0 0
  %88 = vmatpush1.bf16.msra.mxu0 0
  %89 = vmatprep.subr.bf16.mxu0 0
  %90 = vmatpush1.bf16.msra.mxu0 0
  %91 = vmatprep.subr.bf16.mxu0 0
  %92 = vmatpush1.bf16.msra.mxu0 %v72
  %93 = vmatprep.subr.bf16.mxu0 0
  %94 = vmatpush1.bf16.msra.mxu0 %v71
  %95 = vmatprep.subr.bf16.mxu0 0
  %96 = vmatpush2.bf16.msra.mxu0 0
  %97 = vmatprep.subr.bf16.mxu0 0
  %98 = vmatpush2.bf16.msra.mxu0 0
  %99 = vmatprep.subr.bf16.mxu0 0
  %100 = vmatpush2.bf16.msra.mxu0 0
  %101 = vmatprep.subr.bf16.mxu0 0
  %102 = vmatpush2.bf16.msra.mxu0 0
  %103 = vmatprep.subr.bf16.mxu0 0
  %104 = vmatpush2.bf16.msra.mxu0 0
  %105 = vmatprep.subr.bf16.mxu0 0
  %106 = vmatpush2.bf16.msra.mxu0 0
  %107 = vmatprep.subr.bf16.mxu0 0
  %108 = vmatpush2.bf16.msra.mxu0 0
  %109 = vmatprep.subr.bf16.mxu0 0
  %110 = vmatpush2.bf16.msra.mxu0 0
  %111 = vmatprep.mubr.bf16.mxu0 0
  %112 = vmatmul.mubr.bf16.gmra.mxu0 %v77
  %v113 = vpop.f32.mrf.mxu0
  %v114 = vadd.f32 %v61, %v113
  %v115 = vpop.f32.mrf.mxu0
  %v116 = vpop.f32.mrf.mxu0
  %v117 = vadd.f32 %v61, %v116
  %v118 = vpop.f32.mrf.mxu0
  %119 = vdwg.mxu0
  %v120 = vpack.c.bf16 %v114, %v114
  %122 = vrot.lane.b32.xlu0 %v120, 96
  %v123 = vpop.permute.xlu0 %122
  %vm124 = vcmask 64512
  %v126 = vsel %vm124, %v120, 0
  %v129 = vsel %vm124, %v123, 0
  %131 = vmatprep.subr.bf16.mxu0 0
  %132 = vmatpush1.bf16.xpose.msra.mxu0 0
  %133 = vmatprep.subr.bf16.mxu0 0
  %134 = vmatpush1.bf16.xpose.msra.mxu0 0
  %135 = vmatprep.subr.bf16.mxu0 0
  %136 = vmatpush1.bf16.xpose.msra.mxu0 0
  %137 = vmatprep.subr.bf16.mxu0 0
  %138 = vmatpush1.bf16.xpose.msra.mxu0 0
  %139 = vmatprep.subr.bf16.mxu0 0
  %140 = vmatpush1.bf16.xpose.msra.mxu0 0
  %141 = vmatprep.subr.bf16.mxu0 0
  %142 = vmatpush1.bf16.xpose.msra.mxu0 0
  %143 = vmatprep.subr.bf16.mxu0 0
  %144 = vmatpush1.bf16.xpose.msra.mxu0 0
  %145 = vmatprep.subr.bf16.mxu0 0
  %146 = vmatpush1.bf16.xpose.msra.mxu0 %v129
  %147 = vmatprep.subr.bf16.mxu0 0
  %148 = vmatpush2.bf16.xpose.msra.mxu0 0
  %149 = vmatprep.subr.bf16.mxu0 0
  %150 = vmatpush2.bf16.xpose.msra.mxu0 0
  %151 = vmatprep.subr.bf16.mxu0 0
  %152 = vmatpush2.bf16.xpose.msra.mxu0 0
  %153 = vmatprep.subr.bf16.mxu0 0
  %154 = vmatpush2.bf16.xpose.msra.mxu0 0
  %155 = vmatprep.subr.bf16.mxu0 0
  %156 = vmatpush2.bf16.xpose.msra.mxu0 0
  %157 = vmatprep.subr.bf16.mxu0 0
  %158 = vmatpush2.bf16.xpose.msra.mxu0 0
  %159 = vmatprep.subr.bf16.mxu0 0
  %160 = vmatpush2.bf16.xpose.msra.mxu0 0
  %161 = vmatprep.subr.bf16.mxu0 0
  %162 = vmatpush2.bf16.xpose.msra.mxu0 0
  %163 = vmatprep.mubr.bf16.mxu0 0
  %164 = vmatmul.mubr.bf16.gmra.mxu0 %v126
  %v165 = vpop.f32.mrf.mxu0
  %v166 = vadd.f32 0.0, %v165
  %v167 = vpop.f32.mrf.mxu0
  %v168 = vpop.f32.mrf.mxu0
  %v169 = vpop.f32.mrf.mxu0
  %170 = vdwg.mxu0
  %v171 = vmul.f32 %v166, 0.35355338
  %v172 = vlaneseq
  %v173 = vshrl.u32 %v172, 7
  %v174 = vsub.s32 0, %v173
  %v175 = vrot.slane %v50, %v174
  %v176 = vadd.f32 %v171, %v175
  %v177 = vsel %vm124, %v176, -inf
  %178 = vmax.xlane.f32.xlu0 %v177
  %v179 = vpop.xlane.xlu0 %178
  %v180 = vsub.f32 %v176, %v179
  %v181 = vmul.f32 %v180, 1.442695
  %v182 = vpow.pop %v181
  %v183 = vsel %vm124, %v182, 0.0
  %184 = vadd.xlane.f32.xlu0 %v183
  %v185 = vpop.xlane.xlu0 %184
  %v186 = vrcp.pop %v185
  %v187 = vmul.f32 %v182, %v186
  %v188 = vpack.c.bf16 %v187, %v187
  %189 = vrot.lane.b32.xlu0 %v120, 64
  %v190 = vpop.permute.xlu0 %189
  %v192 = vsel %vm124, %v188, 0
  %vm194 = vcmask 1043456
  %v196 = vsel %vm194, %v190, 0
  %198 = vmatprep.subr.bf16.mxu0 0
  %199 = vmatpush1.bf16.msra.mxu0 0
  %200 = vmatprep.subr.bf16.mxu0 0
  %201 = vmatpush1.bf16.msra.mxu0 0
  %202 = vmatprep.subr.bf16.mxu0 0
  %203 = vmatpush1.bf16.msra.mxu0 0
  %204 = vmatprep.subr.bf16.mxu0 0
  %205 = vmatpush1.bf16.msra.mxu0 0
  %206 = vmatprep.subr.bf16.mxu0 0
  %207 = vmatpush1.bf16.msra.mxu0 0
  %208 = vmatprep.subr.bf16.mxu0 0
  %209 = vmatpush1.bf16.msra.mxu0 0
  %210 = vmatprep.subr.bf16.mxu0 0
  %211 = vmatpush1.bf16.msra.mxu0 0
  %212 = vmatprep.subr.bf16.mxu0 0
  %213 = vmatpush1.bf16.msra.mxu0 %v196
  %214 = vmatprep.subr.bf16.mxu0 0
  %215 = vmatpush2.bf16.msra.mxu0 0
  %216 = vmatprep.subr.bf16.mxu0 0
  %217 = vmatpush2.bf16.msra.mxu0 0
  %218 = vmatprep.subr.bf16.mxu0 0
  %219 = vmatpush2.bf16.msra.mxu0 0
  %220 = vmatprep.subr.bf16.mxu0 0
  %221 = vmatpush2.bf16.msra.mxu0 0
  %222 = vmatprep.subr.bf16.mxu0 0
  %223 = vmatpush2.bf16.msra.mxu0 0
  %224 = vmatprep.subr.bf16.mxu0 0
  %225 = vmatpush2.bf16.msra.mxu0 0
  %226 = vmatprep.subr.bf16.mxu0 0
  %227 = vmatpush2.bf16.msra.mxu0 0
  %228 = vmatprep.subr.bf16.mxu0 0
  %229 = vmatpush2.bf16.msra.mxu0 0
  %230 = vmatprep.mubr.bf16.mxu0 0
  %231 = vmatmul.mubr.bf16.gmra.mxu0 %v192
  %v232 = vpop.f32.mrf.mxu0
  %v233 = vadd.f32 0.0, %v232
  %v234 = vpop.f32.mrf.mxu0
  %v235 = vpop.f32.mrf.mxu0
  %v236 = vpop.f32.mrf.mxu0
  %237 = vdwg.mxu0
  %v238 = vpack.c.bf16 %v233, %v233
  %v239 = vld [vmem:[%s4] sm:$0xf]
  %240 = vrot.lane.b32.xlu0 %v120, 120
  %v241 = vpop.permute.xlu0 %240
  %242 = vrot.lane.b32.xlu0 %v120, 88
  %v243 = vpop.permute.xlu0 %242
  %v245 = vsel %vm124, %v241, 0
  %v248 = vsel %vm124, %v243, 0
  %250 = vmatprep.subr.bf16.mxu0 0
  %251 = vmatpush1.bf16.xpose.msra.mxu0 0
  %252 = vmatprep.subr.bf16.mxu0 0
  %253 = vmatpush1.bf16.xpose.msra.mxu0 0
  %254 = vmatprep.subr.bf16.mxu0 0
  %255 = vmatpush1.bf16.xpose.msra.mxu0 0
  %256 = vmatprep.subr.bf16.mxu0 0
  %257 = vmatpush1.bf16.xpose.msra.mxu0 0
  %258 = vmatprep.subr.bf16.mxu0 0
  %259 = vmatpush1.bf16.xpose.msra.mxu0 0
  %260 = vmatprep.subr.bf16.mxu0 0
  %261 = vmatpush1.bf16.xpose.msra.mxu0 0
  %262 = vmatprep.subr.bf16.mxu0 0
  %263 = vmatpush1.bf16.xpose.msra.mxu0 0
  %264 = vmatprep.subr.bf16.mxu0 0
  %265 = vmatpush1.bf16.xpose.msra.mxu0 %v248
  %266 = vmatprep.subr.bf16.mxu0 0
  %267 = vmatpush2.bf16.xpose.msra.mxu0 0
  %268 = vmatprep.subr.bf16.mxu0 0
  %269 = vmatpush2.bf16.xpose.msra.mxu0 0
  %270 = vmatprep.subr.bf16.mxu0 0
  %271 = vmatpush2.bf16.xpose.msra.mxu0 0
  %272 = vmatprep.subr.bf16.mxu0 0
  %273 = vmatpush2.bf16.xpose.msra.mxu0 0
  %274 = vmatprep.subr.bf16.mxu0 0
  %275 = vmatpush2.bf16.xpose.msra.mxu0 0
  %276 = vmatprep.subr.bf16.mxu0 0
  %277 = vmatpush2.bf16.xpose.msra.mxu0 0
  %278 = vmatprep.subr.bf16.mxu0 0
  %279 = vmatpush2.bf16.xpose.msra.mxu0 0
  %280 = vmatprep.subr.bf16.mxu0 0
  %281 = vmatpush2.bf16.xpose.msra.mxu0 0
  %282 = vmatprep.mubr.bf16.mxu0 0
  %283 = vmatmul.mubr.bf16.gmra.mxu0 %v245
  %v284 = vpop.f32.mrf.mxu0
  %v285 = vadd.f32 0.0, %v284
  %v286 = vpop.f32.mrf.mxu0
  %v287 = vpop.f32.mrf.mxu0
  %v288 = vpop.f32.mrf.mxu0
  %289 = vdwg.mxu0
  %v290 = vmul.f32 %v285, 0.35355338
  %v291 = vadd.f32 %v290, %v175
  %v292 = vsel %vm124, %v291, -inf
  %293 = vmax.xlane.f32.xlu0 %v292
  %v294 = vpop.xlane.xlu0 %293
  %v295 = vsub.f32 %v291, %v294
  %v296 = vmul.f32 %v295, 1.442695
  %v297 = vpow.pop %v296
  %v298 = vsel %vm124, %v297, 0.0
  %299 = vadd.xlane.f32.xlu0 %v298
  %v300 = vpop.xlane.xlu0 %299
  %v301 = vrcp.pop %v300
  %v302 = vmul.f32 %v297, %v301
  %v303 = vpack.c.bf16 %v302, %v302
  %304 = vrot.lane.b32.xlu0 %v120, 56
  %v305 = vpop.permute.xlu0 %304
  %v307 = vsel %vm124, %v303, 0
  %v310 = vsel %vm194, %v305, 0
  %312 = vmatprep.subr.bf16.mxu0 0
  %313 = vmatpush1.bf16.msra.mxu0 0
  %314 = vmatprep.subr.bf16.mxu0 0
  %315 = vmatpush1.bf16.msra.mxu0 0
  %316 = vmatprep.subr.bf16.mxu0 0
  %317 = vmatpush1.bf16.msra.mxu0 0
  %318 = vmatprep.subr.bf16.mxu0 0
  %319 = vmatpush1.bf16.msra.mxu0 0
  %320 = vmatprep.subr.bf16.mxu0 0
  %321 = vmatpush1.bf16.msra.mxu0 0
  %322 = vmatprep.subr.bf16.mxu0 0
  %323 = vmatpush1.bf16.msra.mxu0 0
  %324 = vmatprep.subr.bf16.mxu0 0
  %325 = vmatpush1.bf16.msra.mxu0 0
  %326 = vmatprep.subr.bf16.mxu0 0
  %327 = vmatpush1.bf16.msra.mxu0 %v310
  %328 = vmatprep.subr.bf16.mxu0 0
  %329 = vmatpush2.bf16.msra.mxu0 0
  %330 = vmatprep.subr.bf16.mxu0 0
  %331 = vmatpush2.bf16.msra.mxu0 0
  %332 = vmatprep.subr.bf16.mxu0 0
  %333 = vmatpush2.bf16.msra.mxu0 0
  %334 = vmatprep.subr.bf16.mxu0 0
  %335 = vmatpush2.bf16.msra.mxu0 0
  %336 = vmatprep.subr.bf16.mxu0 0
  %337 = vmatpush2.bf16.msra.mxu0 0
  %338 = vmatprep.subr.bf16.mxu0 0
  %339 = vmatpush2.bf16.msra.mxu0 0
  %340 = vmatprep.subr.bf16.mxu0 0
  %341 = vmatpush2.bf16.msra.mxu0 0
  %342 = vmatprep.subr.bf16.mxu0 0
  %343 = vmatpush2.bf16.msra.mxu0 0
  %344 = vmatprep.mubr.bf16.mxu0 0
  %345 = vmatmul.mubr.bf16.gmra.mxu0 %v307
  %v346 = vpop.f32.mrf.mxu0
  %v347 = vadd.f32 0.0, %v346
  %v348 = vpop.f32.mrf.mxu0
  %v349 = vpop.f32.mrf.mxu0
  %v350 = vpop.f32.mrf.mxu0
  %351 = vdwg.mxu0
  %v352 = vpack.c.bf16 %v347, %v347
  %s353 = scalar_lea.vmem %s4, 4
  %v354 = vld [vmem:[%s353] sm:$0xf]
  %v356 = vsel %vm124, %v352, 0
  %v359 = vsel %vm194, %v354, 0
  %361 = vmatprep.subr.bf16.mxu0 0
  %362 = vmatpush1.bf16.msra.mxu0 0
  %363 = vmatprep.subr.bf16.mxu0 0
  %364 = vmatpush1.bf16.msra.mxu0 0
  %365 = vmatprep.subr.bf16.mxu0 0
  %366 = vmatpush1.bf16.msra.mxu0 0
  %367 = vmatprep.subr.bf16.mxu0 0
  %368 = vmatpush1.bf16.msra.mxu0 0
  %369 = vmatprep.subr.bf16.mxu0 0
  %370 = vmatpush1.bf16.msra.mxu0 0
  %371 = vmatprep.subr.bf16.mxu0 0
  %372 = vmatpush1.bf16.msra.mxu0 0
  %373 = vmatprep.subr.bf16.mxu0 0
  %374 = vmatpush1.bf16.msra.mxu0 0
  %375 = vmatprep.subr.bf16.mxu0 0
  %376 = vmatpush1.bf16.msra.mxu0 %v359
  %377 = vmatprep.subr.bf16.mxu0 0
  %378 = vmatpush2.bf16.msra.mxu0 0
  %379 = vmatprep.subr.bf16.mxu0 0
  %380 = vmatpush2.bf16.msra.mxu0 0
  %381 = vmatprep.subr.bf16.mxu0 0
  %382 = vmatpush2.bf16.msra.mxu0 0
  %383 = vmatprep.subr.bf16.mxu0 0
  %384 = vmatpush2.bf16.msra.mxu0 0
  %385 = vmatprep.subr.bf16.mxu0 0
  %386 = vmatpush2.bf16.msra.mxu0 0
  %387 = vmatprep.subr.bf16.mxu0 0
  %388 = vmatpush2.bf16.msra.mxu0 0
  %389 = vmatprep.subr.bf16.mxu0 0
  %390 = vmatpush2.bf16.msra.mxu0 0
  %391 = vmatprep.subr.bf16.mxu0 0
  %392 = vmatpush2.bf16.msra.mxu0 0
  %393 = vmatprep.mubr.bf16.mxu0 0
  %394 = vmatmul.mubr.bf16.gmra.mxu0 %v356
  %v395 = vpop.f32.mrf.mxu0
  %v396 = vadd.f32 0.0, %v395
  %v397 = vpop.f32.mrf.mxu0
  %v398 = vpop.f32.mrf.mxu0
  %v399 = vpop.f32.mrf.mxu0
  %400 = vdwg.mxu0
  %v402 = vsel %vm124, %v238, 0
  %v405 = vsel %vm194, %v239, 0
  %407 = vmatprep.subr.bf16.mxu0 0
  %408 = vmatpush1.bf16.msra.mxu0 0
  %409 = vmatprep.subr.bf16.mxu0 0
  %410 = vmatpush1.bf16.msra.mxu0 0
  %411 = vmatprep.subr.bf16.mxu0 0
  %412 = vmatpush1.bf16.msra.mxu0 0
  %413 = vmatprep.subr.bf16.mxu0 0
  %414 = vmatpush1.bf16.msra.mxu0 0
  %415 = vmatprep.subr.bf16.mxu0 0
  %416 = vmatpush1.bf16.msra.mxu0 0
  %417 = vmatprep.subr.bf16.mxu0 0
  %418 = vmatpush1.bf16.msra.mxu0 0
  %419 = vmatprep.subr.bf16.mxu0 0
  %420 = vmatpush1.bf16.msra.mxu0 0
  %421 = vmatprep.subr.bf16.mxu0 0
  %422 = vmatpush1.bf16.msra.mxu0 %v405
  %423 = vmatprep.subr.bf16.mxu0 0
  %424 = vmatpush2.bf16.msra.mxu0 0
  %425 = vmatprep.subr.bf16.mxu0 0
  %426 = vmatpush2.bf16.msra.mxu0 0
  %427 = vmatprep.subr.bf16.mxu0 0
  %428 = vmatpush2.bf16.msra.mxu0 0
  %429 = vmatprep.subr.bf16.mxu0 0
  %430 = vmatpush2.bf16.msra.mxu0 0
  %431 = vmatprep.subr.bf16.mxu0 0
  %432 = vmatpush2.bf16.msra.mxu0 0
  %433 = vmatprep.subr.bf16.mxu0 0
  %434 = vmatpush2.bf16.msra.mxu0 0
  %435 = vmatprep.subr.bf16.mxu0 0
  %436 = vmatpush2.bf16.msra.mxu0 0
  %437 = vmatprep.subr.bf16.mxu0 0
  %438 = vmatpush2.bf16.msra.mxu0 0
  %439 = vmatprep.mubr.bf16.mxu0 0
  %440 = vmatmul.mubr.bf16.gmra.mxu0 %v402
  %v441 = vpop.f32.mrf.mxu0
  %v442 = vadd.f32 %v396, %v441
  %v443 = vpop.f32.mrf.mxu0
  %v444 = vpop.f32.mrf.mxu0
  %v445 = vpop.f32.mrf.mxu0
  %446 = vdwg.mxu0
  %447 = vrot.lane.b32.xlu0 %v120, 112
  %v448 = vpop.permute.xlu0 %447
  %449 = vrot.lane.b32.xlu0 %v120, 80
  %v450 = vpop.permute.xlu0 %449
  %v452 = vsel %vm124, %v448, 0
  %v455 = vsel %vm124, %v450, 0
  %457 = vmatprep.subr.bf16.mxu0 0
  %458 = vmatpush1.bf16.xpose.msra.mxu0 0
  %459 = vmatprep.subr.bf16.mxu0 0
  %460 = vmatpush1.bf16.xpose.msra.mxu0 0
  %461 = vmatprep.subr.bf16.mxu0 0
  %462 = vmatpush1.bf16.xpose.msra.mxu0 0
  %463 = vmatprep.subr.bf16.mxu0 0
  %464 = vmatpush1.bf16.xpose.msra.mxu0 0
  %465 = vmatprep.subr.bf16.mxu0 0
  %466 = vmatpush1.bf16.xpose.msra.mxu0 0
  %467 = vmatprep.subr.bf16.mxu0 0
  %468 = vmatpush1.bf16.xpose.msra.mxu0 0
  %469 = vmatprep.subr.bf16.mxu0 0
  %470 = vmatpush1.bf16.xpose.msra.mxu0 0
  %471 = vmatprep.subr.bf16.mxu0 0
  %472 = vmatpush1.bf16.xpose.msra.mxu0 %v455
  %473 = vmatprep.subr.bf16.mxu0 0
  %474 = vmatpush2.bf16.xpose.msra.mxu0 0
  %475 = vmatprep.subr.bf16.mxu0 0
  %476 = vmatpush2.bf16.xpose.msra.mxu0 0
  %477 = vmatprep.subr.bf16.mxu0 0
  %478 = vmatpush2.bf16.xpose.msra.mxu0 0
  %479 = vmatprep.subr.bf16.mxu0 0
  %480 = vmatpush2.bf16.xpose.msra.mxu0 0
  %481 = vmatprep.subr.bf16.mxu0 0
  %482 = vmatpush2.bf16.xpose.msra.mxu0 0
  %483 = vmatprep.subr.bf16.mxu0 0
  %484 = vmatpush2.bf16.xpose.msra.mxu0 0
  %485 = vmatprep.subr.bf16.mxu0 0
  %486 = vmatpush2.bf16.xpose.msra.mxu0 0
  %487 = vmatprep.subr.bf16.mxu0 0
  %488 = vmatpush2.bf16.xpose.msra.mxu0 0
  %489 = vmatprep.mubr.bf16.mxu0 0
  %490 = vmatmul.mubr.bf16.gmra.mxu0 %v452
  %v491 = vpop.f32.mrf.mxu0
  %v492 = vadd.f32 0.0, %v491
  %v493 = vpop.f32.mrf.mxu0
  %v494 = vpop.f32.mrf.mxu0
  %v495 = vpop.f32.mrf.mxu0
  %496 = vdwg.mxu0
  %v497 = vmul.f32 %v492, 0.35355338
  %v498 = vadd.f32 %v497, %v175
  %v499 = vsel %vm124, %v498, -inf
  %500 = vmax.xlane.f32.xlu0 %v499
  %v501 = vpop.xlane.xlu0 %500
  %v502 = vsub.f32 %v498, %v501
  %v503 = vmul.f32 %v502, 1.442695
  %v504 = vpow.pop %v503
  %v505 = vsel %vm124, %v504, 0.0
  %506 = vadd.xlane.f32.xlu0 %v505
  %v507 = vpop.xlane.xlu0 %506
  %v508 = vrcp.pop %v507
  %v509 = vmul.f32 %v504, %v508
  %v510 = vpack.c.bf16 %v509, %v509
  %511 = vrot.lane.b32.xlu0 %v120, 48
  %v512 = vpop.permute.xlu0 %511
  %v514 = vsel %vm124, %v510, 0
  %v517 = vsel %vm194, %v512, 0
  %519 = vmatprep.subr.bf16.mxu0 0
  %520 = vmatpush1.bf16.msra.mxu0 0
  %521 = vmatprep.subr.bf16.mxu0 0
  %522 = vmatpush1.bf16.msra.mxu0 0
  %523 = vmatprep.subr.bf16.mxu0 0
  %524 = vmatpush1.bf16.msra.mxu0 0
  %525 = vmatprep.subr.bf16.mxu0 0
  %526 = vmatpush1.bf16.msra.mxu0 0
  %527 = vmatprep.subr.bf16.mxu0 0
  %528 = vmatpush1.bf16.msra.mxu0 0
  %529 = vmatprep.subr.bf16.mxu0 0
  %530 = vmatpush1.bf16.msra.mxu0 0
  %531 = vmatprep.subr.bf16.mxu0 0
  %532 = vmatpush1.bf16.msra.mxu0 0
  %533 = vmatprep.subr.bf16.mxu0 0
  %534 = vmatpush1.bf16.msra.mxu0 %v517
  %535 = vmatprep.subr.bf16.mxu0 0
  %536 = vmatpush2.bf16.msra.mxu0 0
  %537 = vmatprep.subr.bf16.mxu0 0
  %538 = vmatpush2.bf16.msra.mxu0 0
  %539 = vmatprep.subr.bf16.mxu0 0
  %540 = vmatpush2.bf16.msra.mxu0 0
  %541 = vmatprep.subr.bf16.mxu0 0
  %542 = vmatpush2.bf16.msra.mxu0 0
  %543 = vmatprep.subr.bf16.mxu0 0
  %544 = vmatpush2.bf16.msra.mxu0 0
  %545 = vmatprep.subr.bf16.mxu0 0
  %546 = vmatpush2.bf16.msra.mxu0 0
  %547 = vmatprep.subr.bf16.mxu0 0
  %548 = vmatpush2.bf16.msra.mxu0 0
  %549 = vmatprep.subr.bf16.mxu0 0
  %550 = vmatpush2.bf16.msra.mxu0 0
  %551 = vmatprep.mubr.bf16.mxu0 0
  %552 = vmatmul.mubr.bf16.gmra.mxu0 %v514
  %v553 = vpop.f32.mrf.mxu0
  %v554 = vadd.f32 0.0, %v553
  %v555 = vpop.f32.mrf.mxu0
  %v556 = vpop.f32.mrf.mxu0
  %v557 = vpop.f32.mrf.mxu0
  %558 = vdwg.mxu0
  %v559 = vpack.c.bf16 %v554, %v554
  %s560 = scalar_lea.vmem %s4, 8
  %v561 = vld [vmem:[%s560] sm:$0xf]
  %v563 = vsel %vm124, %v559, 0
  %v566 = vsel %vm194, %v561, 0
  %568 = vmatprep.subr.bf16.mxu0 0
  %569 = vmatpush1.bf16.msra.mxu0 0
  %570 = vmatprep.subr.bf16.mxu0 0
  %571 = vmatpush1.bf16.msra.mxu0 0
  %572 = vmatprep.subr.bf16.mxu0 0
  %573 = vmatpush1.bf16.msra.mxu0 0
  %574 = vmatprep.subr.bf16.mxu0 0
  %575 = vmatpush1.bf16.msra.mxu0 0
  %576 = vmatprep.subr.bf16.mxu0 0
  %577 = vmatpush1.bf16.msra.mxu0 0
  %578 = vmatprep.subr.bf16.mxu0 0
  %579 = vmatpush1.bf16.msra.mxu0 0
  %580 = vmatprep.subr.bf16.mxu0 0
  %581 = vmatpush1.bf16.msra.mxu0 0
  %582 = vmatprep.subr.bf16.mxu0 0
  %583 = vmatpush1.bf16.msra.mxu0 %v566
  %584 = vmatprep.subr.bf16.mxu0 0
  %585 = vmatpush2.bf16.msra.mxu0 0
  %586 = vmatprep.subr.bf16.mxu0 0
  %587 = vmatpush2.bf16.msra.mxu0 0
  %588 = vmatprep.subr.bf16.mxu0 0
  %589 = vmatpush2.bf16.msra.mxu0 0
  %590 = vmatprep.subr.bf16.mxu0 0
  %591 = vmatpush2.bf16.msra.mxu0 0
  %592 = vmatprep.subr.bf16.mxu0 0
  %593 = vmatpush2.bf16.msra.mxu0 0
  %594 = vmatprep.subr.bf16.mxu0 0
  %595 = vmatpush2.bf16.msra.mxu0 0
  %596 = vmatprep.subr.bf16.mxu0 0
  %597 = vmatpush2.bf16.msra.mxu0 0
  %598 = vmatprep.subr.bf16.mxu0 0
  %599 = vmatpush2.bf16.msra.mxu0 0
  %600 = vmatprep.mubr.bf16.mxu0 0
  %601 = vmatmul.mubr.bf16.gmra.mxu0 %v563
  %v602 = vpop.f32.mrf.mxu0
  %v603 = vadd.f32 0.0, %v602
  %v604 = vpop.f32.mrf.mxu0
  %v605 = vpop.f32.mrf.mxu0
  %v606 = vpop.f32.mrf.mxu0
  %607 = vdwg.mxu0
  %v608 = vadd.f32 %v442, %v603
  %609 = vrot.lane.b32.xlu0 %v120, 104
  %v610 = vpop.permute.xlu0 %609
  %611 = vrot.lane.b32.xlu0 %v120, 72
  %v612 = vpop.permute.xlu0 %611
  %v614 = vsel %vm124, %v610, 0
  %v617 = vsel %vm124, %v612, 0
  %619 = vmatprep.subr.bf16.mxu0 0
  %620 = vmatpush1.bf16.xpose.msra.mxu0 0
  %621 = vmatprep.subr.bf16.mxu0 0
  %622 = vmatpush1.bf16.xpose.msra.mxu0 0
  %623 = vmatprep.subr.bf16.mxu0 0
  %624 = vmatpush1.bf16.xpose.msra.mxu0 0
  %625 = vmatprep.subr.bf16.mxu0 0
  %626 = vmatpush1.bf16.xpose.msra.mxu0 0
  %627 = vmatprep.subr.bf16.mxu0 0
  %628 = vmatpush1.bf16.xpose.msra.mxu0 0
  %629 = vmatprep.subr.bf16.mxu0 0
  %630 = vmatpush1.bf16.xpose.msra.mxu0 0
  %631 = vmatprep.subr.bf16.mxu0 0
  %632 = vmatpush1.bf16.xpose.msra.mxu0 0
  %633 = vmatprep.subr.bf16.mxu0 0
  %634 = vmatpush1.bf16.xpose.msra.mxu0 %v617
  %635 = vmatprep.subr.bf16.mxu0 0
  %636 = vmatpush2.bf16.xpose.msra.mxu0 0
  %637 = vmatprep.subr.bf16.mxu0 0
  %638 = vmatpush2.bf16.xpose.msra.mxu0 0
  %639 = vmatprep.subr.bf16.mxu0 0
  %640 = vmatpush2.bf16.xpose.msra.mxu0 0
  %641 = vmatprep.subr.bf16.mxu0 0
  %642 = vmatpush2.bf16.xpose.msra.mxu0 0
  %643 = vmatprep.subr.bf16.mxu0 0
  %644 = vmatpush2.bf16.xpose.msra.mxu0 0
  %645 = vmatprep.subr.bf16.mxu0 0
  %646 = vmatpush2.bf16.xpose.msra.mxu0 0
  %647 = vmatprep.subr.bf16.mxu0 0
  %648 = vmatpush2.bf16.xpose.msra.mxu0 0
  %649 = vmatprep.subr.bf16.mxu0 0
  %650 = vmatpush2.bf16.xpose.msra.mxu0 0
  %651 = vmatprep.mubr.bf16.mxu0 0
  %652 = vmatmul.mubr.bf16.gmra.mxu0 %v614
  %v653 = vpop.f32.mrf.mxu0
  %v654 = vadd.f32 0.0, %v653
  %v655 = vpop.f32.mrf.mxu0
  %v656 = vpop.f32.mrf.mxu0
  %v657 = vpop.f32.mrf.mxu0
  %658 = vdwg.mxu0
  %v659 = vmul.f32 %v654, 0.35355338
  %v660 = vadd.f32 %v659, %v175
  %v661 = vsel %vm124, %v660, -inf
  %662 = vmax.xlane.f32.xlu0 %v661
  %v663 = vpop.xlane.xlu0 %662
  %v664 = vsub.f32 %v660, %v663
  %v665 = vmul.f32 %v664, 1.442695
  %v666 = vpow.pop %v665
  %v667 = vsel %vm124, %v666, 0.0
  %668 = vadd.xlane.f32.xlu0 %v667
  %v669 = vpop.xlane.xlu0 %668
  %v670 = vrcp.pop %v669
  %v671 = vmul.f32 %v666, %v670
  %v672 = vpack.c.bf16 %v671, %v671
  %673 = vrot.lane.b32.xlu0 %v120, 40
  %v674 = vpop.permute.xlu0 %673
  %v676 = vsel %vm124, %v672, 0
  %v679 = vsel %vm194, %v674, 0
  %681 = vmatprep.subr.bf16.mxu0 0
  %682 = vmatpush1.bf16.msra.mxu0 0
  %683 = vmatprep.subr.bf16.mxu0 0
  %684 = vmatpush1.bf16.msra.mxu0 0
  %685 = vmatprep.subr.bf16.mxu0 0
  %686 = vmatpush1.bf16.msra.mxu0 0
  %687 = vmatprep.subr.bf16.mxu0 0
  %688 = vmatpush1.bf16.msra.mxu0 0
  %689 = vmatprep.subr.bf16.mxu0 0
  %690 = vmatpush1.bf16.msra.mxu0 0
  %691 = vmatprep.subr.bf16.mxu0 0
  %692 = vmatpush1.bf16.msra.mxu0 0
  %693 = vmatprep.subr.bf16.mxu0 0
  %694 = vmatpush1.bf16.msra.mxu0 0
  %695 = vmatprep.subr.bf16.mxu0 0
  %696 = vmatpush1.bf16.msra.mxu0 %v679
  %697 = vmatprep.subr.bf16.mxu0 0
  %698 = vmatpush2.bf16.msra.mxu0 0
  %699 = vmatprep.subr.bf16.mxu0 0
  %700 = vmatpush2.bf16.msra.mxu0 0
  %701 = vmatprep.subr.bf16.mxu0 0
  %702 = vmatpush2.bf16.msra.mxu0 0
  %703 = vmatprep.subr.bf16.mxu0 0
  %704 = vmatpush2.bf16.msra.mxu0 0
  %705 = vmatprep.subr.bf16.mxu0 0
  %706 = vmatpush2.bf16.msra.mxu0 0
  %707 = vmatprep.subr.bf16.mxu0 0
  %708 = vmatpush2.bf16.msra.mxu0 0
  %709 = vmatprep.subr.bf16.mxu0 0
  %710 = vmatpush2.bf16.msra.mxu0 0
  %711 = vmatprep.subr.bf16.mxu0 0
  %712 = vmatpush2.bf16.msra.mxu0 0
  %713 = vmatprep.mubr.bf16.mxu0 0
  %714 = vmatmul.mubr.bf16.gmra.mxu0 %v676
  %v715 = vpop.f32.mrf.mxu0
  %v716 = vadd.f32 0.0, %v715
  %v717 = vpop.f32.mrf.mxu0
  %v718 = vpop.f32.mrf.mxu0
  %v719 = vpop.f32.mrf.mxu0
  %720 = vdwg.mxu0
  %v721 = vpack.c.bf16 %v716, %v716
  %s722 = scalar_lea.vmem %s4, 12
  %v723 = vld [vmem:[%s722] sm:$0xf]
  %v725 = vsel %vm124, %v721, 0
  %v728 = vsel %vm194, %v723, 0
  %730 = vmatprep.subr.bf16.mxu0 0
  %731 = vmatpush1.bf16.msra.mxu0 0
  %732 = vmatprep.subr.bf16.mxu0 0
  %733 = vmatpush1.bf16.msra.mxu0 0
  %734 = vmatprep.subr.bf16.mxu0 0
  %735 = vmatpush1.bf16.msra.mxu0 0
  %736 = vmatprep.subr.bf16.mxu0 0
  %737 = vmatpush1.bf16.msra.mxu0 0
  %738 = vmatprep.subr.bf16.mxu0 0
  %739 = vmatpush1.bf16.msra.mxu0 0
  %740 = vmatprep.subr.bf16.mxu0 0
  %741 = vmatpush1.bf16.msra.mxu0 0
  %742 = vmatprep.subr.bf16.mxu0 0
  %743 = vmatpush1.bf16.msra.mxu0 0
  %744 = vmatprep.subr.bf16.mxu0 0
  %745 = vmatpush1.bf16.msra.mxu0 %v728
  %746 = vmatprep.subr.bf16.mxu0 0
  %747 = vmatpush2.bf16.msra.mxu0 0
  %748 = vmatprep.subr.bf16.mxu0 0
  %749 = vmatpush2.bf16.msra.mxu0 0
  %750 = vmatprep.subr.bf16.mxu0 0
  %751 = vmatpush2.bf16.msra.mxu0 0
  %752 = vmatprep.subr.bf16.mxu0 0
  %753 = vmatpush2.bf16.msra.mxu0 0
  %754 = vmatprep.subr.bf16.mxu0 0
  %755 = vmatpush2.bf16.msra.mxu0 0
  %756 = vmatprep.subr.bf16.mxu0 0
  %757 = vmatpush2.bf16.msra.mxu0 0
  %758 = vmatprep.subr.bf16.mxu0 0
  %759 = vmatpush2.bf16.msra.mxu0 0
  %760 = vmatprep.subr.bf16.mxu0 0
  %761 = vmatpush2.bf16.msra.mxu0 0
  %762 = vmatprep.mubr.bf16.mxu0 0
  %763 = vmatmul.mubr.bf16.gmra.mxu0 %v725
  %v764 = vpop.f32.mrf.mxu0
  %v765 = vadd.f32 0.0, %v764
  %v766 = vpop.f32.mrf.mxu0
  %v767 = vpop.f32.mrf.mxu0
  %v768 = vpop.f32.mrf.mxu0
  %769 = vdwg.mxu0
  %v770 = vadd.f32 %v608, %v765
  %771 = vst.msk [vmem:[#allocation2] sm:$0xff] %vm75, %v770
  %v772 = vpack.c.bf16 %v117, %v117
  %774 = vrot.lane.b32.xlu0 %v772, 96
  %v775 = vpop.permute.xlu0 %774
  %v777 = vsel %vm124, %v772, 0
  %v780 = vsel %vm124, %v775, 0
  %782 = vmatprep.subr.bf16.mxu0 0
  %783 = vmatpush1.bf16.xpose.msra.mxu0 0
  %784 = vmatprep.subr.bf16.mxu0 0
  %785 = vmatpush1.bf16.xpose.msra.mxu0 0
  %786 = vmatprep.subr.bf16.mxu0 0
  %787 = vmatpush1.bf16.xpose.msra.mxu0 0
  %788 = vmatprep.subr.bf16.mxu0 0
  %789 = vmatpush1.bf16.xpose.msra.mxu0 0
  %790 = vmatprep.subr.bf16.mxu0 0
  %791 = vmatpush1.bf16.xpose.msra.mxu0 0
  %792 = vmatprep.subr.bf16.mxu0 0
  %793 = vmatpush1.bf16.xpose.msra.mxu0 0
  %794 = vmatprep.subr.bf16.mxu0 0
  %795 = vmatpush1.bf16.xpose.msra.mxu0 0
  %796 = vmatprep.subr.bf16.mxu0 0
  %797 = vmatpush1.bf16.xpose.msra.mxu0 %v780
  %798 = vmatprep.subr.bf16.mxu0 0
  %799 = vmatpush2.bf16.xpose.msra.mxu0 0
  %800 = vmatprep.subr.bf16.mxu0 0
  %801 = vmatpush2.bf16.xpose.msra.mxu0 0
  %802 = vmatprep.subr.bf16.mxu0 0
  %803 = vmatpush2.bf16.xpose.msra.mxu0 0
  %804 = vmatprep.subr.bf16.mxu0 0
  %805 = vmatpush2.bf16.xpose.msra.mxu0 0
  %806 = vmatprep.subr.bf16.mxu0 0
  %807 = vmatpush2.bf16.xpose.msra.mxu0 0
  %808 = vmatprep.subr.bf16.mxu0 0
  %809 = vmatpush2.bf16.xpose.msra.mxu0 0
  %810 = vmatprep.subr.bf16.mxu0 0
  %811 = vmatpush2.bf16.xpose.msra.mxu0 0
  %812 = vmatprep.subr.bf16.mxu0 0
  %813 = vmatpush2.bf16.xpose.msra.mxu0 0
  %814 = vmatprep.mubr.bf16.mxu0 0
  %815 = vmatmul.mubr.bf16.gmra.mxu0 %v777
  %v816 = vpop.f32.mrf.mxu0
  %v817 = vadd.f32 0.0, %v816
  %v818 = vpop.f32.mrf.mxu0
  %v819 = vpop.f32.mrf.mxu0
  %v820 = vpop.f32.mrf.mxu0
  %821 = vdwg.mxu0
  %v822 = vmul.f32 %v817, 0.35355338
  %v823 = vlaneseq
  %v824 = vshrl.u32 %v823, 7
  %v825 = vsub.s32 1, %v824
  %v826 = vrot.slane %v50, %v825
  %v827 = vadd.f32 %v822, %v826
  %v828 = vsel %vm124, %v827, -inf
  %829 = vmax.xlane.f32.xlu0 %v828
  %v830 = vpop.xlane.xlu0 %829
  %v831 = vsub.f32 %v827, %v830
  %v832 = vmul.f32 %v831, 1.442695
  %v833 = vpow.pop %v832
  %v834 = vsel %vm124, %v833, 0.0
  %835 = vadd.xlane.f32.xlu0 %v834
  %v836 = vpop.xlane.xlu0 %835
  %v837 = vrcp.pop %v836
  %v838 = vmul.f32 %v833, %v837
  %v839 = vpack.c.bf16 %v838, %v838
  %840 = vrot.lane.b32.xlu0 %v772, 64
  %v841 = vpop.permute.xlu0 %840
  %v843 = vsel %vm124, %v839, 0
  %v846 = vsel %vm194, %v841, 0
  %848 = vmatprep.subr.bf16.mxu0 0
  %849 = vmatpush1.bf16.msra.mxu0 0
  %850 = vmatprep.subr.bf16.mxu0 0
  %851 = vmatpush1.bf16.msra.mxu0 0
  %852 = vmatprep.subr.bf16.mxu0 0
  %853 = vmatpush1.bf16.msra.mxu0 0
  %854 = vmatprep.subr.bf16.mxu0 0
  %855 = vmatpush1.bf16.msra.mxu0 0
  %856 = vmatprep.subr.bf16.mxu0 0
  %857 = vmatpush1.bf16.msra.mxu0 0
  %858 = vmatprep.subr.bf16.mxu0 0
  %859 = vmatpush1.bf16.msra.mxu0 0
  %860 = vmatprep.subr.bf16.mxu0 0
  %861 = vmatpush1.bf16.msra.mxu0 0
  %862 = vmatprep.subr.bf16.mxu0 0
  %863 = vmatpush1.bf16.msra.mxu0 %v846
  %864 = vmatprep.subr.bf16.mxu0 0
  %865 = vmatpush2.bf16.msra.mxu0 0
  %866 = vmatprep.subr.bf16.mxu0 0
  %867 = vmatpush2.bf16.msra.mxu0 0
  %868 = vmatprep.subr.bf16.mxu0 0
  %869 = vmatpush2.bf16.msra.mxu0 0
  %870 = vmatprep.subr.bf16.mxu0 0
  %871 = vmatpush2.bf16.msra.mxu0 0
  %872 = vmatprep.subr.bf16.mxu0 0
  %873 = vmatpush2.bf16.msra.mxu0 0
  %874 = vmatprep.subr.bf16.mxu0 0
  %875 = vmatpush2.bf16.msra.mxu0 0
  %876 = vmatprep.subr.bf16.mxu0 0
  %877 = vmatpush2.bf16.msra.mxu0 0
  %878 = vmatprep.subr.bf16.mxu0 0
  %879 = vmatpush2.bf16.msra.mxu0 0
  %880 = vmatprep.mubr.bf16.mxu0 0
  %881 = vmatmul.mubr.bf16.gmra.mxu0 %v843
  %v882 = vpop.f32.mrf.mxu0
  %v883 = vadd.f32 0.0, %v882
  %v884 = vpop.f32.mrf.mxu0
  %v885 = vpop.f32.mrf.mxu0
  %v886 = vpop.f32.mrf.mxu0
  %887 = vdwg.mxu0
  %v888 = vpack.c.bf16 %v883, %v883
  %v889 = vld [vmem:[%s4] sm:$0xf]
  %890 = vrot.lane.b32.xlu0 %v772, 120
  %v891 = vpop.permute.xlu0 %890
  %892 = vrot.lane.b32.xlu0 %v772, 88
  %v893 = vpop.permute.xlu0 %892
  %v895 = vsel %vm124, %v891, 0
  %v898 = vsel %vm124, %v893, 0
  %900 = vmatprep.subr.bf16.mxu0 0
  %901 = vmatpush1.bf16.xpose.msra.mxu0 0
  %902 = vmatprep.subr.bf16.mxu0 0
  %903 = vmatpush1.bf16.xpose.msra.mxu0 0
  %904 = vmatprep.subr.bf16.mxu0 0
  %905 = vmatpush1.bf16.xpose.msra.mxu0 0
  %906 = vmatprep.subr.bf16.mxu0 0
  %907 = vmatpush1.bf16.xpose.msra.mxu0 0
  %908 = vmatprep.subr.bf16.mxu0 0
  %909 = vmatpush1.bf16.xpose.msra.mxu0 0
  %910 = vmatprep.subr.bf16.mxu0 0
  %911 = vmatpush1.bf16.xpose.msra.mxu0 0
  %912 = vmatprep.subr.bf16.mxu0 0
  %913 = vmatpush1.bf16.xpose.msra.mxu0 0
  %914 = vmatprep.subr.bf16.mxu0 0
  %915 = vmatpush1.bf16.xpose.msra.mxu0 %v898
  %916 = vmatprep.subr.bf16.mxu0 0
  %917 = vmatpush2.bf16.xpose.msra.mxu0 0
  %918 = vmatprep.subr.bf16.mxu0 0
  %919 = vmatpush2.bf16.xpose.msra.mxu0 0
  %920 = vmatprep.subr.bf16.mxu0 0
  %921 = vmatpush2.bf16.xpose.msra.mxu0 0
  %922 = vmatprep.subr.bf16.mxu0 0
  %923 = vmatpush2.bf16.xpose.msra.mxu0 0
  %924 = vmatprep.subr.bf16.mxu0 0
  %925 = vmatpush2.bf16.xpose.msra.mxu0 0
  %926 = vmatprep.subr.bf16.mxu0 0
  %927 = vmatpush2.bf16.xpose.msra.mxu0 0
  %928 = vmatprep.subr.bf16.mxu0 0
  %929 = vmatpush2.bf16.xpose.msra.mxu0 0
  %930 = vmatprep.subr.bf16.mxu0 0
  %931 = vmatpush2.bf16.xpose.msra.mxu0 0
  %932 = vmatprep.mubr.bf16.mxu0 0
  %933 = vmatmul.mubr.bf16.gmra.mxu0 %v895
  %v934 = vpop.f32.mrf.mxu0
  %v935 = vadd.f32 0.0, %v934
  %v936 = vpop.f32.mrf.mxu0
  %v937 = vpop.f32.mrf.mxu0
  %v938 = vpop.f32.mrf.mxu0
  %939 = vdwg.mxu0
  %v940 = vmul.f32 %v935, 0.35355338
  %v941 = vadd.f32 %v940, %v826
  %v942 = vsel %vm124, %v941, -inf
  %943 = vmax.xlane.f32.xlu0 %v942
  %v944 = vpop.xlane.xlu0 %943
  %v945 = vsub.f32 %v941, %v944
  %v946 = vmul.f32 %v945, 1.442695
  %v947 = vpow.pop %v946
  %v948 = vsel %vm124, %v947, 0.0
  %949 = vadd.xlane.f32.xlu0 %v948
  %v950 = vpop.xlane.xlu0 %949
  %v951 = vrcp.pop %v950
  %v952 = vmul.f32 %v947, %v951
  %v953 = vpack.c.bf16 %v952, %v952
  %954 = vrot.lane.b32.xlu0 %v772, 56
  %v955 = vpop.permute.xlu0 %954
  %v957 = vsel %vm124, %v953, 0
  %v960 = vsel %vm194, %v955, 0
  %962 = vmatprep.subr.bf16.mxu0 0
  %963 = vmatpush1.bf16.msra.mxu0 0
  %964 = vmatprep.subr.bf16.mxu0 0
  %965 = vmatpush1.bf16.msra.mxu0 0
  %966 = vmatprep.subr.bf16.mxu0 0
  %967 = vmatpush1.bf16.msra.mxu0 0
  %968 = vmatprep.subr.bf16.mxu0 0
  %969 = vmatpush1.bf16.msra.mxu0 0
  %970 = vmatprep.subr.bf16.mxu0 0
  %971 = vmatpush1.bf16.msra.mxu0 0
  %972 = vmatprep.subr.bf16.mxu0 0
  %973 = vmatpush1.bf16.msra.mxu0 0
  %974 = vmatprep.subr.bf16.mxu0 0
  %975 = vmatpush1.bf16.msra.mxu0 0
  %976 = vmatprep.subr.bf16.mxu0 0
  %977 = vmatpush1.bf16.msra.mxu0 %v960
  %978 = vmatprep.subr.bf16.mxu0 0
  %979 = vmatpush2.bf16.msra.mxu0 0
  %980 = vmatprep.subr.bf16.mxu0 0
  %981 = vmatpush2.bf16.msra.mxu0 0
  %982 = vmatprep.subr.bf16.mxu0 0
  %983 = vmatpush2.bf16.msra.mxu0 0
  %984 = vmatprep.subr.bf16.mxu0 0
  %985 = vmatpush2.bf16.msra.mxu0 0
  %986 = vmatprep.subr.bf16.mxu0 0
  %987 = vmatpush2.bf16.msra.mxu0 0
  %988 = vmatprep.subr.bf16.mxu0 0
  %989 = vmatpush2.bf16.msra.mxu0 0
  %990 = vmatprep.subr.bf16.mxu0 0
  %991 = vmatpush2.bf16.msra.mxu0 0
  %992 = vmatprep.subr.bf16.mxu0 0
  %993 = vmatpush2.bf16.msra.mxu0 0
  %994 = vmatprep.mubr.bf16.mxu0 0
  %995 = vmatmul.mubr.bf16.gmra.mxu0 %v957
  %v996 = vpop.f32.mrf.mxu0
  %v997 = vadd.f32 0.0, %v996
  %v998 = vpop.f32.mrf.mxu0
  %v999 = vpop.f32.mrf.mxu0
  %v1000 = vpop.f32.mrf.mxu0
  %1001 = vdwg.mxu0
  %v1002 = vpack.c.bf16 %v997, %v997
  %v1003 = vld [vmem:[%s353] sm:$0xf]
  %v1005 = vsel %vm124, %v1002, 0
  %v1008 = vsel %vm194, %v1003, 0
  %1010 = vmatprep.subr.bf16.mxu0 0
  %1011 = vmatpush1.bf16.msra.mxu0 0
  %1012 = vmatprep.subr.bf16.mxu0 0
  %1013 = vmatpush1.bf16.msra.mxu0 0
  %1014 = vmatprep.subr.bf16.mxu0 0
  %1015 = vmatpush1.bf16.msra.mxu0 0
  %1016 = vmatprep.subr.bf16.mxu0 0
  %1017 = vmatpush1.bf16.msra.mxu0 0
  %1018 = vmatprep.subr.bf16.mxu0 0
  %1019 = vmatpush1.bf16.msra.mxu0 0
  %1020 = vmatprep.subr.bf16.mxu0 0
  %1021 = vmatpush1.bf16.msra.mxu0 0
  %1022 = vmatprep.subr.bf16.mxu0 0
  %1023 = vmatpush1.bf16.msra.mxu0 0
  %1024 = vmatprep.subr.bf16.mxu0 0
  %1025 = vmatpush1.bf16.msra.mxu0 %v1008
  %1026 = vmatprep.subr.bf16.mxu0 0
  %1027 = vmatpush2.bf16.msra.mxu0 0
  %1028 = vmatprep.subr.bf16.mxu0 0
  %1029 = vmatpush2.bf16.msra.mxu0 0
  %1030 = vmatprep.subr.bf16.mxu0 0
  %1031 = vmatpush2.bf16.msra.mxu0 0
  %1032 = vmatprep.subr.bf16.mxu0 0
  %1033 = vmatpush2.bf16.msra.mxu0 0
  %1034 = vmatprep.subr.bf16.mxu0 0
  %1035 = vmatpush2.bf16.msra.mxu0 0
  %1036 = vmatprep.subr.bf16.mxu0 0
  %1037 = vmatpush2.bf16.msra.mxu0 0
  %1038 = vmatprep.subr.bf16.mxu0 0
  %1039 = vmatpush2.bf16.msra.mxu0 0
  %1040 = vmatprep.subr.bf16.mxu0 0
  %1041 = vmatpush2.bf16.msra.mxu0 0
  %1042 = vmatprep.mubr.bf16.mxu0 0
  %1043 = vmatmul.mubr.bf16.gmra.mxu0 %v1005
  %v1044 = vpop.f32.mrf.mxu0
  %v1045 = vadd.f32 0.0, %v1044
  %v1046 = vpop.f32.mrf.mxu0
  %v1047 = vpop.f32.mrf.mxu0
  %v1048 = vpop.f32.mrf.mxu0
  %1049 = vdwg.mxu0
  %v1051 = vsel %vm124, %v888, 0
  %v1054 = vsel %vm194, %v889, 0
  %1056 = vmatprep.subr.bf16.mxu0 0
  %1057 = vmatpush1.bf16.msra.mxu0 0
  %1058 = vmatprep.subr.bf16.mxu0 0
  %1059 = vmatpush1.bf16.msra.mxu0 0
  %1060 = vmatprep.subr.bf16.mxu0 0
  %1061 = vmatpush1.bf16.msra.mxu0 0
  %1062 = vmatprep.subr.bf16.mxu0 0
  %1063 = vmatpush1.bf16.msra.mxu0 0
  %1064 = vmatprep.subr.bf16.mxu0 0
  %1065 = vmatpush1.bf16.msra.mxu0 0
  %1066 = vmatprep.subr.bf16.mxu0 0
  %1067 = vmatpush1.bf16.msra.mxu0 0
  %1068 = vmatprep.subr.bf16.mxu0 0
  %1069 = vmatpush1.bf16.msra.mxu0 0
  %1070 = vmatprep.subr.bf16.mxu0 0
  %1071 = vmatpush1.bf16.msra.mxu0 %v1054
  %1072 = vmatprep.subr.bf16.mxu0 0
  %1073 = vmatpush2.bf16.msra.mxu0 0
  %1074 = vmatprep.subr.bf16.mxu0 0
  %1075 = vmatpush2.bf16.msra.mxu0 0
  %1076 = vmatprep.subr.bf16.mxu0 0
  %1077 = vmatpush2.bf16.msra.mxu0 0
  %1078 = vmatprep.subr.bf16.mxu0 0
  %1079 = vmatpush2.bf16.msra.mxu0 0
  %1080 = vmatprep.subr.bf16.mxu0 0
  %1081 = vmatpush2.bf16.msra.mxu0 0
  %1082 = vmatprep.subr.bf16.mxu0 0
  %1083 = vmatpush2.bf16.msra.mxu0 0
  %1084 = vmatprep.subr.bf16.mxu0 0
  %1085 = vmatpush2.bf16.msra.mxu0 0
  %1086 = vmatprep.subr.bf16.mxu0 0
  %1087 = vmatpush2.bf16.msra.mxu0 0
  %1088 = vmatprep.mubr.bf16.mxu0 0
  %1089 = vmatmul.mubr.bf16.gmra.mxu0 %v1051
  %v1090 = vpop.f32.mrf.mxu0
  %v1091 = vadd.f32 %v1045, %v1090
  %v1092 = vpop.f32.mrf.mxu0
  %v1093 = vpop.f32.mrf.mxu0
  %v1094 = vpop.f32.mrf.mxu0
  %1095 = vdwg.mxu0
  %1096 = vrot.lane.b32.xlu0 %v772, 112
  %v1097 = vpop.permute.xlu0 %1096
  %1098 = vrot.lane.b32.xlu0 %v772, 80
  %v1099 = vpop.permute.xlu0 %1098
  %v1101 = vsel %vm124, %v1097, 0
  %v1104 = vsel %vm124, %v1099, 0
  %1106 = vmatprep.subr.bf16.mxu0 0
  %1107 = vmatpush1.bf16.xpose.msra.mxu0 0
  %1108 = vmatprep.subr.bf16.mxu0 0
  %1109 = vmatpush1.bf16.xpose.msra.mxu0 0
  %1110 = vmatprep.subr.bf16.mxu0 0
  %1111 = vmatpush1.bf16.xpose.msra.mxu0 0
  %1112 = vmatprep.subr.bf16.mxu0 0
  %1113 = vmatpush1.bf16.xpose.msra.mxu0 0
  %1114 = vmatprep.subr.bf16.mxu0 0
  %1115 = vmatpush1.bf16.xpose.msra.mxu0 0
  %1116 = vmatprep.subr.bf16.mxu0 0
  %1117 = vmatpush1.bf16.xpose.msra.mxu0 0
  %1118 = vmatprep.subr.bf16.mxu0 0
  %1119 = vmatpush1.bf16.xpose.msra.mxu0 0
  %1120 = vmatprep.subr.bf16.mxu0 0
  %1121 = vmatpush1.bf16.xpose.msra.mxu0 %v1104
  %1122 = vmatprep.subr.bf16.mxu0 0
  %1123 = vmatpush2.bf16.xpose.msra.mxu0 0
  %1124 = vmatprep.subr.bf16.mxu0 0
  %1125 = vmatpush2.bf16.xpose.msra.mxu0 0
  %1126 = vmatprep.subr.bf16.mxu0 0
  %1127 = vmatpush2.bf16.xpose.msra.mxu0 0
  %1128 = vmatprep.subr.bf16.mxu0 0
  %1129 = vmatpush2.bf16.xpose.msra.mxu0 0
  %1130 = vmatprep.subr.bf16.mxu0 0
  %1131 = vmatpush2.bf16.xpose.msra.mxu0 0
  %1132 = vmatprep.subr.bf16.mxu0 0
  %1133 = vmatpush2.bf16.xpose.msra.mxu0 0
  %1134 = vmatprep.subr.bf16.mxu0 0
  %1135 = vmatpush2.bf16.xpose.msra.mxu0 0
  %1136 = vmatprep.subr.bf16.mxu0 0
  %1137 = vmatpush2.bf16.xpose.msra.mxu0 0
  %1138 = vmatprep.mubr.bf16.mxu0 0
  %1139 = vmatmul.mubr.bf16.gmra.mxu0 %v1101
  %v1140 = vpop.f32.mrf.mxu0
  %v1141 = vadd.f32 0.0, %v1140
  %v1142 = vpop.f32.mrf.mxu0
  %v1143 = vpop.f32.mrf.mxu0
  %v1144 = vpop.f32.mrf.mxu0
  %1145 = vdwg.mxu0
  %v1146 = vmul.f32 %v1141, 0.35355338
  %v1147 = vadd.f32 %v1146, %v826
  %v1148 = vsel %vm124, %v1147, -inf
  %1149 = vmax.xlane.f32.xlu0 %v1148
  %v1150 = vpop.xlane.xlu0 %1149
  %v1151 = vsub.f32 %v1147, %v1150
  %v1152 = vmul.f32 %v1151, 1.442695
  %v1153 = vpow.pop %v1152
  %v1154 = vsel %vm124, %v1153, 0.0
  %1155 = vadd.xlane.f32.xlu0 %v1154
  %v1156 = vpop.xlane.xlu0 %1155
  %v1157 = vrcp.pop %v1156
  %v1158 = vmul.f32 %v1153, %v1157
  %v1159 = vpack.c.bf16 %v1158, %v1158
  %1160 = vrot.lane.b32.xlu0 %v772, 48
  %v1161 = vpop.permute.xlu0 %1160
  %v1163 = vsel %vm124, %v1159, 0
  %v1166 = vsel %vm194, %v1161, 0
  %1168 = vmatprep.subr.bf16.mxu0 0
  %1169 = vmatpush1.bf16.msra.mxu0 0
  %1170 = vmatprep.subr.bf16.mxu0 0
  %1171 = vmatpush1.bf16.msra.mxu0 0
  %1172 = vmatprep.subr.bf16.mxu0 0
  %1173 = vmatpush1.bf16.msra.mxu0 0
  %1174 = vmatprep.subr.bf16.mxu0 0
  %1175 = vmatpush1.bf16.msra.mxu0 0
  %1176 = vmatprep.subr.bf16.mxu0 0
  %1177 = vmatpush1.bf16.msra.mxu0 0
  %1178 = vmatprep.subr.bf16.mxu0 0
  %1179 = vmatpush1.bf16.msra.mxu0 0
  %1180 = vmatprep.subr.bf16.mxu0 0
  %1181 = vmatpush1.bf16.msra.mxu0 0
  %1182 = vmatprep.subr.bf16.mxu0 0
  %1183 = vmatpush1.bf16.msra.mxu0 %v1166
  %1184 = vmatprep.subr.bf16.mxu0 0
  %1185 = vmatpush2.bf16.msra.mxu0 0
  %1186 = vmatprep.subr.bf16.mxu0 0
  %1187 = vmatpush2.bf16.msra.mxu0 0
  %1188 = vmatprep.subr.bf16.mxu0 0
  %1189 = vmatpush2.bf16.msra.mxu0 0
  %1190 = vmatprep.subr.bf16.mxu0 0
  %1191 = vmatpush2.bf16.msra.mxu0 0
  %1192 = vmatprep.subr.bf16.mxu0 0
  %1193 = vmatpush2.bf16.msra.mxu0 0
  %1194 = vmatprep.subr.bf16.mxu0 0
  %1195 = vmatpush2.bf16.msra.mxu0 0
  %1196 = vmatprep.subr.bf16.mxu0 0
  %1197 = vmatpush2.bf16.msra.mxu0 0
  %1198 = vmatprep.subr.bf16.mxu0 0
  %1199 = vmatpush2.bf16.msra.mxu0 0
  %1200 = vmatprep.mubr.bf16.mxu0 0
  %1201 = vmatmul.mubr.bf16.gmra.mxu0 %v1163
  %v1202 = vpop.f32.mrf.mxu0
  %v1203 = vadd.f32 0.0, %v1202
  %v1204 = vpop.f32.mrf.mxu0
  %v1205 = vpop.f32.mrf.mxu0
  %v1206 = vpop.f32.mrf.mxu0
  %1207 = vdwg.mxu0
  %v1208 = vpack.c.bf16 %v1203, %v1203
  %v1209 = vld [vmem:[%s560] sm:$0xf]
  %v1211 = vsel %vm124, %v1208, 0
  %v1214 = vsel %vm194, %v1209, 0
  %1216 = vmatprep.subr.bf16.mxu0 0
  %1217 = vmatpush1.bf16.msra.mxu0 0
  %1218 = vmatprep.subr.bf16.mxu0 0
  %1219 = vmatpush1.bf16.msra.mxu0 0
  %1220 = vmatprep.subr.bf16.mxu0 0
  %1221 = vmatpush1.bf16.msra.mxu0 0
  %1222 = vmatprep.subr.bf16.mxu0 0
  %1223 = vmatpush1.bf16.msra.mxu0 0
  %1224 = vmatprep.subr.bf16.mxu0 0
  %1225 = vmatpush1.bf16.msra.mxu0 0
  %1226 = vmatprep.subr.bf16.mxu0 0
  %1227 = vmatpush1.bf16.msra.mxu0 0
  %1228 = vmatprep.subr.bf16.mxu0 0
  %1229 = vmatpush1.bf16.msra.mxu0 0
  %1230 = vmatprep.subr.bf16.mxu0 0
  %1231 = vmatpush1.bf16.msra.mxu0 %v1214
  %1232 = vmatprep.subr.bf16.mxu0 0
  %1233 = vmatpush2.bf16.msra.mxu0 0
  %1234 = vmatprep.subr.bf16.mxu0 0
  %1235 = vmatpush2.bf16.msra.mxu0 0
  %1236 = vmatprep.subr.bf16.mxu0 0
  %1237 = vmatpush2.bf16.msra.mxu0 0
  %1238 = vmatprep.subr.bf16.mxu0 0
  %1239 = vmatpush2.bf16.msra.mxu0 0
  %1240 = vmatprep.subr.bf16.mxu0 0
  %1241 = vmatpush2.bf16.msra.mxu0 0
  %1242 = vmatprep.subr.bf16.mxu0 0
  %1243 = vmatpush2.bf16.msra.mxu0 0
  %1244 = vmatprep.subr.bf16.mxu0 0
  %1245 = vmatpush2.bf16.msra.mxu0 0
  %1246 = vmatprep.subr.bf16.mxu0 0
  %1247 = vmatpush2.bf16.msra.mxu0 0
  %1248 = vmatprep.mubr.bf16.mxu0 0
  %1249 = vmatmul.mubr.bf16.gmra.mxu0 %v1211
  %v1250 = vpop.f32.mrf.mxu0
  %v1251 = vadd.f32 0.0, %v1250
  %v1252 = vpop.f32.mrf.mxu0
  %v1253 = vpop.f32.mrf.mxu0
  %v1254 = vpop.f32.mrf.mxu0
  %1255 = vdwg.mxu0
  %v1256 = vadd.f32 %v1091, %v1251
  %1257 = vrot.lane.b32.xlu0 %v772, 104
  %v1258 = vpop.permute.xlu0 %1257
  %1259 = vrot.lane.b32.xlu0 %v772, 72
  %v1260 = vpop.permute.xlu0 %1259
  %v1262 = vsel %vm124, %v1258, 0
  %v1265 = vsel %vm124, %v1260, 0
  %1267 = vmatprep.subr.bf16.mxu0 0
  %1268 = vmatpush1.bf16.xpose.msra.mxu0 0
  %1269 = vmatprep.subr.bf16.mxu0 0
  %1270 = vmatpush1.bf16.xpose.msra.mxu0 0
  %1271 = vmatprep.subr.bf16.mxu0 0
  %1272 = vmatpush1.bf16.xpose.msra.mxu0 0
  %1273 = vmatprep.subr.bf16.mxu0 0
  %1274 = vmatpush1.bf16.xpose.msra.mxu0 0
  %1275 = vmatprep.subr.bf16.mxu0 0
  %1276 = vmatpush1.bf16.xpose.msra.mxu0 0
  %1277 = vmatprep.subr.bf16.mxu0 0
  %1278 = vmatpush1.bf16.xpose.msra.mxu0 0
  %1279 = vmatprep.subr.bf16.mxu0 0
  %1280 = vmatpush1.bf16.xpose.msra.mxu0 0
  %1281 = vmatprep.subr.bf16.mxu0 0
  %1282 = vmatpush1.bf16.xpose.msra.mxu0 %v1265
  %1283 = vmatprep.subr.bf16.mxu0 0
  %1284 = vmatpush2.bf16.xpose.msra.mxu0 0
  %1285 = vmatprep.subr.bf16.mxu0 0
  %1286 = vmatpush2.bf16.xpose.msra.mxu0 0
  %1287 = vmatprep.subr.bf16.mxu0 0
  %1288 = vmatpush2.bf16.xpose.msra.mxu0 0
  %1289 = vmatprep.subr.bf16.mxu0 0
  %1290 = vmatpush2.bf16.xpose.msra.mxu0 0
  %1291 = vmatprep.subr.bf16.mxu0 0
  %1292 = vmatpush2.bf16.xpose.msra.mxu0 0
  %1293 = vmatprep.subr.bf16.mxu0 0
  %1294 = vmatpush2.bf16.xpose.msra.mxu0 0
  %1295 = vmatprep.subr.bf16.mxu0 0
  %1296 = vmatpush2.bf16.xpose.msra.mxu0 0
  %1297 = vmatprep.subr.bf16.mxu0 0
  %1298 = vmatpush2.bf16.xpose.msra.mxu0 0
  %1299 = vmatprep.mubr.bf16.mxu0 0
  %1300 = vmatmul.mubr.bf16.gmra.mxu0 %v1262
  %v1301 = vpop.f32.mrf.mxu0
  %v1302 = vadd.f32 0.0, %v1301
  %v1303 = vpop.f32.mrf.mxu0
  %v1304 = vpop.f32.mrf.mxu0
  %v1305 = vpop.f32.mrf.mxu0
  %1306 = vdwg.mxu0
  %v1307 = vmul.f32 %v1302, 0.35355338
  %v1308 = vadd.f32 %v1307, %v826
  %v1309 = vsel %vm124, %v1308, -inf
  %1310 = vmax.xlane.f32.xlu0 %v1309
  %v1311 = vpop.xlane.xlu0 %1310
  %v1312 = vsub.f32 %v1308, %v1311
  %v1313 = vmul.f32 %v1312, 1.442695
  %v1314 = vpow.pop %v1313
  %v1315 = vsel %vm124, %v1314, 0.0
  %1316 = vadd.xlane.f32.xlu0 %v1315
  %v1317 = vpop.xlane.xlu0 %1316
  %v1318 = vrcp.pop %v1317
  %v1319 = vmul.f32 %v1314, %v1318
  %v1320 = vpack.c.bf16 %v1319, %v1319
  %1321 = vrot.lane.b32.xlu0 %v772, 40
  %v1322 = vpop.permute.xlu0 %1321
  %v1324 = vsel %vm124, %v1320, 0
  %v1327 = vsel %vm194, %v1322, 0
  %1329 = vmatprep.subr.bf16.mxu0 0
  %1330 = vmatpush1.bf16.msra.mxu0 0
  %1331 = vmatprep.subr.bf16.mxu0 0
  %1332 = vmatpush1.bf16.msra.mxu0 0
  %1333 = vmatprep.subr.bf16.mxu0 0
  %1334 = vmatpush1.bf16.msra.mxu0 0
  %1335 = vmatprep.subr.bf16.mxu0 0
  %1336 = vmatpush1.bf16.msra.mxu0 0
  %1337 = vmatprep.subr.bf16.mxu0 0
  %1338 = vmatpush1.bf16.msra.mxu0 0
  %1339 = vmatprep.subr.bf16.mxu0 0
  %1340 = vmatpush1.bf16.msra.mxu0 0
  %1341 = vmatprep.subr.bf16.mxu0 0
  %1342 = vmatpush1.bf16.msra.mxu0 0
  %1343 = vmatprep.subr.bf16.mxu0 0
  %1344 = vmatpush1.bf16.msra.mxu0 %v1327
  %1345 = vmatprep.subr.bf16.mxu0 0
  %1346 = vmatpush2.bf16.msra.mxu0 0
  %1347 = vmatprep.subr.bf16.mxu0 0
  %1348 = vmatpush2.bf16.msra.mxu0 0
  %1349 = vmatprep.subr.bf16.mxu0 0
  %1350 = vmatpush2.bf16.msra.mxu0 0
  %1351 = vmatprep.subr.bf16.mxu0 0
  %1352 = vmatpush2.bf16.msra.mxu0 0
  %1353 = vmatprep.subr.bf16.mxu0 0
  %1354 = vmatpush2.bf16.msra.mxu0 0
  %1355 = vmatprep.subr.bf16.mxu0 0
  %1356 = vmatpush2.bf16.msra.mxu0 0
  %1357 = vmatprep.subr.bf16.mxu0 0
  %1358 = vmatpush2.bf16.msra.mxu0 0
  %1359 = vmatprep.subr.bf16.mxu0 0
  %1360 = vmatpush2.bf16.msra.mxu0 0
  %1361 = vmatprep.mubr.bf16.mxu0 0
  %1362 = vmatmul.mubr.bf16.gmra.mxu0 %v1324
  %v1363 = vpop.f32.mrf.mxu0
  %v1364 = vadd.f32 0.0, %v1363
  %v1365 = vpop.f32.mrf.mxu0
  %v1366 = vpop.f32.mrf.mxu0
  %v1367 = vpop.f32.mrf.mxu0
  %1368 = vdwg.mxu0
  %v1369 = vpack.c.bf16 %v1364, %v1364
  %v1370 = vld [vmem:[%s722] sm:$0xf]
  %v1372 = vsel %vm124, %v1369, 0
  %v1375 = vsel %vm194, %v1370, 0
  %1377 = vmatprep.subr.bf16.mxu0 0
  %1378 = vmatpush1.bf16.msra.mxu0 0
  %1379 = vmatprep.subr.bf16.mxu0 0
  %1380 = vmatpush1.bf16.msra.mxu0 0
  %1381 = vmatprep.subr.bf16.mxu0 0
  %1382 = vmatpush1.bf16.msra.mxu0 0
  %1383 = vmatprep.subr.bf16.mxu0 0
  %1384 = vmatpush1.bf16.msra.mxu0 0
  %1385 = vmatprep.subr.bf16.mxu0 0
  %1386 = vmatpush1.bf16.msra.mxu0 0
  %1387 = vmatprep.subr.bf16.mxu0 0
  %1388 = vmatpush1.bf16.msra.mxu0 0
  %1389 = vmatprep.subr.bf16.mxu0 0
  %1390 = vmatpush1.bf16.msra.mxu0 0
  %1391 = vmatprep.subr.bf16.mxu0 0
  %1392 = vmatpush1.bf16.msra.mxu0 %v1375
  %1393 = vmatprep.subr.bf16.mxu0 0
  %1394 = vmatpush2.bf16.msra.mxu0 0
  %1395 = vmatprep.subr.bf16.mxu0 0
  %1396 = vmatpush2.bf16.msra.mxu0 0
  %1397 = vmatprep.subr.bf16.mxu0 0
  %1398 = vmatpush2.bf16.msra.mxu0 0
  %1399 = vmatprep.subr.bf16.mxu0 0
  %1400 = vmatpush2.bf16.msra.mxu0 0
  %1401 = vmatprep.subr.bf16.mxu0 0
  %1402 = vmatpush2.bf16.msra.mxu0 0
  %1403 = vmatprep.subr.bf16.mxu0 0
  %1404 = vmatpush2.bf16.msra.mxu0 0
  %1405 = vmatprep.subr.bf16.mxu0 0
  %1406 = vmatpush2.bf16.msra.mxu0 0
  %1407 = vmatprep.subr.bf16.mxu0 0
  %1408 = vmatpush2.bf16.msra.mxu0 0
  %1409 = vmatprep.mubr.bf16.mxu0 0
  %1410 = vmatmul.mubr.bf16.gmra.mxu0 %v1372
  %v1411 = vpop.f32.mrf.mxu0
  %v1412 = vadd.f32 0.0, %v1411
  %v1413 = vpop.f32.mrf.mxu0
  %v1414 = vpop.f32.mrf.mxu0
  %v1415 = vpop.f32.mrf.mxu0
  %1416 = vdwg.mxu0
  %v1417 = vadd.f32 %v1256, %v1412
  %1418 = vst.msk [vmem:[#allocation2 + $0x8] sm:$0xff] %vm75, %v1417
  %v1419 = vld [vmem:[#allocation2] sm:$0xff]
  %v1420 = vld [vmem:[#allocation2 + $0x8] sm:$0xff]
  %v1421 = vld [vmem:[%s5] sm:$0x1]
  %v1423 = vlaneseq
  %v1424 = vshrl.u32 %v1423, 7
  %v1425 = vsub.s32 0, %v1424
  %v1426 = vrot.slane %v1421, %v1425
  %v1428 = vadd.f32 %v1419, %v1426
  %v1429 = vadd.f32 %v1420, %v1426
  %v1430 = vadd.f32 %v1428, %v48
  %v1431 = vadd.f32 %v1429, %v49
  %v1432 = vld [vmem:[%s6] sm:$0x1]
  %v1433 = vld [vmem:[%s7] sm:$0x1]
  %v1434 = vsel %vm75, %v1430, 0.0
  %1435 = vadd.xlane.f32.xlu0 %v1434
  %v1436 = vpop.xlane.xlu0 %1435
  %v1437 = vsel %vm75, %v1431, 0.0
  %1438 = vadd.xlane.f32.xlu0 %v1437
  %v1439 = vpop.xlane.xlu0 %1438
  %v1440 = vrcp.pop 32.0
  %v1441 = vmul.f32 %v1436, %v1440
  %v1442 = vmul.f32 %v1439, %v1440
  %v1443 = vsub.f32 %v1430, %v1441
  %v1444 = vsub.f32 %v1431, %v1442
  %v1445 = vmul.f32 %v1443, %v1443
  %v1446 = vmul.f32 %v1444, %v1444
  %v1447 = vsel %vm75, %v1445, 0.0
  %1448 = vadd.xlane.f32.xlu0 %v1447
  %v1449 = vpop.xlane.xlu0 %1448
  %v1450 = vsel %vm75, %v1446, 0.0
  %1451 = vadd.xlane.f32.xlu0 %v1450
  %v1452 = vpop.xlane.xlu0 %1451
  %v1453 = vmul.f32 %v1449, %v1440
  %v1454 = vmul.f32 %v1452, %v1440
  %v1455 = vadd.f32 %v1453, 1e-12
  %v1456 = vadd.f32 %v1454, 1e-12
  %v1457 = vrsqrt.pop %v1455
  %v1458 = vrsqrt.pop %v1456
  %v1459 = vmul.f32 %v1443, %v1457
  %v1460 = vmul.f32 %v1444, %v1458
  %v1462 = vlaneseq
  %v1463 = vshrl.u32 %v1462, 7
  %v1464 = vsub.s32 0, %v1463
  %v1465 = vrot.slane %v1432, %v1464
  %v1467 = vmul.f32 %v1459, %v1465
  %v1468 = vmul.f32 %v1460, %v1465
  %v1470 = vlaneseq
  %v1471 = vshrl.u32 %v1470, 7
  %v1472 = vsub.s32 0, %v1471
  %v1473 = vrot.slane %v1433, %v1472
  %v1475 = vadd.f32 %v1467, %v1473
  %v1476 = vadd.f32 %v1468, %v1473
  %v1477 = vld [vmem:[%s8] sm:$0xf]
  %v1478 = vld [vmem:[%s8 + $0x4] sm:$0xf]
  %v1479 = vld [vmem:[%s8 + $0x8] sm:$0xf]
  %v1480 = vld [vmem:[%s8 + $0xc] sm:$0xf]
  %v1481 = vpack.c.bf16 %v1476, %v1475
  %v1482 = vld [vmem:[%s9] sm:$0x1]
  %v1484 = vlaneseq
  %v1485 = vshrl.u32 %v1484, 7
  %v1486 = vsub.s32 0, %v1485
  %v1487 = vrot.slane %v1482, %v1486
  %v1493 = vunpack.c.l.b16 %v1477
  %v1494 = vunpack.c.l.b16 %v1478
  %v1495 = vunpack.c.l.b16 %v1479
  %v1496 = vunpack.c.l.b16 %v1480
  %v1497 = vpack.c.b16 %v1494, %v1493
  %v1498 = vpack.c.b16 %v1496, %v1495
  %v1502 = vsel %vm75, %v1481, 0
  %1504 = vmatprep.subr.bf16.mxu0 0
  %1505 = vmatpush1.bf16.msra.mxu0 0
  %1506 = vmatprep.subr.bf16.mxu0 0
  %1507 = vmatpush1.bf16.msra.mxu0 0
  %1508 = vmatprep.subr.bf16.mxu0 0
  %1509 = vmatpush1.bf16.msra.mxu0 0
  %1510 = vmatprep.subr.bf16.mxu0 0
  %1511 = vmatpush1.bf16.msra.mxu0 0
  %1512 = vmatprep.subr.bf16.mxu0 0
  %1513 = vmatpush1.bf16.msra.mxu0 0
  %1514 = vmatprep.subr.bf16.mxu0 0
  %1515 = vmatpush1.bf16.msra.mxu0 0
  %1516 = vmatprep.subr.bf16.mxu0 0
  %1517 = vmatpush1.bf16.msra.mxu0 %v1498
  %1518 = vmatprep.subr.bf16.mxu0 0
  %1519 = vmatpush1.bf16.msra.mxu0 %v1497
  %1520 = vmatprep.subr.bf16.mxu0 0
  %1521 = vmatpush2.bf16.msra.mxu0 0
  %1522 = vmatprep.subr.bf16.mxu0 0
  %1523 = vmatpush2.bf16.msra.mxu0 0
  %1524 = vmatprep.subr.bf16.mxu0 0
  %1525 = vmatpush2.bf16.msra.mxu0 0
  %1526 = vmatprep.subr.bf16.mxu0 0
  %1527 = vmatpush2.bf16.msra.mxu0 0
  %1528 = vmatprep.subr.bf16.mxu0 0
  %1529 = vmatpush2.bf16.msra.mxu0 0
  %1530 = vmatprep.subr.bf16.mxu0 0
  %1531 = vmatpush2.bf16.msra.mxu0 0
  %1532 = vmatprep.subr.bf16.mxu0 0
  %1533 = vmatpush2.bf16.msra.mxu0 0
  %1534 = vmatprep.subr.bf16.mxu0 0
  %1535 = vmatpush2.bf16.msra.mxu0 0
  %1536 = vmatprep.mubr.bf16.mxu0 0
  %1537 = vmatmul.mubr.bf16.gmra.mxu0 %v1502
  %v1538 = vpop.f32.mrf.mxu0
  %v1539 = vadd.f32 %v1487, %v1538
  %v1540 = vpop.f32.mrf.mxu0
  %v1541 = vpop.f32.mrf.mxu0
  %v1542 = vadd.f32 %v1487, %v1541
  %v1543 = vpop.f32.mrf.mxu0
  %1544 = vdwg.mxu0
  %v1545 = vmul.f32 %v1539, 0.5
  %v1546 = vmul.f32 %v1542, 0.5
  %v1547 = vmul.f32 %v1539, 0.044715
  %v1548 = vmul.f32 %v1542, 0.044715
  %v1549 = vmul.f32 %v1547, %v1539
  %v1550 = vmul.f32 %v1548, %v1542
  %v1551 = vmul.f32 %v1549, %v1539
  %v1552 = vmul.f32 %v1550, %v1542
  %v1553 = vadd.f32 %v1539, %v1551
  %v1554 = vadd.f32 %v1542, %v1552
  %v1555 = vmul.f32 %v1553, 0.7978846
  %v1556 = vmul.f32 %v1554, 0.7978846
  %v1557 = vtanh.pop %v1555
  %v1558 = vtanh.pop %v1556
  %v1559 = vadd.f32 %v1557, 1.0
  %v1560 = vadd.f32 %v1558, 1.0
  %v1561 = vmul.f32 %v1545, %v1559
  %v1562 = vmul.f32 %v1546, %v1560
  %v1563 = vld [vmem:[%s10] sm:$0xf]
  %v1564 = vld [vmem:[%s10 + $0x4] sm:$0xf]
  %v1565 = vld [vmem:[%s10 + $0x8] sm:$0xf]
  %v1566 = vld [vmem:[%s10 + $0xc] sm:$0xf]
  %v1567 = vld [vmem:[%s10 + $0x10] sm:$0xf]
  %v1568 = vld [vmem:[%s10 + $0x14] sm:$0xf]
  %v1569 = vld [vmem:[%s10 + $0x18] sm:$0xf]
  %v1570 = vld [vmem:[%s10 + $0x1c] sm:$0xf]
  %v1571 = vpack.c.bf16 %v1562, %v1561
  %v1572 = vld [vmem:[%s11] sm:$0x1]
  %v1574 = vlaneseq
  %v1575 = vshrl.u32 %v1574, 7
  %v1576 = vsub.s32 0, %v1575
  %v1577 = vrot.slane %v1572, %v1576
  %v1587 = vunpack.c.l.b16 %v1563
  %v1588 = vunpack.c.l.b16 %v1564
  %v1589 = vunpack.c.l.b16 %v1565
  %v1590 = vunpack.c.l.b16 %v1566
  %v1591 = vunpack.c.l.b16 %v1567
  %v1592 = vunpack.c.l.b16 %v1568
  %v1593 = vunpack.c.l.b16 %v1569
  %v1594 = vunpack.c.l.b16 %v1570
  %v1595 = vpack.c.b16 %v1588, %v1587
  %v1596 = vpack.c.b16 %v1590, %v1589
  %v1597 = vpack.c.b16 %v1592, %v1591
  %v1598 = vpack.c.b16 %v1594, %v1593
  %vm1603 = vcmask 523264
  %v1605 = vsel %vm1603, %v1571, 0
  %1607 = vmatprep.subr.bf16.mxu0 0
  %1608 = vmatpush1.bf16.msra.mxu0 0
  %1609 = vmatprep.subr.bf16.mxu0 0
  %1610 = vmatpush1.bf16.msra.mxu0 0
  %1611 = vmatprep.subr.bf16.mxu0 0
  %1612 = vmatpush1.bf16.msra.mxu0 0
  %1613 = vmatprep.subr.bf16.mxu0 0
  %1614 = vmatpush1.bf16.msra.mxu0 0
  %1615 = vmatprep.subr.bf16.mxu0 0
  %1616 = vmatpush1.bf16.msra.mxu0 %v1598
  %1617 = vmatprep.subr.bf16.mxu0 0
  %1618 = vmatpush1.bf16.msra.mxu0 %v1597
  %1619 = vmatprep.subr.bf16.mxu0 0
  %1620 = vmatpush1.bf16.msra.mxu0 %v1596
  %1621 = vmatprep.subr.bf16.mxu0 0
  %1622 = vmatpush1.bf16.msra.mxu0 %v1595
  %1623 = vmatprep.subr.bf16.mxu0 0
  %1624 = vmatpush2.bf16.msra.mxu0 0
  %1625 = vmatprep.subr.bf16.mxu0 0
  %1626 = vmatpush2.bf16.msra.mxu0 0
  %1627 = vmatprep.subr.bf16.mxu0 0
  %1628 = vmatpush2.bf16.msra.mxu0 0
  %1629 = vmatprep.subr.bf16.mxu0 0
  %1630 = vmatpush2.bf16.msra.mxu0 0
  %1631 = vmatprep.subr.bf16.mxu0 0
  %1632 = vmatpush2.bf16.msra.mxu0 0
  %1633 = vmatprep.subr.bf16.mxu0 0
  %1634 = vmatpush2.bf16.msra.mxu0 0
  %1635 = vmatprep.subr.bf16.mxu0 0
  %1636 = vmatpush2.bf16.msra.mxu0 0
  %1637 = vmatprep.subr.bf16.mxu0 0
  %1638 = vmatpush2.bf16.msra.mxu0 0
  %1639 = vmatprep.mubr.bf16.mxu0 0
  %1640 = vmatmul.mubr.bf16.gmra.mxu0 %v1605
  %v1641 = vpop.f32.mrf.mxu0
  %v1642 = vadd.f32 %v1577, %v1641
  %v1643 = vpop.f32.mrf.mxu0
  %v1644 = vpop.f32.mrf.mxu0
  %v1645 = vadd.f32 %v1577, %v1644
  %v1646 = vpop.f32.mrf.mxu0
  %1647 = vdwg.mxu0
  %v1648 = vadd.f32 %v1642, %v1475
  %v1649 = vadd.f32 %v1645, %v1476
  %v1650 = vld [vmem:[%s12] sm:$0x1]
  %v1651 = vld [vmem:[%s13] sm:$0x1]
  %v1652 = vsel %vm75, %v1648, 0.0
  %1653 = vadd.xlane.f32.xlu0 %v1652
  %v1654 = vpop.xlane.xlu0 %1653
  %v1655 = vsel %vm75, %v1649, 0.0
  %1656 = vadd.xlane.f32.xlu0 %v1655
  %v1657 = vpop.xlane.xlu0 %1656
  %v1658 = vmul.f32 %v1654, %v1440
  %v1659 = vmul.f32 %v1657, %v1440
  %v1660 = vsub.f32 %v1648, %v1658
  %v1661 = vsub.f32 %v1649, %v1659
  %v1662 = vmul.f32 %v1660, %v1660
  %v1663 = vmul.f32 %v1661, %v1661
  %v1664 = vsel %vm75, %v1662, 0.0
  %1665 = vadd.xlane.f32.xlu0 %v1664
  %v1666 = vpop.xlane.xlu0 %1665
  %v1667 = vsel %vm75, %v1663, 0.0
  %1668 = vadd.xlane.f32.xlu0 %v1667
  %v1669 = vpop.xlane.xlu0 %1668
  %v1670 = vmul.f32 %v1666, %v1440
  %v1671 = vmul.f32 %v1669, %v1440
  %v1672 = vadd.f32 %v1670, 1e-12
  %v1673 = vadd.f32 %v1671, 1e-12
  %v1674 = vrsqrt.pop %v1672
  %v1675 = vrsqrt.pop %v1673
  %v1676 = vmul.f32 %v1660, %v1674
  %v1677 = vmul.f32 %v1661, %v1675
  %v1679 = vlaneseq
  %v1680 = vshrl.u32 %v1679, 7
  %v1681 = vsub.s32 0, %v1680
  %v1682 = vrot.slane %v1650, %v1681
  %v1684 = vmul.f32 %v1676, %v1682
  %v1685 = vmul.f32 %v1677, %v1682
  %v1687 = vlaneseq
  %v1688 = vshrl.u32 %v1687, 7
  %v1689 = vsub.s32 0, %v1688
  %v1690 = vrot.slane %v1651, %v1689
  %v1692 = vadd.f32 %v1684, %v1690
  %v1693 = vadd.f32 %v1685, %v1690
  %1694 = vst.msk [vmem:[%s14] sm:$0xff] %vm75, %v1692
  %1695 = vst.msk [vmem:[%s14 + $0x8] sm:$0xff] %vm75, %v1693
  // Predicated region
  $region58: #{sentiment_classifier_forward.5} parent=0 // pred_check
    _
  $region59: #{sentiment_classifier_forward.5} parent=0 // pred_check_branch
    %1697 = sbr.rel (0) target = $region61
  $region60: #{sentiment_classifier_forward.5} parent=0 // pred_region
    _
  $region61: #{sentiment_classifier_forward.5} parent=0 // pred_fallthru
    _
  // Predicated region
  $region62: #{sentiment_classifier_forward.5} parent=0 // pred_check
    _
  $region63: #{sentiment_classifier_forward.5} parent=0 // pred_check_branch
    %1699 = sbr.rel (0) target = $region65
  $region64: #{sentiment_classifier_forward.5} parent=0 // pred_region
    _
  $region65: #{sentiment_classifier_forward.5} parent=0 // pred_fallthru
    _

</llo_original>
